<compile_context>
chip_gen: v7x
topology: tpu7x:2x2x1
jax: 0.10.0
libtpu: 0.0.40
codegen_flags: <defaults>
</compile_context>

<pallas_src>
import functools

import jax
import jax.numpy as jnp
from jax.experimental import pallas as pl
from jax.experimental.pallas import tpu as pltpu

NUM_ACTIONS = 3
_HEAD_HIDDEN = 512
_HEAD_NPAD = 128                 # lane-dense padded width of fused head layer-2
_VMEM_LIMIT = 32 * 1024 * 1024   # safe scoped-VMEM budget on v5e/v6e/v7x


def _round_up(x, m):
    return ((x + m - 1) // m) * m


# ----------------------------------------------------------------------------
# Pallas kernels
# ----------------------------------------------------------------------------
def _matmul_bias_kernel(a_ref, w_ref, b_ref, o_ref, *, apply_relu):
    """o = a @ w + b (bf16 MXU inputs, f32 accumulate), optional ReLU."""
    out = jnp.dot(a_ref[...], w_ref[...], preferred_element_type=jnp.float32)
    out = out + b_ref[...]
    if apply_relu:
        out = jnp.maximum(out, 0.0)
    o_ref[...] = out.astype(o_ref.dtype)


def _pallas_matmul_bias(a, w, b, *, apply_relu, out_dtype=jnp.bfloat16,
                        tm_max=512):
    """a: (M, K) bf16, w: (K, N) bf16, b: (1, N) f32 -> (M, N) out_dtype.

    Gridded over M so the patch slab streams (double-buffered) through VMEM;
    weights/bias stay resident across grid steps.
    """
    M, K = a.shape
    K2, N = w.shape
    assert K == K2

    a = a.astype(jnp.bfloat16)
    w = w.astype(jnp.bfloat16)
    b = b.astype(jnp.float32)

    # tile: multiple of 8 sublanes, capped; pad M so the grid divides evenly.
    tm = min(tm_max, _round_up(M, 8))
    Mp = _round_up(M, tm)
    if Mp != M:
        a = jnp.pad(a, ((0, Mp - M), (0, 0)))
    grid = (Mp // tm,)

    kernel = functools.partial(_matmul_bias_kernel, apply_relu=apply_relu)
    out_bytes = jnp.dtype(out_dtype).itemsize
    flops = 2 * Mp * K * N
    bytes_accessed = Mp * K * 2 + K * N * 2 + N * 4 + Mp * N * out_bytes

    out = pl.pallas_call(
        kernel,
        out_shape=jax.ShapeDtypeStruct((Mp, N), out_dtype),
        grid=grid,
        in_specs=[
            pl.BlockSpec((tm, K), lambda i: (i, 0)),   # streamed patch tile
            pl.BlockSpec((K, N), lambda i: (0, 0)),    # weights (resident)
            pl.BlockSpec((1, N), lambda i: (0, 0)),    # bias
        ],
        out_specs=pl.BlockSpec((tm, N), lambda i: (i, 0)),
        compiler_params=pltpu.CompilerParams(
            dimension_semantics=("parallel",),          # megacore on v7x
            vmem_limit_bytes=_VMEM_LIMIT,
        ),
        cost_estimate=pl.CostEstimate(
            flops=flops, transcendentals=0, bytes_accessed=bytes_accessed),
    )(a, w, b)
    return out[:M]


def _heads_math(feat, w1_ref, b1_ref, w2_ref, b2_ref, num_actions):
    """Fused dueling heads on a VMEM-resident feature block.

    layer 1: one (F, 2*512) matmul  -> [adv_hidden | val_hidden], ReLU
    layer 2: one (1024, 128) block-diagonal matmul -> [adv | val | 0...]
    combine: q = value + advantage - advantage.mean()   (scalar mean)
    """
    h = jnp.dot(feat.astype(w1_ref.dtype), w1_ref[...],
                preferred_element_type=jnp.float32)
    h = jnp.maximum(h + b1_ref[...], 0.0)
    out2 = jnp.dot(h.astype(w2_ref.dtype), w2_ref[...],
                   preferred_element_type=jnp.float32) + b2_ref[...]
    adv = out2[:, :num_actions]
    val = out2[:, num_actions:num_actions + 1]
    return val + adv - jnp.mean(adv)


def _fused_tail_kernel(p3_ref, w3_ref, b3_ref, w1_ref, b1_ref, w2_ref, b2_ref,
                       q_ref, *, num_actions):
    """conv3 (1x1 output spatial) + dueling heads fused in one kernel."""
    feat = jnp.dot(p3_ref[...], w3_ref[...], preferred_element_type=jnp.float32)
    feat = jnp.maximum(feat + b3_ref[...], 0.0)
    q_ref[...] = _heads_math(feat, w1_ref, b1_ref, w2_ref, b2_ref,
                             num_actions).astype(q_ref.dtype)


def _dueling_heads_kernel(feat_ref, w1_ref, b1_ref, w2_ref, b2_ref, q_ref,
                          *, num_actions):
    q_ref[...] = _heads_math(feat_ref[...], w1_ref, b1_ref, w2_ref, b2_ref,
                             num_actions).astype(q_ref.dtype)


def _pallas_fused_tail(p3, w3, b3, hw1, hb1, hw2, hb2, num_actions):
    """p3: (B, K3) bf16 conv3 patches (conv3 output spatial == 1x1)."""
    B, K3 = p3.shape
    C3 = w3.shape[1]
    F, H2 = hw1.shape
    NPAD = hw2.shape[1]
    assert F == C3

    kernel = functools.partial(_fused_tail_kernel, num_actions=num_actions)
    flops = 2 * B * (K3 * C3 + F * H2 + H2 * NPAD)
    bytes_accessed = (B * K3 * 2 + K3 * C3 * 2 + C3 * 4 + F * H2 * 2 + H2 * 4
                      + H2 * NPAD * 2 + NPAD * 4 + B * num_actions * 4)

    # NOTE: the whole batch must be one block — advantage.mean() couples batch
    # rows (matches the PyTorch reference), so we cannot grid over B.
    return pl.pallas_call(
        kernel,
        out_shape=jax.ShapeDtypeStruct((B, num_actions), jnp.float32),
        in_specs=[
            pl.BlockSpec((B, K3), lambda: (0, 0)),
            pl.BlockSpec((K3, C3), lambda: (0, 0)),
            pl.BlockSpec((1, C3), lambda: (0, 0)),
            pl.BlockSpec((F, H2), lambda: (0, 0)),
            pl.BlockSpec((1, H2), lambda: (0, 0)),
            pl.BlockSpec((H2, NPAD), lambda: (0, 0)),
            pl.BlockSpec((1, NPAD), lambda: (0, 0)),
        ],
        out_specs=pl.BlockSpec((B, num_actions), lambda: (0, 0)),
        compiler_params=pltpu.CompilerParams(vmem_limit_bytes=_VMEM_LIMIT),
        cost_estimate=pl.CostEstimate(
            flops=flops, transcendentals=0, bytes_accessed=bytes_accessed),
    )(p3, w3, b3, hw1, hb1, hw2, hb2)


def _pallas_dueling_heads(feat, w1, b1, w2, b2, num_actions):
    """Generic fallback (conv3 output spatial > 1x1): heads-only kernel."""
    B, F = feat.shape
    H2 = w1.shape[1]
    NPAD = w2.shape[1]
    feat = feat.astype(jnp.bfloat16)

    kernel = functools.partial(_dueling_heads_kernel, num_actions=num_actions)
    flops = 2 * B * (F * H2 + H2 * NPAD)
    bytes_accessed = (B * F * 2 + F * H2 * 2 + H2 * 4 + H2 * NPAD * 2
                      + NPAD * 4 + B * num_actions * 4)

    return pl.pallas_call(
        kernel,
        out_shape=jax.ShapeDtypeStruct((B, num_actions), jnp.float32),
        in_specs=[
            pl.BlockSpec((B, F), lambda: (0, 0)),
            pl.BlockSpec((F, H2), lambda: (0, 0)),
            pl.BlockSpec((1, H2), lambda: (0, 0)),
            pl.BlockSpec((H2, NPAD), lambda: (0, 0)),
            pl.BlockSpec((1, NPAD), lambda: (0, 0)),
        ],
        out_specs=pl.BlockSpec((B, num_actions), lambda: (0, 0)),
        compiler_params=pltpu.CompilerParams(vmem_limit_bytes=_VMEM_LIMIT),
        cost_estimate=pl.CostEstimate(
            flops=flops, transcendentals=0, bytes_accessed=bytes_accessed),
    )(feat, w1, b1, w2, b2)


# ----------------------------------------------------------------------------
# Glue: NHWC im2col (plain JAX, fused under the same jit)
# ----------------------------------------------------------------------------
# TODO(synk): build the im2col patch slab inside the Pallas kernel (BlockSpec
# over NHWC input rows) to avoid the patch-matrix HBM round trip.
def _im2col_nhwc(x, kh, kw, stride):
    """x: (B, H, W, C) -> (B*Ho*Wo, kh*kw*C); feature order (kh, kw, C)."""
    B, H, W, C = x.shape
    Ho = (H - kh) // stride + 1
    Wo = (W - kw) // stride + 1
    cols = []
    for i in range(kh):
        for j in range(kw):
            cols.append(
                x[:, i:i + stride * Ho:stride, j:j + stride * Wo:stride, :]
            )  # (B, Ho, Wo, C)
    p = jnp.concatenate(cols, axis=-1)                     # (B, Ho, Wo, kh*kw*C)
    return p.reshape(B * Ho * Wo, kh * kw * C), Ho, Wo


# ----------------------------------------------------------------------------
# DDDQN parameters + forward
# ----------------------------------------------------------------------------
def init_dddqn_params(key, input_shape, num_actions):
    """Deterministic PyTorch-style (uniform +/- 1/sqrt(fan_in)) init."""
    c_in, H, W = input_shape

    def uinit(k, shape, fan_in):
        bound = 1.0 / jnp.sqrt(jnp.float32(fan_in))
        return jax.random.uniform(k, shape, jnp.float32, -bound, bound)

    ks = jax.random.split(key, 16)

    conv1_w = uinit(ks[0], (32, c_in, 8, 8), c_in * 8 * 8)
    conv1_b = uinit(ks[1], (32,), c_in * 8 * 8)
    conv2_w = uinit(ks[2], (64, 32, 4, 4), 32 * 4 * 4)
    conv2_b = uinit(ks[3], (64,), 32 * 4 * 4)
    conv3_w = uinit(ks[4], (128, 64, 4, 4), 64 * 4 * 4)
    conv3_b = uinit(ks[5], (128,), 64 * 4 * 4)

    # feature size (mirror of DDDQN.feature_size())
    h1 = (H - 8) // 2 + 1
    w1 = (W - 8) // 2 + 1
    h2 = (h1 - 4) // 2 + 1
    w2 = (w1 - 4) // 2 + 1
    h3 = (h2 - 4) // 2 + 1
    w3 = (w2 - 4) // 2 + 1
    feat_size = 128 * h3 * w3

    adv_w1 = uinit(ks[6], (feat_size, _HEAD_HIDDEN), feat_size)
    adv_b1 = uinit(ks[7], (1, _HEAD_HIDDEN), feat_size)
    adv_w2 = uinit(ks[8], (_HEAD_HIDDEN, num_actions), _HEAD_HIDDEN)
    adv_b2 = uinit(ks[9], (1, num_actions), _HEAD_HIDDEN)
    val_w1 = uinit(ks[10], (feat_size, _HEAD_HIDDEN), feat_size)
    val_b1 = uinit(ks[11], (1, _HEAD_HIDDEN), feat_size)
    val_w2 = uinit(ks[12], (_HEAD_HIDDEN, 1), _HEAD_HIDDEN)
    val_b2 = uinit(ks[13], (1, 1), _HEAD_HIDDEN)

    return dict(
        conv1_w=conv1_w, conv1_b=conv1_b,
        conv2_w=conv2_w, conv2_b=conv2_b,
        conv3_w=conv3_w, conv3_b=conv3_b,
        adv_w1=adv_w1, adv_b1=adv_b1, adv_w2=adv_w2, adv_b2=adv_b2,
        val_w1=val_w1, val_b1=val_b1, val_w2=val_w2, val_b2=val_b2,
    )


def prepare_params(params, num_actions=NUM_ACTIONS):
    """One-time conversion (outside the step loop) to kernel-ready tensors."""
    def conv_w2d(w):
        cout, cin, kh, kw = w.shape
        # reorder to the im2col patch feature order (kh, kw, cin)
        return (w.transpose(2, 3, 1, 0).reshape(kh * kw * cin, cout)
                .astype(jnp.bfloat16))

    H = params["adv_w1"].shape[1]                                  # 512
    hw1 = jnp.concatenate([params["adv_w1"], params["val_w1"]],
                          axis=1).astype(jnp.bfloat16)             # (F, 1024)
    hb1 = jnp.concatenate([params["adv_b1"], params["val_b1"]],
                          axis=1).astype(jnp.float32)              # (1, 1024)
    hw2 = jnp.zeros((2 * H, _HEAD_NPAD), jnp.float32)
    hw2 = hw2.at[:H, :num_actions].set(params["adv_w2"])
    hw2 = hw2.at[H:, num_actions:num_actions + 1].set(params["val_w2"])
    hb2 = jnp.zeros((1, _HEAD_NPAD), jnp.float32)
    hb2 = hb2.at[:, :num_actions].set(params["adv_b2"])
    hb2 = hb2.at[:, num_actions:num_actions + 1].set(params["val_b2"])

    return dict(
        c1_w=conv_w2d(params["conv1_w"]),
        c1_b=params["conv1_b"].reshape(1, -1).astype(jnp.float32),
        c2_w=conv_w2d(params["conv2_w"]),
        c2_b=params["conv2_b"].reshape(1, -1).astype(jnp.float32),
        c3_w=conv_w2d(params["conv3_w"]),
        c3_b=params["conv3_b"].reshape(1, -1).astype(jnp.float32),
        hw1=hw1, hb1=hb1, hw2=hw2.astype(jnp.bfloat16), hb2=hb2,
    )


@jax.jit
def dddqn_forward(prepared, x):
    """x: (B, C, H, W) float32 (PyTorch NCHW) -> q-values (B, NUM_ACTIONS)."""
    B = x.shape[0]
    # NHWC + bf16 once at entry; the conv stack stays NHWC/bf16 end-to-end.
    x = jnp.transpose(x, (0, 2, 3, 1)).astype(jnp.bfloat16)

    # conv1: 8x8 stride 2
    p, ho, wo = _im2col_nhwc(x, 8, 8, 2)
    y = _pallas_matmul_bias(p, prepared["c1_w"], prepared["c1_b"],
                            apply_relu=True)
    x = y.reshape(B, ho, wo, prepared["c1_w"].shape[1])

    # conv2: 4x4 stride 2
    p, ho, wo = _im2col_nhwc(x, 4, 4, 2)
    y = _pallas_matmul_bias(p, prepared["c2_w"], prepared["c2_b"],
                            apply_relu=True)
    x = y.reshape(B, ho, wo, prepared["c2_w"].shape[1])

    # conv3: 4x4 stride 2 (+ dueling heads)
    p, ho, wo = _im2col_nhwc(x, 4, 4, 2)
    if ho == 1 and wo == 1:
        # conv3 output spatial is 1x1 (reference configuration): the PyTorch
        # NCHW flatten is a no-op, so conv3 + both dueling heads fuse into a
        # single Pallas kernel (no feature HBM round trip).
        return _pallas_fused_tail(p, prepared["c3_w"], prepared["c3_b"],
                                  prepared["hw1"], prepared["hb1"],
                                  prepared["hw2"], prepared["hb2"],
                                  NUM_ACTIONS)

    # generic fallback: separate conv3, then flatten in PyTorch NCHW order.
    y = _pallas_matmul_bias(p, prepared["c3_w"], prepared["c3_b"],
                            apply_relu=True)
    x = y.reshape(B, ho, wo, prepared["c3_w"].shape[1])
    feat = jnp.transpose(x, (0, 3, 1, 2)).reshape(B, -1)
    return _pallas_dueling_heads(feat, prepared["hw1"], prepared["hb1"],
                                 prepared["hw2"], prepared["hb2"], NUM_ACTIONS)


if __name__ == "__main__":
    # (C=4, H=32, W=32) is the smallest clean spatial size that survives the
    # three strided convs (32 -> 13 -> 5 -> 1), giving feature_size = 128.
    input_shape = (4, 32, 32)
    batch = 2

    key = jax.random.PRNGKey(0)
    pkey, xkey = jax.random.split(key)

    params = init_dddqn_params(pkey, input_shape, NUM_ACTIONS)
    prepared = prepare_params(params, NUM_ACTIONS)
    x = jax.random.normal(xkey, (batch,) + input_shape, dtype=jnp.float32)

    q = dddqn_forward(prepared, x)
    q = jax.block_until_ready(q)

    assert q.shape == (batch, NUM_ACTIONS), q.shape
    assert q.dtype == jnp.float32, q.dtype
    assert bool(jnp.all(jnp.isfinite(q)))
    print("KERNEL_OK")
</pallas_src>

<mosaic_0001>
module attributes {stable_mosaic.version = 11 : i64} {
  func.func @_matmul_bias_kernel(%arg0: i32, %arg1: memref<344x256xbf16, #tpu.memory_space<vmem>>, %arg2: memref<256x32xbf16, #tpu.memory_space<vmem>>, %arg3: memref<1x32xf32, #tpu.memory_space<vmem>>, %arg4: memref<344x32xbf16, #tpu.memory_space<vmem>>) attributes {dimension_semantics = [#tpu.dimension_semantics<parallel>], iteration_bounds = array<i64: 1>, scalar_prefetch = 0 : i64, scratch_operands = 0 : i64, tpu.core_type = #tpu.core_type<tc>, window_params = [{transform_indices = @transform_0, window_bounds = array<i64: 344, 256>}, {pipeline_mode = #tpu.pipeline_mode<synchronous>, transform_indices = @transform_1, window_bounds = array<i64: 256, 32>}, {pipeline_mode = #tpu.pipeline_mode<synchronous>, transform_indices = @transform_2, window_bounds = array<i64: 1, 32>}, {transform_indices = @transform_3, window_bounds = array<i64: 344, 32>}]} {
    %c0 = arith.constant 0 : index
    %c0_0 = arith.constant 0 : index
    %0 = vector.load %arg1[%c0, %c0_0] : memref<344x256xbf16, #tpu.memory_space<vmem>>, vector<344x256xbf16>
    %c0_1 = arith.constant 0 : index
    %c0_2 = arith.constant 0 : index
    %1 = vector.load %arg2[%c0_1, %c0_2] : memref<256x32xbf16, #tpu.memory_space<vmem>>, vector<256x32xbf16>
    %cst = arith.constant dense<0.000000e+00> : vector<344x32xf32>
    %2 = tpu.matmul %0, %1, %cst {dimension_numbers = #tpu.dot_dimension_numbers<[1], [0], [0], [1], [0, 0, 1, 1], [], []>} : vector<344x256xbf16>, vector<256x32xbf16>, vector<344x32xf32> -> vector<344x32xf32>
    %c0_3 = arith.constant 0 : index
    %c0_4 = arith.constant 0 : index
    %3 = vector.load %arg3[%c0_3, %c0_4] : memref<1x32xf32, #tpu.memory_space<vmem>>, vector<1x32xf32>
    %4 = vector.broadcast %3 : vector<1x32xf32> to vector<344x32xf32>
    %5 = arith.addf %2, %4 : vector<344x32xf32>
    %cst_5 = arith.constant 0.000000e+00 : f32
    %6 = vector.broadcast %cst_5 : f32 to vector<344x32xf32>
    %7 = arith.maximumf %5, %6 : vector<344x32xf32>
    %8 = arith.truncf %7 : vector<344x32xf32> to vector<344x32xbf16>
    %c0_6 = arith.constant 0 : index
    %c0_7 = arith.constant 0 : index
    %9 = vector.load %arg4[%c0_6, %c0_7] : memref<344x32xbf16, #tpu.memory_space<vmem>>, vector<344x32xbf16>
    tpu.vector_store %arg4[%c0_6, %c0_7], %8 {strides = array<i32>} : memref<344x32xbf16, #tpu.memory_space<vmem>>, vector<344x32xbf16>,
    return
  }
  func.func @transform_0(%arg0: i32) -> (i32, i32) {
    %c0_i32 = arith.constant 0 : i32
    %c0_i32_0 = arith.constant 0 : i32
    return %arg0, %c0_i32 : i32, i32
  }
  func.func @transform_1(%arg0: i32) -> (i32, i32) {
    %c0_i32 = arith.constant 0 : i32
    %c0_i32_0 = arith.constant 0 : i32
    %c0_i32_1 = arith.constant 0 : i32
    return %c0_i32, %c0_i32_0 : i32, i32
  }
  func.func @transform_2(%arg0: i32) -> (i32, i32) {
    %c0_i32 = arith.constant 0 : i32
    %c0_i32_0 = arith.constant 0 : i32
    %c0_i32_1 = arith.constant 0 : i32
    return %c0_i32, %c0_i32_0 : i32, i32
  }
  func.func @transform_3(%arg0: i32) -> (i32, i32) {
    %c0_i32 = arith.constant 0 : i32
    %c0_i32_0 = arith.constant 0 : i32
    return %arg0, %c0_i32 : i32, i32
  }
}

module attributes {stable_mosaic.version = 11 : i64} {
  func.func @_matmul_bias_kernel(%arg0: i32, %arg1: memref<56x512xbf16, #tpu.memory_space<vmem>>, %arg2: memref<512x64xbf16, #tpu.memory_space<vmem>>, %arg3: memref<1x64xf32, #tpu.memory_space<vmem>>, %arg4: memref<56x64xbf16, #tpu.memory_space<vmem>>) attributes {dimension_semantics = [#tpu.dimension_semantics<parallel>], iteration_bounds = array<i64: 1>, scalar_prefetch = 0 : i64, scratch_operands = 0 : i64, tpu.core_type = #tpu.core_type<tc>, window_params = [{transform_indices = @transform_0, window_bounds = array<i64: 56, 512>}, {pipeline_mode = #tpu.pipeline_mode<synchronous>, transform_indices = @transform_1, window_bounds = array<i64: 512, 64>}, {pipeline_mode = #tpu.pipeline_mode<synchronous>, transform_indices = @transform_2, window_bounds = array<i64: 1, 64>}, {transform_indices = @transform_3, window_bounds = array<i64: 56, 64>}]} {
    %c0 = arith.constant 0 : index
    %c0_0 = arith.constant 0 : index
    %0 = vector.load %arg1[%c0, %c0_0] : memref<56x512xbf16, #tpu.memory_space<vmem>>, vector<56x512xbf16>
    %c0_1 = arith.constant 0 : index
    %c0_2 = arith.constant 0 : index
    %1 = vector.load %arg2[%c0_1, %c0_2] : memref<512x64xbf16, #tpu.memory_space<vmem>>, vector<512x64xbf16>
    %cst = arith.constant dense<0.000000e+00> : vector<56x64xf32>
    %2 = tpu.matmul %0, %1, %cst {dimension_numbers = #tpu.dot_dimension_numbers<[1], [0], [0], [1], [0, 0, 1, 1], [], []>} : vector<56x512xbf16>, vector<512x64xbf16>, vector<56x64xf32> -> vector<56x64xf32>
    %c0_3 = arith.constant 0 : index
    %c0_4 = arith.constant 0 : index
    %3 = vector.load %arg3[%c0_3, %c0_4] : memref<1x64xf32, #tpu.memory_space<vmem>>, vector<1x64xf32>
    %4 = vector.broadcast %3 : vector<1x64xf32> to vector<56x64xf32>
    %5 = arith.addf %2, %4 : vector<56x64xf32>
    %cst_5 = arith.constant 0.000000e+00 : f32
    %6 = vector.broadcast %cst_5 : f32 to vector<56x64xf32>
    %7 = arith.maximumf %5, %6 : vector<56x64xf32>
    %8 = arith.truncf %7 : vector<56x64xf32> to vector<56x64xbf16>
    %c0_6 = arith.constant 0 : index
    %c0_7 = arith.constant 0 : index
    %9 = vector.load %arg4[%c0_6, %c0_7] : memref<56x64xbf16, #tpu.memory_space<vmem>>, vector<56x64xbf16>
    tpu.vector_store %arg4[%c0_6, %c0_7], %8 {strides = array<i32>} : memref<56x64xbf16, #tpu.memory_space<vmem>>, vector<56x64xbf16>,
    return
  }
  func.func @transform_0(%arg0: i32) -> (i32, i32) {
    %c0_i32 = arith.constant 0 : i32
    %c0_i32_0 = arith.constant 0 : i32
    return %arg0, %c0_i32 : i32, i32
  }
  func.func @transform_1(%arg0: i32) -> (i32, i32) {
    %c0_i32 = arith.constant 0 : i32
    %c0_i32_0 = arith.constant 0 : i32
    %c0_i32_1 = arith.constant 0 : i32
    return %c0_i32, %c0_i32_0 : i32, i32
  }
  func.func @transform_2(%arg0: i32) -> (i32, i32) {
    %c0_i32 = arith.constant 0 : i32
    %c0_i32_0 = arith.constant 0 : i32
    %c0_i32_1 = arith.constant 0 : i32
    return %c0_i32, %c0_i32_0 : i32, i32
  }
  func.func @transform_3(%arg0: i32) -> (i32, i32) {
    %c0_i32 = arith.constant 0 : i32
    %c0_i32_0 = arith.constant 0 : i32
    return %arg0, %c0_i32 : i32, i32
  }
}

module attributes {stable_mosaic.version = 11 : i64} {
  func.func @_fused_tail_kernel(%arg0: memref<2x1024xbf16, #tpu.memory_space<vmem>>, %arg1: memref<1024x128xbf16, #tpu.memory_space<vmem>>, %arg2: memref<1x128xf32, #tpu.memory_space<vmem>>, %arg3: memref<128x1024xbf16, #tpu.memory_space<vmem>>, %arg4: memref<1x1024xf32, #tpu.memory_space<vmem>>, %arg5: memref<1024x128xbf16, #tpu.memory_space<vmem>>, %arg6: memref<1x128xf32, #tpu.memory_space<vmem>>, %arg7: memref<2x3xf32, #tpu.memory_space<vmem>>) attributes {dimension_semantics = [], scalar_prefetch = 0 : i64, scratch_operands = 0 : i64, tpu.core_type = #tpu.core_type<tc>} {
    %c0 = arith.constant 0 : index
    %c0_0 = arith.constant 0 : index
    %0 = vector.load %arg0[%c0, %c0_0] : memref<2x1024xbf16, #tpu.memory_space<vmem>>, vector<2x1024xbf16>
    %c0_1 = arith.constant 0 : index
    %c0_2 = arith.constant 0 : index
    %1 = vector.load %arg1[%c0_1, %c0_2] : memref<1024x128xbf16, #tpu.memory_space<vmem>>, vector<1024x128xbf16>
    %cst = arith.constant dense<0.000000e+00> : vector<2x128xf32>
    %2 = tpu.matmul %0, %1, %cst {dimension_numbers = #tpu.dot_dimension_numbers<[1], [0], [0], [1], [0, 0, 1, 1], [], []>} : vector<2x1024xbf16>, vector<1024x128xbf16>, vector<2x128xf32> -> vector<2x128xf32>
    %c0_3 = arith.constant 0 : index
    %c0_4 = arith.constant 0 : index
    %3 = vector.load %arg2[%c0_3, %c0_4] : memref<1x128xf32, #tpu.memory_space<vmem>>, vector<1x128xf32>
    %4 = vector.broadcast %3 : vector<1x128xf32> to vector<2x128xf32>
    %5 = arith.addf %2, %4 : vector<2x128xf32>
    %cst_5 = arith.constant 0.000000e+00 : f32
    %6 = vector.broadcast %cst_5 : f32 to vector<2x128xf32>
    %7 = arith.maximumf %5, %6 : vector<2x128xf32>
    %8 = arith.truncf %7 : vector<2x128xf32> to vector<2x128xbf16>
    %c0_6 = arith.constant 0 : index
    %c0_7 = arith.constant 0 : index
    %9 = vector.load %arg3[%c0_6, %c0_7] : memref<128x1024xbf16, #tpu.memory_space<vmem>>, vector<128x1024xbf16>
    %cst_8 = arith.constant dense<0.000000e+00> : vector<2x1024xf32>
    %10 = tpu.matmul %8, %9, %cst_8 {dimension_numbers = #tpu.dot_dimension_numbers<[1], [0], [0], [1], [0, 0, 1, 1], [], []>} : vector<2x128xbf16>, vector<128x1024xbf16>, vector<2x1024xf32> -> vector<2x1024xf32>
    %c0_9 = arith.constant 0 : index
    %c0_10 = arith.constant 0 : index
    %11 = vector.load %arg4[%c0_9, %c0_10] : memref<1x1024xf32, #tpu.memory_space<vmem>>, vector<1x1024xf32>
    %12 = vector.broadcast %11 : vector<1x1024xf32> to vector<2x1024xf32>
    %13 = arith.addf %10, %12 : vector<2x1024xf32>
    %cst_11 = arith.constant 0.000000e+00 : f32
    %14 = vector.broadcast %cst_11 : f32 to vector<2x1024xf32>
    %15 = arith.maximumf %13, %14 : vector<2x1024xf32>
    %16 = arith.truncf %15 : vector<2x1024xf32> to vector<2x1024xbf16>
    %c0_12 = arith.constant 0 : index
    %c0_13 = arith.constant 0 : index
    %17 = vector.load %arg5[%c0_12, %c0_13] : memref<1024x128xbf16, #tpu.memory_space<vmem>>, vector<1024x128xbf16>
    %cst_14 = arith.constant dense<0.000000e+00> : vector<2x128xf32>
    %18 = tpu.matmul %16, %17, %cst_14 {dimension_numbers = #tpu.dot_dimension_numbers<[1], [0], [0], [1], [0, 0, 1, 1], [], []>} : vector<2x1024xbf16>, vector<1024x128xbf16>, vector<2x128xf32> -> vector<2x128xf32>
    %c0_15 = arith.constant 0 : index
    %c0_16 = arith.constant 0 : index
    %19 = vector.load %arg6[%c0_15, %c0_16] : memref<1x128xf32, #tpu.memory_space<vmem>>, vector<1x128xf32>
    %20 = vector.broadcast %19 : vector<1x128xf32> to vector<2x128xf32>
    %21 = arith.addf %18, %20 : vector<2x128xf32>
    %22 = vector.extract_strided_slice %21 {offsets = [0, 0], sizes = [2, 3], strides = [1, 1]} : vector<2x128xf32> to vector<2x3xf32>
    %23 = vector.extract_strided_slice %21 {offsets = [0, 3], sizes = [2, 1], strides = [1, 1]} : vector<2x128xf32> to vector<2x1xf32>
    %24 = vector.broadcast %23 : vector<2x1xf32> to vector<2x3xf32>
    %25 = arith.addf %24, %22 : vector<2x3xf32>
    %26 = vector.shape_cast %22 : vector<2x3xf32> to vector<1x2x3xf32>
    %cst_17 = arith.constant dense<0.000000e+00> : vector<1xf32>
    %27 = vector.multi_reduction <add>, %26, %cst_17 [1, 2] : vector<1x2x3xf32> to vector<1xf32>
    %28 = vector.shape_cast %27 : vector<1xf32> to vector<1x1x1xf32>
    %29 = vector.extract %28[0, 0, 0] : f32 from vector<1x1x1xf32>
    %cst_18 = arith.constant 6.000000e+00 : f32
    %30 = arith.divf %29, %cst_18 : f32
    %31 = vector.broadcast %30 : f32 to vector<2x3xf32>
    %32 = arith.subf %25, %31 : vector<2x3xf32>
    %c0_19 = arith.constant 0 : index
    %c0_20 = arith.constant 0 : index
    %33 = vector.load %arg7[%c0_19, %c0_20] : memref<2x3xf32, #tpu.memory_space<vmem>>, vector<2x3xf32>
    tpu.vector_store %arg7[%c0_19, %c0_20], %32 {strides = array<i32>} : memref<2x3xf32, #tpu.memory_space<vmem>>, vector<2x3xf32>,
    return
  }
}

</mosaic_0001>

<llo_original>
// kernel: dddqn_forward.3
$region0: #{dddqn_forward.3}
  #allocation0 [shape = 'u32[]', space=smem, size = 0x4, offset = 0x4, fixed_abs, tag = 'smem constant byte address 0x4 - core index']
  #allocation1 [shape = 'u32[144,128]{1,0:T(1,128)}', space=vmem, size = 0x12000, scoped, tag = 'internal scratch']
  %s0 = inlined_call_operand.vmem [shape: bf16[344,256], index: 0, kind: input, shape index: {}]
  %s1 = inlined_call_operand.vmem [shape: bf16[256,32], index: 1, kind: input, shape index: {}]
  %s2 = inlined_call_operand.vmem [shape: f32[1,32], index: 2, kind: input, shape index: {}]
  %s3 = inlined_call_operand.vmem [shape: bf16[344,32], index: 3, kind: output, shape index: {}]
  %s4 = sld [smem:[#allocation0]]
  $region22: #{dddqn_forward.3} parent=0
    _
  %s6 = ssub.s32 1, %s4
  %s7 = scalar_select 0, %s6, %s4
  // Predicated region
  $region2: #{dddqn_forward.3} parent=0 // pred_check
    _
  $region3: #{dddqn_forward.3} parent=0 // pred_check_branch
    %9 = sbr.rel (0) target = $region5
  $region4: #{dddqn_forward.3} parent=0 // pred_region
    _
  $region5: #{dddqn_forward.3} parent=0 // pred_fallthru
    _
  // Predicated region
  $region6: #{dddqn_forward.3} parent=0 // pred_check
    _
  $region7: #{dddqn_forward.3} parent=0 // pred_check_branch
    %11 = sbr.rel (0) target = $region9
  $region8: #{dddqn_forward.3} parent=0 // pred_region
    _
  $region9: #{dddqn_forward.3} parent=0 // pred_fallthru
    _
  // Predicated region
  $region10: #{dddqn_forward.3} parent=0 // pred_check
    _
  $region11: #{dddqn_forward.3} parent=0 // pred_check_branch
    %13 = sbr.rel (0) target = $region13
  $region12: #{dddqn_forward.3} parent=0 // pred_region
    _
  $region13: #{dddqn_forward.3} parent=0 // pred_fallthru
    _
  %v15 = vld [vmem:[%s0] sm:$0xff]
  %v16 = vld [vmem:[%s0 + $0x8] sm:$0xff]
  %v17 = vld [vmem:[%s0 + $0x10] sm:$0xff]
  %v18 = vld [vmem:[%s0 + $0x18] sm:$0xff]
  %v19 = vld [vmem:[%s0 + $0x20] sm:$0xff]
  %v20 = vld [vmem:[%s0 + $0x28] sm:$0xff]
  %v21 = vld [vmem:[%s0 + $0x30] sm:$0xff]
  %v22 = vld [vmem:[%s0 + $0x38] sm:$0xff]
  %v23 = vld [vmem:[%s0 + $0x40] sm:$0xff]
  %v24 = vld [vmem:[%s0 + $0x48] sm:$0xff]
  %v25 = vld [vmem:[%s0 + $0x50] sm:$0xff]
  %v26 = vld [vmem:[%s0 + $0x58] sm:$0xff]
  %v27 = vld [vmem:[%s0 + $0x60] sm:$0xff]
  %v28 = vld [vmem:[%s0 + $0x68] sm:$0xff]
  %v29 = vld [vmem:[%s0 + $0x70] sm:$0xff]
  %v30 = vld [vmem:[%s0 + $0x78] sm:$0xff]
  %v31 = vld [vmem:[%s0 + $0x80] sm:$0xff]
  %v32 = vld [vmem:[%s0 + $0x88] sm:$0xff]
  %v33 = vld [vmem:[%s0 + $0x90] sm:$0xff]
  %v34 = vld [vmem:[%s0 + $0x98] sm:$0xff]
  %v35 = vld [vmem:[%s0 + $0xa0] sm:$0xff]
  %v36 = vld [vmem:[%s0 + $0xa8] sm:$0xff]
  %v37 = vld [vmem:[%s0 + $0xb0] sm:$0xff]
  %v38 = vld [vmem:[%s0 + $0xb8] sm:$0xff]
  %v39 = vld [vmem:[%s0 + $0xc0] sm:$0xff]
  %v40 = vld [vmem:[%s0 + $0xc8] sm:$0xff]
  %v41 = vld [vmem:[%s0 + $0xd0] sm:$0xff]
  %v42 = vld [vmem:[%s0 + $0xd8] sm:$0xff]
  %v43 = vld [vmem:[%s0 + $0xe0] sm:$0xff]
  %v44 = vld [vmem:[%s0 + $0xe8] sm:$0xff]
  %v45 = vld [vmem:[%s0 + $0xf0] sm:$0xff]
  %v46 = vld [vmem:[%s0 + $0xf8] sm:$0xff]
  %v47 = vld [vmem:[%s0 + $0x100] sm:$0xff]
  %v48 = vld [vmem:[%s0 + $0x108] sm:$0xff]
  %v49 = vld [vmem:[%s0 + $0x110] sm:$0xff]
  %v50 = vld [vmem:[%s0 + $0x118] sm:$0xff]
  %v51 = vld [vmem:[%s0 + $0x120] sm:$0xff]
  %v52 = vld [vmem:[%s0 + $0x128] sm:$0xff]
  %v53 = vld [vmem:[%s0 + $0x130] sm:$0xff]
  %v54 = vld [vmem:[%s0 + $0x138] sm:$0xff]
  %v55 = vld [vmem:[%s0 + $0x140] sm:$0xff]
  %v56 = vld [vmem:[%s0 + $0x148] sm:$0xff]
  %v57 = vld [vmem:[%s0 + $0x150] sm:$0xff]
  %v58 = vld [vmem:[%s1] sm:$0xf]
  %v59 = vld [vmem:[%s1 + $0x4] sm:$0xf]
  %v60 = vld [vmem:[%s1 + $0x8] sm:$0xf]
  %v61 = vld [vmem:[%s1 + $0xc] sm:$0xf]
  %v62 = vld [vmem:[%s1 + $0x10] sm:$0xf]
  %v63 = vld [vmem:[%s1 + $0x14] sm:$0xf]
  %v64 = vld [vmem:[%s1 + $0x18] sm:$0xf]
  %v65 = vld [vmem:[%s1 + $0x1c] sm:$0xf]
  %v66 = vld [vmem:[%s1 + $0x20] sm:$0xf]
  %v67 = vld [vmem:[%s1 + $0x24] sm:$0xf]
  %v68 = vld [vmem:[%s1 + $0x28] sm:$0xf]
  %v69 = vld [vmem:[%s1 + $0x2c] sm:$0xf]
  %v70 = vld [vmem:[%s1 + $0x30] sm:$0xf]
  %v71 = vld [vmem:[%s1 + $0x34] sm:$0xf]
  %v72 = vld [vmem:[%s1 + $0x38] sm:$0xf]
  %v73 = vld [vmem:[%s1 + $0x3c] sm:$0xf]
  %v74 = vld [vmem:[%s1 + $0x40] sm:$0xf]
  %v75 = vld [vmem:[%s1 + $0x44] sm:$0xf]
  %v76 = vld [vmem:[%s1 + $0x48] sm:$0xf]
  %v77 = vld [vmem:[%s1 + $0x4c] sm:$0xf]
  %v78 = vld [vmem:[%s1 + $0x50] sm:$0xf]
  %v79 = vld [vmem:[%s1 + $0x54] sm:$0xf]
  %v80 = vld [vmem:[%s1 + $0x58] sm:$0xf]
  %v81 = vld [vmem:[%s1 + $0x5c] sm:$0xf]
  %v82 = vld [vmem:[%s1 + $0x60] sm:$0xf]
  %v83 = vld [vmem:[%s1 + $0x64] sm:$0xf]
  %v84 = vld [vmem:[%s1 + $0x68] sm:$0xf]
  %v85 = vld [vmem:[%s1 + $0x6c] sm:$0xf]
  %v86 = vld [vmem:[%s1 + $0x70] sm:$0xf]
  %v87 = vld [vmem:[%s1 + $0x74] sm:$0xf]
  %v88 = vld [vmem:[%s1 + $0x78] sm:$0xf]
  %v89 = vld [vmem:[%s1 + $0x7c] sm:$0xf]
  %v90 = vld [vmem:[%s2] sm:$0x1]
  %v92 = vlaneseq
  %v93 = vshrl.u32 %v92, 7
  %v94 = vsub.s32 0, %v93
  %v95 = vrot.slane %v90, %v94
  %v140 = vunpack.c.l.b16 %v15
  %v141 = vunpack.c.h.b16 %v15
  %v142 = vunpack.c.l.b16 %v16
  %v143 = vunpack.c.h.b16 %v16
  %v144 = vunpack.c.l.b16 %v17
  %v145 = vunpack.c.h.b16 %v17
  %v146 = vunpack.c.l.b16 %v18
  %v147 = vunpack.c.h.b16 %v18
  %v148 = vunpack.c.l.b16 %v19
  %v149 = vunpack.c.h.b16 %v19
  %v150 = vunpack.c.l.b16 %v20
  %v151 = vunpack.c.h.b16 %v20
  %v152 = vunpack.c.l.b16 %v21
  %v153 = vunpack.c.h.b16 %v21
  %v154 = vunpack.c.l.b16 %v22
  %v155 = vunpack.c.h.b16 %v22
  %v156 = vunpack.c.l.b16 %v23
  %v157 = vunpack.c.h.b16 %v23
  %v158 = vunpack.c.l.b16 %v24
  %v159 = vunpack.c.h.b16 %v24
  %v160 = vunpack.c.l.b16 %v25
  %v161 = vunpack.c.h.b16 %v25
  %v162 = vunpack.c.l.b16 %v26
  %v163 = vunpack.c.h.b16 %v26
  %v164 = vunpack.c.l.b16 %v27
  %v165 = vunpack.c.h.b16 %v27
  %v166 = vunpack.c.l.b16 %v28
  %v167 = vunpack.c.h.b16 %v28
  %v168 = vunpack.c.l.b16 %v29
  %v169 = vunpack.c.h.b16 %v29
  %v170 = vunpack.c.l.b16 %v30
  %v171 = vunpack.c.h.b16 %v30
  %v172 = vunpack.c.l.b16 %v31
  %v173 = vunpack.c.h.b16 %v31
  %v174 = vunpack.c.l.b16 %v32
  %v175 = vunpack.c.h.b16 %v32
  %v176 = vunpack.c.l.b16 %v33
  %v177 = vunpack.c.h.b16 %v33
  %v178 = vunpack.c.l.b16 %v34
  %v179 = vunpack.c.h.b16 %v34
  %v180 = vunpack.c.l.b16 %v35
  %v181 = vunpack.c.h.b16 %v35
  %v182 = vunpack.c.l.b16 %v36
  %v183 = vunpack.c.h.b16 %v36
  %v184 = vunpack.c.l.b16 %v37
  %v185 = vunpack.c.h.b16 %v37
  %v186 = vunpack.c.l.b16 %v38
  %v187 = vunpack.c.h.b16 %v38
  %v188 = vunpack.c.l.b16 %v39
  %v189 = vunpack.c.h.b16 %v39
  %v190 = vunpack.c.l.b16 %v40
  %v191 = vunpack.c.h.b16 %v40
  %v192 = vunpack.c.l.b16 %v41
  %v193 = vunpack.c.h.b16 %v41
  %v194 = vunpack.c.l.b16 %v42
  %v195 = vunpack.c.h.b16 %v42
  %v196 = vunpack.c.l.b16 %v43
  %v197 = vunpack.c.h.b16 %v43
  %v198 = vunpack.c.l.b16 %v44
  %v199 = vunpack.c.h.b16 %v44
  %v200 = vunpack.c.l.b16 %v45
  %v201 = vunpack.c.h.b16 %v45
  %v202 = vunpack.c.l.b16 %v46
  %v203 = vunpack.c.h.b16 %v46
  %v204 = vunpack.c.l.b16 %v47
  %v205 = vunpack.c.h.b16 %v47
  %v206 = vunpack.c.l.b16 %v48
  %v207 = vunpack.c.h.b16 %v48
  %v208 = vunpack.c.l.b16 %v49
  %v209 = vunpack.c.h.b16 %v49
  %v210 = vunpack.c.l.b16 %v50
  %v211 = vunpack.c.h.b16 %v50
  %v212 = vunpack.c.l.b16 %v51
  %v213 = vunpack.c.h.b16 %v51
  %v214 = vunpack.c.l.b16 %v52
  %v215 = vunpack.c.h.b16 %v52
  %v216 = vunpack.c.l.b16 %v53
  %v217 = vunpack.c.h.b16 %v53
  %v218 = vunpack.c.l.b16 %v54
  %v219 = vunpack.c.h.b16 %v54
  %v220 = vunpack.c.l.b16 %v55
  %v221 = vunpack.c.h.b16 %v55
  %v222 = vunpack.c.l.b16 %v56
  %v223 = vunpack.c.h.b16 %v56
  %v224 = vunpack.c.l.b16 %v57
  %v225 = vunpack.c.h.b16 %v57
  %v226 = vpack.c.b16 %v142, %v140
  %v227 = vpack.c.b16 %v143, %v141
  %v228 = vpack.c.b16 %v146, %v144
  %v229 = vpack.c.b16 %v147, %v145
  %v230 = vpack.c.b16 %v150, %v148
  %v231 = vpack.c.b16 %v151, %v149
  %v232 = vpack.c.b16 %v154, %v152
  %v233 = vpack.c.b16 %v155, %v153
  %v234 = vpack.c.b16 %v158, %v156
  %v235 = vpack.c.b16 %v159, %v157
  %v236 = vpack.c.b16 %v162, %v160
  %v237 = vpack.c.b16 %v163, %v161
  %v238 = vpack.c.b16 %v166, %v164
  %v239 = vpack.c.b16 %v167, %v165
  %v240 = vpack.c.b16 %v170, %v168
  %v241 = vpack.c.b16 %v171, %v169
  %v242 = vpack.c.b16 %v174, %v172
  %v243 = vpack.c.b16 %v175, %v173
  %v244 = vpack.c.b16 %v178, %v176
  %v245 = vpack.c.b16 %v179, %v177
  %v246 = vpack.c.b16 %v182, %v180
  %v247 = vpack.c.b16 %v183, %v181
  %v248 = vpack.c.b16 %v186, %v184
  %v249 = vpack.c.b16 %v187, %v185
  %v250 = vpack.c.b16 %v190, %v188
  %v251 = vpack.c.b16 %v191, %v189
  %v252 = vpack.c.b16 %v194, %v192
  %v253 = vpack.c.b16 %v195, %v193
  %v254 = vpack.c.b16 %v198, %v196
  %v255 = vpack.c.b16 %v199, %v197
  %v256 = vpack.c.b16 %v202, %v200
  %v257 = vpack.c.b16 %v203, %v201
  %v258 = vpack.c.b16 %v206, %v204
  %v259 = vpack.c.b16 %v207, %v205
  %v260 = vpack.c.b16 %v210, %v208
  %v261 = vpack.c.b16 %v211, %v209
  %v262 = vpack.c.b16 %v214, %v212
  %v263 = vpack.c.b16 %v215, %v213
  %v264 = vpack.c.b16 %v218, %v216
  %v265 = vpack.c.b16 %v219, %v217
  %v266 = vpack.c.b16 %v222, %v220
  %v267 = vpack.c.b16 %v223, %v221
  %v268 = vpack.c.b16 %v224, %v224
  %v269 = vpack.c.b16 %v225, %v225
  %v346 = vunpack.c.l.b16 %v58
  %v347 = vunpack.c.l.b16 %v59
  %v348 = vunpack.c.l.b16 %v60
  %v349 = vunpack.c.l.b16 %v61
  %v350 = vunpack.c.l.b16 %v62
  %v351 = vunpack.c.l.b16 %v63
  %v352 = vunpack.c.l.b16 %v64
  %v353 = vunpack.c.l.b16 %v65
  %v354 = vunpack.c.l.b16 %v66
  %v355 = vunpack.c.l.b16 %v67
  %v356 = vunpack.c.l.b16 %v68
  %v357 = vunpack.c.l.b16 %v69
  %v358 = vunpack.c.l.b16 %v70
  %v359 = vunpack.c.l.b16 %v71
  %v360 = vunpack.c.l.b16 %v72
  %v361 = vunpack.c.l.b16 %v73
  %v362 = vunpack.c.l.b16 %v74
  %v363 = vunpack.c.l.b16 %v75
  %v364 = vunpack.c.l.b16 %v76
  %v365 = vunpack.c.l.b16 %v77
  %v366 = vunpack.c.l.b16 %v78
  %v367 = vunpack.c.l.b16 %v79
  %v368 = vunpack.c.l.b16 %v80
  %v369 = vunpack.c.l.b16 %v81
  %v370 = vunpack.c.l.b16 %v82
  %v371 = vunpack.c.l.b16 %v83
  %v372 = vunpack.c.l.b16 %v84
  %v373 = vunpack.c.l.b16 %v85
  %v374 = vunpack.c.l.b16 %v86
  %v375 = vunpack.c.l.b16 %v87
  %v376 = vunpack.c.l.b16 %v88
  %v377 = vunpack.c.l.b16 %v89
  %v378 = vpack.c.b16 %v347, %v346
  %v379 = vpack.c.b16 %v349, %v348
  %v380 = vpack.c.b16 %v351, %v350
  %v381 = vpack.c.b16 %v353, %v352
  %v382 = vpack.c.b16 %v355, %v354
  %v383 = vpack.c.b16 %v357, %v356
  %v384 = vpack.c.b16 %v359, %v358
  %v385 = vpack.c.b16 %v361, %v360
  %v386 = vpack.c.b16 %v363, %v362
  %v387 = vpack.c.b16 %v365, %v364
  %v388 = vpack.c.b16 %v367, %v366
  %v389 = vpack.c.b16 %v369, %v368
  %v390 = vpack.c.b16 %v371, %v370
  %v391 = vpack.c.b16 %v373, %v372
  %v392 = vpack.c.b16 %v375, %v374
  %v393 = vpack.c.b16 %v377, %v376
  %410 = vmatprep.subr.bf16.mxu0 0
  %411 = vmatpush1.bf16.msra.mxu0 %v378
  %412 = vmatprep.subr.bf16.mxu0 0
  %413 = vmatpush1.bf16.msra.mxu0 %v379
  %414 = vmatprep.subr.bf16.mxu0 0
  %415 = vmatpush1.bf16.msra.mxu0 %v380
  %416 = vmatprep.subr.bf16.mxu0 0
  %417 = vmatpush1.bf16.msra.mxu0 %v381
  %418 = vmatprep.subr.bf16.mxu0 0
  %419 = vmatpush1.bf16.msra.mxu0 %v382
  %420 = vmatprep.subr.bf16.mxu0 0
  %421 = vmatpush1.bf16.msra.mxu0 %v383
  %422 = vmatprep.subr.bf16.mxu0 0
  %423 = vmatpush1.bf16.msra.mxu0 %v384
  %424 = vmatprep.subr.bf16.mxu0 0
  %425 = vmatpush1.bf16.msra.mxu0 %v385
  %426 = vmatprep.subr.bf16.mxu0 0
  %427 = vmatpush1.bf16.msra.mxu0 %v386
  %428 = vmatprep.subr.bf16.mxu0 0
  %429 = vmatpush1.bf16.msra.mxu0 %v387
  %430 = vmatprep.subr.bf16.mxu0 0
  %431 = vmatpush1.bf16.msra.mxu0 %v388
  %432 = vmatprep.subr.bf16.mxu0 0
  %433 = vmatpush1.bf16.msra.mxu0 %v389
  %434 = vmatprep.subr.bf16.mxu0 0
  %435 = vmatpush1.bf16.msra.mxu0 %v390
  %436 = vmatprep.subr.bf16.mxu0 0
  %437 = vmatpush1.bf16.msra.mxu0 %v391
  %438 = vmatprep.subr.bf16.mxu0 0
  %439 = vmatpush1.bf16.msra.mxu0 %v392
  %440 = vmatprep.subr.bf16.mxu0 0
  %441 = vmatpush1.bf16.msra.mxu0 %v393
  %442 = vmatprep.mubr.bf16.mxu0 %v227
  %443 = vmatmul.mubr.bf16.gmra.mrb[0].mxu0 %v226
  %v444 = vpop.f32.mrb[0].mxu0
  %v445 = vadd.f32 %v95, %v444
  %v446 = vpop.f32.mrb[0].mxu0
  %v447 = vpop.f32.mrb[0].mxu0
  %v448 = vadd.f32 %v95, %v447
  %v449 = vpop.f32.mrb[0].mxu0
  %450 = vmatprep.mubr.bf16.mxu0 %v229
  %451 = vmatmul.mubr.bf16.gmra.mrb[0].mxu0 %v228
  %v452 = vpop.f32.mrb[0].mxu0
  %v453 = vadd.f32 %v95, %v452
  %v454 = vpop.f32.mrb[0].mxu0
  %v455 = vpop.f32.mrb[0].mxu0
  %v456 = vadd.f32 %v95, %v455
  %v457 = vpop.f32.mrb[0].mxu0
  %458 = vmatprep.mubr.bf16.mxu0 %v231
  %459 = vmatmul.mubr.bf16.gmra.mrb[0].mxu0 %v230
  %v460 = vpop.f32.mrb[0].mxu0
  %v461 = vadd.f32 %v95, %v460
  %v462 = vpop.f32.mrb[0].mxu0
  %v463 = vpop.f32.mrb[0].mxu0
  %v464 = vadd.f32 %v95, %v463
  %v465 = vpop.f32.mrb[0].mxu0
  %466 = vmatprep.mubr.bf16.mxu0 %v233
  %467 = vmatmul.mubr.bf16.gmra.mrb[0].mxu0 %v232
  %v468 = vpop.f32.mrb[0].mxu0
  %v469 = vadd.f32 %v95, %v468
  %v470 = vpop.f32.mrb[0].mxu0
  %v471 = vpop.f32.mrb[0].mxu0
  %v472 = vadd.f32 %v95, %v471
  %v473 = vpop.f32.mrb[0].mxu0
  %474 = vmatprep.mubr.bf16.mxu0 %v235
  %475 = vmatmul.mubr.bf16.gmra.mrb[0].mxu0 %v234
  %v476 = vpop.f32.mrb[0].mxu0
  %v477 = vadd.f32 %v95, %v476
  %v478 = vpop.f32.mrb[0].mxu0
  %v479 = vpop.f32.mrb[0].mxu0
  %v480 = vadd.f32 %v95, %v479
  %v481 = vpop.f32.mrb[0].mxu0
  %482 = vmatprep.mubr.bf16.mxu0 %v237
  %483 = vmatmul.mubr.bf16.gmra.mrb[0].mxu0 %v236
  %v484 = vpop.f32.mrb[0].mxu0
  %v485 = vadd.f32 %v95, %v484
  %v486 = vpop.f32.mrb[0].mxu0
  %v487 = vpop.f32.mrb[0].mxu0
  %v488 = vadd.f32 %v95, %v487
  %v489 = vpop.f32.mrb[0].mxu0
  %490 = vmatprep.mubr.bf16.mxu0 %v239
  %491 = vmatmul.mubr.bf16.gmra.mrb[0].mxu0 %v238
  %v492 = vpop.f32.mrb[0].mxu0
  %v493 = vadd.f32 %v95, %v492
  %v494 = vpop.f32.mrb[0].mxu0
  %v495 = vpop.f32.mrb[0].mxu0
  %v496 = vadd.f32 %v95, %v495
  %v497 = vpop.f32.mrb[0].mxu0
  %498 = vmatprep.mubr.bf16.mxu0 %v241
  %499 = vmatmul.mubr.bf16.gmra.mrb[0].mxu0 %v240
  %v500 = vpop.f32.mrb[0].mxu0
  %v501 = vadd.f32 %v95, %v500
  %v502 = vpop.f32.mrb[0].mxu0
  %v503 = vpop.f32.mrb[0].mxu0
  %v504 = vadd.f32 %v95, %v503
  %v505 = vpop.f32.mrb[0].mxu0
  %506 = vmatprep.mubr.bf16.mxu0 %v243
  %507 = vmatmul.mubr.bf16.gmra.mrb[0].mxu0 %v242
  %v508 = vpop.f32.mrb[0].mxu0
  %v509 = vadd.f32 %v95, %v508
  %v510 = vpop.f32.mrb[0].mxu0
  %v511 = vpop.f32.mrb[0].mxu0
  %v512 = vadd.f32 %v95, %v511
  %v513 = vpop.f32.mrb[0].mxu0
  %514 = vmatprep.mubr.bf16.mxu0 %v245
  %515 = vmatmul.mubr.bf16.gmra.mrb[0].mxu0 %v244
  %v516 = vpop.f32.mrb[0].mxu0
  %v517 = vadd.f32 %v95, %v516
  %v518 = vpop.f32.mrb[0].mxu0
  %v519 = vpop.f32.mrb[0].mxu0
  %v520 = vadd.f32 %v95, %v519
  %v521 = vpop.f32.mrb[0].mxu0
  %522 = vmatprep.mubr.bf16.mxu0 %v247
  %523 = vmatmul.mubr.bf16.gmra.mrb[0].mxu0 %v246
  %v524 = vpop.f32.mrb[0].mxu0
  %v525 = vadd.f32 %v95, %v524
  %v526 = vpop.f32.mrb[0].mxu0
  %v527 = vpop.f32.mrb[0].mxu0
  %v528 = vadd.f32 %v95, %v527
  %v529 = vpop.f32.mrb[0].mxu0
  %530 = vmatprep.mubr.bf16.mxu0 %v249
  %531 = vmatmul.mubr.bf16.gmra.mrb[0].mxu0 %v248
  %v532 = vpop.f32.mrb[0].mxu0
  %v533 = vadd.f32 %v95, %v532
  %v534 = vpop.f32.mrb[0].mxu0
  %v535 = vpop.f32.mrb[0].mxu0
  %v536 = vadd.f32 %v95, %v535
  %v537 = vpop.f32.mrb[0].mxu0
  %538 = vmatprep.mubr.bf16.mxu0 %v251
  %539 = vmatmul.mubr.bf16.gmra.mrb[0].mxu0 %v250
  %v540 = vpop.f32.mrb[0].mxu0
  %v541 = vadd.f32 %v95, %v540
  %v542 = vpop.f32.mrb[0].mxu0
  %v543 = vpop.f32.mrb[0].mxu0
  %v544 = vadd.f32 %v95, %v543
  %v545 = vpop.f32.mrb[0].mxu0
  %546 = vmatprep.mubr.bf16.mxu0 %v253
  %547 = vmatmul.mubr.bf16.gmra.mrb[0].mxu0 %v252
  %v548 = vpop.f32.mrb[0].mxu0
  %v549 = vadd.f32 %v95, %v548
  %v550 = vpop.f32.mrb[0].mxu0
  %v551 = vpop.f32.mrb[0].mxu0
  %v552 = vadd.f32 %v95, %v551
  %v553 = vpop.f32.mrb[0].mxu0
  %554 = vmatprep.mubr.bf16.mxu0 %v255
  %555 = vmatmul.mubr.bf16.gmra.mrb[0].mxu0 %v254
  %v556 = vpop.f32.mrb[0].mxu0
  %v557 = vadd.f32 %v95, %v556
  %v558 = vpop.f32.mrb[0].mxu0
  %v559 = vpop.f32.mrb[0].mxu0
  %v560 = vadd.f32 %v95, %v559
  %v561 = vpop.f32.mrb[0].mxu0
  %562 = vmatprep.mubr.bf16.mxu0 %v257
  %563 = vmatmul.mubr.bf16.gmra.mrb[0].mxu0 %v256
  %v564 = vpop.f32.mrb[0].mxu0
  %v565 = vadd.f32 %v95, %v564
  %v566 = vpop.f32.mrb[0].mxu0
  %v567 = vpop.f32.mrb[0].mxu0
  %v568 = vadd.f32 %v95, %v567
  %v569 = vpop.f32.mrb[0].mxu0
  %570 = vmatprep.mubr.bf16.mxu0 %v259
  %571 = vmatmul.mubr.bf16.gmra.mrb[0].mxu0 %v258
  %v572 = vpop.f32.mrb[0].mxu0
  %v573 = vadd.f32 %v95, %v572
  %v574 = vpop.f32.mrb[0].mxu0
  %v575 = vpop.f32.mrb[0].mxu0
  %v576 = vadd.f32 %v95, %v575
  %v577 = vpop.f32.mrb[0].mxu0
  %578 = vmatprep.mubr.bf16.mxu0 %v261
  %579 = vmatmul.mubr.bf16.gmra.mrb[0].mxu0 %v260
  %v580 = vpop.f32.mrb[0].mxu0
  %v581 = vadd.f32 %v95, %v580
  %v582 = vpop.f32.mrb[0].mxu0
  %v583 = vpop.f32.mrb[0].mxu0
  %v584 = vadd.f32 %v95, %v583
  %v585 = vpop.f32.mrb[0].mxu0
  %586 = vmatprep.mubr.bf16.mxu0 %v263
  %587 = vmatmul.mubr.bf16.gmra.mrb[0].mxu0 %v262
  %v588 = vpop.f32.mrb[0].mxu0
  %v589 = vadd.f32 %v95, %v588
  %v590 = vpop.f32.mrb[0].mxu0
  %v591 = vpop.f32.mrb[0].mxu0
  %v592 = vadd.f32 %v95, %v591
  %v593 = vpop.f32.mrb[0].mxu0
  %594 = vmatprep.mubr.bf16.mxu0 %v265
  %595 = vmatmul.mubr.bf16.gmra.mrb[0].mxu0 %v264
  %v596 = vpop.f32.mrb[0].mxu0
  %v597 = vadd.f32 %v95, %v596
  %v598 = vpop.f32.mrb[0].mxu0
  %v599 = vpop.f32.mrb[0].mxu0
  %v600 = vadd.f32 %v95, %v599
  %v601 = vpop.f32.mrb[0].mxu0
  %602 = vmatprep.mubr.bf16.mxu0 %v267
  %603 = vmatmul.mubr.bf16.gmra.mrb[0].mxu0 %v266
  %v604 = vpop.f32.mrb[0].mxu0
  %v605 = vadd.f32 %v95, %v604
  %v606 = vpop.f32.mrb[0].mxu0
  %v607 = vpop.f32.mrb[0].mxu0
  %v608 = vadd.f32 %v95, %v607
  %v609 = vpop.f32.mrb[0].mxu0
  %610 = vmatprep.mubr.bf16.mxu0 %v269
  %611 = vmatmul.mubr.bf16.gmra.mrb[0].mxu0 %v268
  %v612 = vpop.f32.mrb[0].mxu0
  %v613 = vadd.f32 %v95, %v612
  %v614 = vpop.f32.mrb[0].mxu0
  %v615 = vpop.f32.mrb[0].mxu0
  %v616 = vpop.f32.mrb[0].mxu0
  %617 = vdwg.mxu0
  %v618 = vmax.f32 %v445, 0.0
  %v619 = vmax.f32 %v448, 0.0
  %v620 = vmax.f32 %v453, 0.0
  %v621 = vmax.f32 %v456, 0.0
  %v622 = vmax.f32 %v461, 0.0
  %v623 = vmax.f32 %v464, 0.0
  %v624 = vmax.f32 %v469, 0.0
  %v625 = vmax.f32 %v472, 0.0
  %v626 = vmax.f32 %v477, 0.0
  %v627 = vmax.f32 %v480, 0.0
  %v628 = vmax.f32 %v485, 0.0
  %v629 = vmax.f32 %v488, 0.0
  %v630 = vmax.f32 %v493, 0.0
  %v631 = vmax.f32 %v496, 0.0
  %v632 = vmax.f32 %v501, 0.0
  %v633 = vmax.f32 %v504, 0.0
  %v634 = vmax.f32 %v509, 0.0
  %v635 = vmax.f32 %v512, 0.0
  %v636 = vmax.f32 %v517, 0.0
  %v637 = vmax.f32 %v520, 0.0
  %v638 = vmax.f32 %v525, 0.0
  %v639 = vmax.f32 %v528, 0.0
  %v640 = vmax.f32 %v533, 0.0
  %v641 = vmax.f32 %v536, 0.0
  %v642 = vmax.f32 %v541, 0.0
  %v643 = vmax.f32 %v544, 0.0
  %v644 = vmax.f32 %v549, 0.0
  %v645 = vmax.f32 %v552, 0.0
  %v646 = vmax.f32 %v557, 0.0
  %v647 = vmax.f32 %v560, 0.0
  %v648 = vmax.f32 %v565, 0.0
  %v649 = vmax.f32 %v568, 0.0
  %v650 = vmax.f32 %v573, 0.0
  %v651 = vmax.f32 %v576, 0.0
  %v652 = vmax.f32 %v581, 0.0
  %v653 = vmax.f32 %v584, 0.0
  %v654 = vmax.f32 %v589, 0.0
  %v655 = vmax.f32 %v592, 0.0
  %v656 = vmax.f32 %v597, 0.0
  %v657 = vmax.f32 %v600, 0.0
  %v658 = vmax.f32 %v605, 0.0
  %v659 = vmax.f32 %v608, 0.0
  %v660 = vmax.f32 %v613, 0.0
  %v661 = vpack.c.bf16 %v619, %v618
  %v662 = vpack.c.bf16 %v621, %v620
  %v663 = vpack.c.bf16 %v623, %v622
  %v664 = vpack.c.bf16 %v625, %v624
  %v665 = vpack.c.bf16 %v627, %v626
  %v666 = vpack.c.bf16 %v629, %v628
  %v667 = vpack.c.bf16 %v631, %v630
  %v668 = vpack.c.bf16 %v633, %v632
  %v669 = vpack.c.bf16 %v635, %v634
  %v670 = vpack.c.bf16 %v637, %v636
  %v671 = vpack.c.bf16 %v639, %v638
  %v672 = vpack.c.bf16 %v641, %v640
  %v673 = vpack.c.bf16 %v643, %v642
  %v674 = vpack.c.bf16 %v645, %v644
  %v675 = vpack.c.bf16 %v647, %v646
  %v676 = vpack.c.bf16 %v649, %v648
  %v677 = vpack.c.bf16 %v651, %v650
  %v678 = vpack.c.bf16 %v653, %v652
  %v679 = vpack.c.bf16 %v655, %v654
  %v680 = vpack.c.bf16 %v657, %v656
  %v681 = vpack.c.bf16 %v659, %v658
  %v682 = vpack.c.bf16 %v660, %v660
  %v705 = vunpack.c.l.b16 %v661
  %v706 = vunpack.c.h.b16 %v661
  %v707 = vunpack.c.l.b16 %v662
  %v708 = vunpack.c.h.b16 %v662
  %v709 = vunpack.c.l.b16 %v663
  %v710 = vunpack.c.h.b16 %v663
  %v711 = vunpack.c.l.b16 %v664
  %v712 = vunpack.c.h.b16 %v664
  %v713 = vunpack.c.l.b16 %v665
  %v714 = vunpack.c.h.b16 %v665
  %v715 = vunpack.c.l.b16 %v666
  %v716 = vunpack.c.h.b16 %v666
  %v717 = vunpack.c.l.b16 %v667
  %v718 = vunpack.c.h.b16 %v667
  %v719 = vunpack.c.l.b16 %v668
  %v720 = vunpack.c.h.b16 %v668
  %v721 = vunpack.c.l.b16 %v669
  %v722 = vunpack.c.h.b16 %v669
  %v723 = vunpack.c.l.b16 %v670
  %v724 = vunpack.c.h.b16 %v670
  %v725 = vunpack.c.l.b16 %v671
  %v726 = vunpack.c.h.b16 %v671
  %v727 = vunpack.c.l.b16 %v672
  %v728 = vunpack.c.h.b16 %v672
  %v729 = vunpack.c.l.b16 %v673
  %v730 = vunpack.c.h.b16 %v673
  %v731 = vunpack.c.l.b16 %v674
  %v732 = vunpack.c.h.b16 %v674
  %v733 = vunpack.c.l.b16 %v675
  %v734 = vunpack.c.h.b16 %v675
  %v735 = vunpack.c.l.b16 %v676
  %v736 = vunpack.c.h.b16 %v676
  %v737 = vunpack.c.l.b16 %v677
  %v738 = vunpack.c.h.b16 %v677
  %v739 = vunpack.c.l.b16 %v678
  %v740 = vunpack.c.h.b16 %v678
  %v741 = vunpack.c.l.b16 %v679
  %v742 = vunpack.c.h.b16 %v679
  %v743 = vunpack.c.l.b16 %v680
  %v744 = vunpack.c.h.b16 %v680
  %v745 = vunpack.c.l.b16 %v681
  %v746 = vunpack.c.h.b16 %v681
  %v747 = vunpack.c.l.b16 %v682
  %v748 = vpack.c.b16 %v705, %v705
  %v749 = vpack.c.b16 %v706, %v706
  %v750 = vpack.c.b16 %v707, %v707
  %v751 = vpack.c.b16 %v708, %v708
  %v752 = vpack.c.b16 %v709, %v709
  %v753 = vpack.c.b16 %v710, %v710
  %v754 = vpack.c.b16 %v711, %v711
  %v755 = vpack.c.b16 %v712, %v712
  %v756 = vpack.c.b16 %v713, %v713
  %v757 = vpack.c.b16 %v714, %v714
  %v758 = vpack.c.b16 %v715, %v715
  %v759 = vpack.c.b16 %v716, %v716
  %v760 = vpack.c.b16 %v717, %v717
  %v761 = vpack.c.b16 %v718, %v718
  %v762 = vpack.c.b16 %v719, %v719
  %v763 = vpack.c.b16 %v720, %v720
  %v764 = vpack.c.b16 %v721, %v721
  %v765 = vpack.c.b16 %v722, %v722
  %v766 = vpack.c.b16 %v723, %v723
  %v767 = vpack.c.b16 %v724, %v724
  %v768 = vpack.c.b16 %v725, %v725
  %v769 = vpack.c.b16 %v726, %v726
  %v770 = vpack.c.b16 %v727, %v727
  %v771 = vpack.c.b16 %v728, %v728
  %v772 = vpack.c.b16 %v729, %v729
  %v773 = vpack.c.b16 %v730, %v730
  %v774 = vpack.c.b16 %v731, %v731
  %v775 = vpack.c.b16 %v732, %v732
  %v776 = vpack.c.b16 %v733, %v733
  %v777 = vpack.c.b16 %v734, %v734
  %v778 = vpack.c.b16 %v735, %v735
  %v779 = vpack.c.b16 %v736, %v736
  %v780 = vpack.c.b16 %v737, %v737
  %v781 = vpack.c.b16 %v738, %v738
  %v782 = vpack.c.b16 %v739, %v739
  %v783 = vpack.c.b16 %v740, %v740
  %v784 = vpack.c.b16 %v741, %v741
  %v785 = vpack.c.b16 %v742, %v742
  %v786 = vpack.c.b16 %v743, %v743
  %v787 = vpack.c.b16 %v744, %v744
  %v788 = vpack.c.b16 %v745, %v745
  %v789 = vpack.c.b16 %v746, %v746
  %v790 = vpack.c.b16 %v747, %v747
  %vm834 = vcmask 257024
  %835 = vst.msk [vmem:[%s3] sm:$0xf] %vm834, %v748
  %836 = vst.msk [vmem:[%s3 + $0x4] sm:$0xf] %vm834, %v749
  %837 = vst.msk [vmem:[%s3 + $0x8] sm:$0xf] %vm834, %v750
  %838 = vst.msk [vmem:[%s3 + $0xc] sm:$0xf] %vm834, %v751
  %839 = vst.msk [vmem:[%s3 + $0x10] sm:$0xf] %vm834, %v752
  %840 = vst.msk [vmem:[%s3 + $0x14] sm:$0xf] %vm834, %v753
  %841 = vst.msk [vmem:[%s3 + $0x18] sm:$0xf] %vm834, %v754
  %842 = vst.msk [vmem:[%s3 + $0x1c] sm:$0xf] %vm834, %v755
  %843 = vst.msk [vmem:[%s3 + $0x20] sm:$0xf] %vm834, %v756
  %844 = vst.msk [vmem:[%s3 + $0x24] sm:$0xf] %vm834, %v757
  %845 = vst.msk [vmem:[%s3 + $0x28] sm:$0xf] %vm834, %v758
  %846 = vst.msk [vmem:[%s3 + $0x2c] sm:$0xf] %vm834, %v759
  %847 = vst.msk [vmem:[%s3 + $0x30] sm:$0xf] %vm834, %v760
  %848 = vst.msk [vmem:[%s3 + $0x34] sm:$0xf] %vm834, %v761
  %849 = vst.msk [vmem:[%s3 + $0x38] sm:$0xf] %vm834, %v762
  %850 = vst.msk [vmem:[%s3 + $0x3c] sm:$0xf] %vm834, %v763
  %851 = vst.msk [vmem:[%s3 + $0x40] sm:$0xf] %vm834, %v764
  %852 = vst.msk [vmem:[%s3 + $0x44] sm:$0xf] %vm834, %v765
  %853 = vst.msk [vmem:[%s3 + $0x48] sm:$0xf] %vm834, %v766
  %854 = vst.msk [vmem:[%s3 + $0x4c] sm:$0xf] %vm834, %v767
  %855 = vst.msk [vmem:[%s3 + $0x50] sm:$0xf] %vm834, %v768
  %856 = vst.msk [vmem:[%s3 + $0x54] sm:$0xf] %vm834, %v769
  %857 = vst.msk [vmem:[%s3 + $0x58] sm:$0xf] %vm834, %v770
  %858 = vst.msk [vmem:[%s3 + $0x5c] sm:$0xf] %vm834, %v771
  %859 = vst.msk [vmem:[%s3 + $0x60] sm:$0xf] %vm834, %v772
  %860 = vst.msk [vmem:[%s3 + $0x64] sm:$0xf] %vm834, %v773
  %861 = vst.msk [vmem:[%s3 + $0x68] sm:$0xf] %vm834, %v774
  %862 = vst.msk [vmem:[%s3 + $0x6c] sm:$0xf] %vm834, %v775
  %863 = vst.msk [vmem:[%s3 + $0x70] sm:$0xf] %vm834, %v776
  %864 = vst.msk [vmem:[%s3 + $0x74] sm:$0xf] %vm834, %v777
  %865 = vst.msk [vmem:[%s3 + $0x78] sm:$0xf] %vm834, %v778
  %866 = vst.msk [vmem:[%s3 + $0x7c] sm:$0xf] %vm834, %v779
  %867 = vst.msk [vmem:[%s3 + $0x80] sm:$0xf] %vm834, %v780
  %868 = vst.msk [vmem:[%s3 + $0x84] sm:$0xf] %vm834, %v781
  %869 = vst.msk [vmem:[%s3 + $0x88] sm:$0xf] %vm834, %v782
  %870 = vst.msk [vmem:[%s3 + $0x8c] sm:$0xf] %vm834, %v783
  %871 = vst.msk [vmem:[%s3 + $0x90] sm:$0xf] %vm834, %v784
  %872 = vst.msk [vmem:[%s3 + $0x94] sm:$0xf] %vm834, %v785
  %873 = vst.msk [vmem:[%s3 + $0x98] sm:$0xf] %vm834, %v786
  %874 = vst.msk [vmem:[%s3 + $0x9c] sm:$0xf] %vm834, %v787
  %875 = vst.msk [vmem:[%s3 + $0xa0] sm:$0xf] %vm834, %v788
  %876 = vst.msk [vmem:[%s3 + $0xa4] sm:$0xf] %vm834, %v789
  %877 = vst.msk [vmem:[%s3 + $0xa8] sm:$0xf] %vm834, %v790
  // Predicated region
  $region14: #{dddqn_forward.3} parent=0 // pred_check
    _
  $region15: #{dddqn_forward.3} parent=0 // pred_check_branch
    %879 = sbr.rel (0) target = $region17
  $region16: #{dddqn_forward.3} parent=0 // pred_region
    _
  $region17: #{dddqn_forward.3} parent=0 // pred_fallthru
    _
  // Predicated region
  $region18: #{dddqn_forward.3} parent=0 // pred_check
    _
  $region19: #{dddqn_forward.3} parent=0 // pred_check_branch
    %881 = sbr.rel (0) target = $region21
  $region20: #{dddqn_forward.3} parent=0 // pred_region
    _
  $region21: #{dddqn_forward.3} parent=0 // pred_fallthru
    _

// kernel: dddqn_forward.4
$region0: #{dddqn_forward.4}
  #allocation0 [shape = 'u32[]', space=smem, size = 0x4, offset = 0x4, fixed_abs, tag = 'smem constant byte address 0x4 - core index']
  #allocation1 [shape = 'u32[144,128]{1,0:T(1,128)}', space=vmem, size = 0x12000, scoped, tag = 'internal scratch']
  %s0 = inlined_call_operand.vmem [shape: bf16[56,512], index: 0, kind: input, shape index: {}]
  %s1 = inlined_call_operand.vmem [shape: bf16[512,64], index: 1, kind: input, shape index: {}]
  %s2 = inlined_call_operand.vmem [shape: f32[1,64], index: 2, kind: input, shape index: {}]
  %s3 = inlined_call_operand.vmem [shape: bf16[56,64], index: 3, kind: output, shape index: {}]
  %s4 = sld [smem:[#allocation0]]
  $region22: #{dddqn_forward.4} parent=0
    _
  %s6 = ssub.s32 1, %s4
  %s7 = scalar_select 0, %s6, %s4
  // Predicated region
  $region2: #{dddqn_forward.4} parent=0 // pred_check
    _
  $region3: #{dddqn_forward.4} parent=0 // pred_check_branch
    %9 = sbr.rel (0) target = $region5
  $region4: #{dddqn_forward.4} parent=0 // pred_region
    _
  $region5: #{dddqn_forward.4} parent=0 // pred_fallthru
    _
  // Predicated region
  $region6: #{dddqn_forward.4} parent=0 // pred_check
    _
  $region7: #{dddqn_forward.4} parent=0 // pred_check_branch
    %11 = sbr.rel (0) target = $region9
  $region8: #{dddqn_forward.4} parent=0 // pred_region
    _
  $region9: #{dddqn_forward.4} parent=0 // pred_fallthru
    _
  // Predicated region
  $region10: #{dddqn_forward.4} parent=0 // pred_check
    _
  $region11: #{dddqn_forward.4} parent=0 // pred_check_branch
    %13 = sbr.rel (0) target = $region13
  $region12: #{dddqn_forward.4} parent=0 // pred_region
    _
  $region13: #{dddqn_forward.4} parent=0 // pred_fallthru
    _
  %v15 = vld [vmem:[%s0] sm:$0xff]
  %v16 = vld [vmem:[%s0 + $0x8] sm:$0xff]
  %v17 = vld [vmem:[%s0 + $0x10] sm:$0xff]
  %v18 = vld [vmem:[%s0 + $0x18] sm:$0xff]
  %v19 = vld [vmem:[%s0 + $0x20] sm:$0xff]
  %v20 = vld [vmem:[%s0 + $0x28] sm:$0xff]
  %v21 = vld [vmem:[%s0 + $0x30] sm:$0xff]
  %v22 = vld [vmem:[%s0 + $0x38] sm:$0xff]
  %v23 = vld [vmem:[%s0 + $0x40] sm:$0xff]
  %v24 = vld [vmem:[%s0 + $0x48] sm:$0xff]
  %v25 = vld [vmem:[%s0 + $0x50] sm:$0xff]
  %v26 = vld [vmem:[%s0 + $0x58] sm:$0xff]
  %v27 = vld [vmem:[%s0 + $0x60] sm:$0xff]
  %v28 = vld [vmem:[%s0 + $0x68] sm:$0xff]
  %v29 = vld [vmem:[%s1] sm:$0xf]
  %v30 = vld [vmem:[%s1 + $0x4] sm:$0xf]
  %v31 = vld [vmem:[%s1 + $0x8] sm:$0xf]
  %v32 = vld [vmem:[%s1 + $0xc] sm:$0xf]
  %v33 = vld [vmem:[%s1 + $0x10] sm:$0xf]
  %v34 = vld [vmem:[%s1 + $0x14] sm:$0xf]
  %v35 = vld [vmem:[%s1 + $0x18] sm:$0xf]
  %v36 = vld [vmem:[%s1 + $0x1c] sm:$0xf]
  %v37 = vld [vmem:[%s1 + $0x20] sm:$0xf]
  %v38 = vld [vmem:[%s1 + $0x24] sm:$0xf]
  %v39 = vld [vmem:[%s1 + $0x28] sm:$0xf]
  %v40 = vld [vmem:[%s1 + $0x2c] sm:$0xf]
  %v41 = vld [vmem:[%s1 + $0x30] sm:$0xf]
  %v42 = vld [vmem:[%s1 + $0x34] sm:$0xf]
  %v43 = vld [vmem:[%s1 + $0x38] sm:$0xf]
  %v44 = vld [vmem:[%s1 + $0x3c] sm:$0xf]
  %v45 = vld [vmem:[%s1 + $0x40] sm:$0xf]
  %v46 = vld [vmem:[%s1 + $0x44] sm:$0xf]
  %v47 = vld [vmem:[%s1 + $0x48] sm:$0xf]
  %v48 = vld [vmem:[%s1 + $0x4c] sm:$0xf]
  %v49 = vld [vmem:[%s1 + $0x50] sm:$0xf]
  %v50 = vld [vmem:[%s1 + $0x54] sm:$0xf]
  %v51 = vld [vmem:[%s1 + $0x58] sm:$0xf]
  %v52 = vld [vmem:[%s1 + $0x5c] sm:$0xf]
  %v53 = vld [vmem:[%s1 + $0x60] sm:$0xf]
  %v54 = vld [vmem:[%s1 + $0x64] sm:$0xf]
  %v55 = vld [vmem:[%s1 + $0x68] sm:$0xf]
  %v56 = vld [vmem:[%s1 + $0x6c] sm:$0xf]
  %v57 = vld [vmem:[%s1 + $0x70] sm:$0xf]
  %v58 = vld [vmem:[%s1 + $0x74] sm:$0xf]
  %v59 = vld [vmem:[%s1 + $0x78] sm:$0xf]
  %v60 = vld [vmem:[%s1 + $0x7c] sm:$0xf]
  %v61 = vld [vmem:[%s1 + $0x80] sm:$0xf]
  %v62 = vld [vmem:[%s1 + $0x84] sm:$0xf]
  %v63 = vld [vmem:[%s1 + $0x88] sm:$0xf]
  %v64 = vld [vmem:[%s1 + $0x8c] sm:$0xf]
  %v65 = vld [vmem:[%s1 + $0x90] sm:$0xf]
  %v66 = vld [vmem:[%s1 + $0x94] sm:$0xf]
  %v67 = vld [vmem:[%s1 + $0x98] sm:$0xf]
  %v68 = vld [vmem:[%s1 + $0x9c] sm:$0xf]
  %v69 = vld [vmem:[%s1 + $0xa0] sm:$0xf]
  %v70 = vld [vmem:[%s1 + $0xa4] sm:$0xf]
  %v71 = vld [vmem:[%s1 + $0xa8] sm:$0xf]
  %v72 = vld [vmem:[%s1 + $0xac] sm:$0xf]
  %v73 = vld [vmem:[%s1 + $0xb0] sm:$0xf]
  %v74 = vld [vmem:[%s1 + $0xb4] sm:$0xf]
  %v75 = vld [vmem:[%s1 + $0xb8] sm:$0xf]
  %v76 = vld [vmem:[%s1 + $0xbc] sm:$0xf]
  %v77 = vld [vmem:[%s1 + $0xc0] sm:$0xf]
  %v78 = vld [vmem:[%s1 + $0xc4] sm:$0xf]
  %v79 = vld [vmem:[%s1 + $0xc8] sm:$0xf]
  %v80 = vld [vmem:[%s1 + $0xcc] sm:$0xf]
  %v81 = vld [vmem:[%s1 + $0xd0] sm:$0xf]
  %v82 = vld [vmem:[%s1 + $0xd4] sm:$0xf]
  %v83 = vld [vmem:[%s1 + $0xd8] sm:$0xf]
  %v84 = vld [vmem:[%s1 + $0xdc] sm:$0xf]
  %v85 = vld [vmem:[%s1 + $0xe0] sm:$0xf]
  %v86 = vld [vmem:[%s1 + $0xe4] sm:$0xf]
  %v87 = vld [vmem:[%s1 + $0xe8] sm:$0xf]
  %v88 = vld [vmem:[%s1 + $0xec] sm:$0xf]
  %v89 = vld [vmem:[%s1 + $0xf0] sm:$0xf]
  %v90 = vld [vmem:[%s1 + $0xf4] sm:$0xf]
  %v91 = vld [vmem:[%s1 + $0xf8] sm:$0xf]
  %v92 = vld [vmem:[%s1 + $0xfc] sm:$0xf]
  %v93 = vld [vmem:[%s2] sm:$0x1]
  %v95 = vlaneseq
  %v96 = vshrl.u32 %v95, 7
  %v97 = vsub.s32 0, %v96
  %v98 = vrot.slane %v93, %v97
  %v114 = vunpack.c.l.b16 %v15
  %v115 = vunpack.c.h.b16 %v15
  %v116 = vunpack.c.l.b16 %v16
  %v117 = vunpack.c.h.b16 %v16
  %v118 = vunpack.c.l.b16 %v17
  %v119 = vunpack.c.h.b16 %v17
  %v120 = vunpack.c.l.b16 %v18
  %v121 = vunpack.c.h.b16 %v18
  %v122 = vunpack.c.l.b16 %v19
  %v123 = vunpack.c.h.b16 %v19
  %v124 = vunpack.c.l.b16 %v20
  %v125 = vunpack.c.h.b16 %v20
  %v126 = vunpack.c.l.b16 %v21
  %v127 = vunpack.c.h.b16 %v21
  %v128 = vunpack.c.l.b16 %v22
  %v129 = vunpack.c.h.b16 %v22
  %v130 = vunpack.c.l.b16 %v23
  %v131 = vunpack.c.h.b16 %v23
  %v132 = vunpack.c.l.b16 %v24
  %v133 = vunpack.c.h.b16 %v24
  %v134 = vunpack.c.l.b16 %v25
  %v135 = vunpack.c.h.b16 %v25
  %v136 = vunpack.c.l.b16 %v26
  %v137 = vunpack.c.h.b16 %v26
  %v138 = vunpack.c.l.b16 %v27
  %v139 = vunpack.c.h.b16 %v27
  %v140 = vunpack.c.l.b16 %v28
  %v141 = vunpack.c.h.b16 %v28
  %v142 = vpack.c.b16 %v118, %v114
  %v143 = vpack.c.b16 %v119, %v115
  %v144 = vpack.c.b16 %v120, %v116
  %v145 = vpack.c.b16 %v121, %v117
  %v146 = vpack.c.b16 %v126, %v122
  %v147 = vpack.c.b16 %v127, %v123
  %v148 = vpack.c.b16 %v128, %v124
  %v149 = vpack.c.b16 %v129, %v125
  %v150 = vpack.c.b16 %v134, %v130
  %v151 = vpack.c.b16 %v135, %v131
  %v152 = vpack.c.b16 %v136, %v132
  %v153 = vpack.c.b16 %v137, %v133
  %v154 = vpack.c.b16 %v138, %v138
  %v155 = vpack.c.b16 %v139, %v139
  %v156 = vpack.c.b16 %v140, %v140
  %v157 = vpack.c.b16 %v141, %v141
  %v238 = vunpack.c.l.b16 %v29
  %v239 = vunpack.c.l.b16 %v30
  %v240 = vunpack.c.l.b16 %v31
  %v241 = vunpack.c.l.b16 %v32
  %v242 = vunpack.c.l.b16 %v33
  %v243 = vunpack.c.l.b16 %v34
  %v244 = vunpack.c.l.b16 %v35
  %v245 = vunpack.c.l.b16 %v36
  %v246 = vunpack.c.l.b16 %v37
  %v247 = vunpack.c.l.b16 %v38
  %v248 = vunpack.c.l.b16 %v39
  %v249 = vunpack.c.l.b16 %v40
  %v250 = vunpack.c.l.b16 %v41
  %v251 = vunpack.c.l.b16 %v42
  %v252 = vunpack.c.l.b16 %v43
  %v253 = vunpack.c.l.b16 %v44
  %v254 = vunpack.c.l.b16 %v45
  %v255 = vunpack.c.l.b16 %v46
  %v256 = vunpack.c.l.b16 %v47
  %v257 = vunpack.c.l.b16 %v48
  %v258 = vunpack.c.l.b16 %v49
  %v259 = vunpack.c.l.b16 %v50
  %v260 = vunpack.c.l.b16 %v51
  %v261 = vunpack.c.l.b16 %v52
  %v262 = vunpack.c.l.b16 %v53
  %v263 = vunpack.c.l.b16 %v54
  %v264 = vunpack.c.l.b16 %v55
  %v265 = vunpack.c.l.b16 %v56
  %v266 = vunpack.c.l.b16 %v57
  %v267 = vunpack.c.l.b16 %v58
  %v268 = vunpack.c.l.b16 %v59
  %v269 = vunpack.c.l.b16 %v60
  %v270 = vunpack.c.l.b16 %v61
  %v271 = vunpack.c.l.b16 %v62
  %v272 = vunpack.c.l.b16 %v63
  %v273 = vunpack.c.l.b16 %v64
  %v274 = vunpack.c.l.b16 %v65
  %v275 = vunpack.c.l.b16 %v66
  %v276 = vunpack.c.l.b16 %v67
  %v277 = vunpack.c.l.b16 %v68
  %v278 = vunpack.c.l.b16 %v69
  %v279 = vunpack.c.l.b16 %v70
  %v280 = vunpack.c.l.b16 %v71
  %v281 = vunpack.c.l.b16 %v72
  %v282 = vunpack.c.l.b16 %v73
  %v283 = vunpack.c.l.b16 %v74
  %v284 = vunpack.c.l.b16 %v75
  %v285 = vunpack.c.l.b16 %v76
  %v286 = vunpack.c.l.b16 %v77
  %v287 = vunpack.c.l.b16 %v78
  %v288 = vunpack.c.l.b16 %v79
  %v289 = vunpack.c.l.b16 %v80
  %v290 = vunpack.c.l.b16 %v81
  %v291 = vunpack.c.l.b16 %v82
  %v292 = vunpack.c.l.b16 %v83
  %v293 = vunpack.c.l.b16 %v84
  %v294 = vunpack.c.l.b16 %v85
  %v295 = vunpack.c.l.b16 %v86
  %v296 = vunpack.c.l.b16 %v87
  %v297 = vunpack.c.l.b16 %v88
  %v298 = vunpack.c.l.b16 %v89
  %v299 = vunpack.c.l.b16 %v90
  %v300 = vunpack.c.l.b16 %v91
  %v301 = vunpack.c.l.b16 %v92
  %v302 = vpack.c.b16 %v239, %v238
  %v303 = vpack.c.b16 %v241, %v240
  %v304 = vpack.c.b16 %v243, %v242
  %v305 = vpack.c.b16 %v245, %v244
  %v306 = vpack.c.b16 %v247, %v246
  %v307 = vpack.c.b16 %v249, %v248
  %v308 = vpack.c.b16 %v251, %v250
  %v309 = vpack.c.b16 %v253, %v252
  %v310 = vpack.c.b16 %v255, %v254
  %v311 = vpack.c.b16 %v257, %v256
  %v312 = vpack.c.b16 %v259, %v258
  %v313 = vpack.c.b16 %v261, %v260
  %v314 = vpack.c.b16 %v263, %v262
  %v315 = vpack.c.b16 %v265, %v264
  %v316 = vpack.c.b16 %v267, %v266
  %v317 = vpack.c.b16 %v269, %v268
  %v318 = vpack.c.b16 %v271, %v270
  %v319 = vpack.c.b16 %v273, %v272
  %v320 = vpack.c.b16 %v275, %v274
  %v321 = vpack.c.b16 %v277, %v276
  %v322 = vpack.c.b16 %v279, %v278
  %v323 = vpack.c.b16 %v281, %v280
  %v324 = vpack.c.b16 %v283, %v282
  %v325 = vpack.c.b16 %v285, %v284
  %v326 = vpack.c.b16 %v287, %v286
  %v327 = vpack.c.b16 %v289, %v288
  %v328 = vpack.c.b16 %v291, %v290
  %v329 = vpack.c.b16 %v293, %v292
  %v330 = vpack.c.b16 %v295, %v294
  %v331 = vpack.c.b16 %v297, %v296
  %v332 = vpack.c.b16 %v299, %v298
  %v333 = vpack.c.b16 %v301, %v300
  %366 = vmatprep.subr.bf16.mxu0 0
  %367 = vmatpush1.bf16.msra.mxu0 %v302
  %368 = vmatprep.subr.bf16.mxu0 0
  %369 = vmatpush1.bf16.msra.mxu0 %v303
  %370 = vmatprep.subr.bf16.mxu0 0
  %371 = vmatpush1.bf16.msra.mxu0 %v304
  %372 = vmatprep.subr.bf16.mxu0 0
  %373 = vmatpush1.bf16.msra.mxu0 %v305
  %374 = vmatprep.subr.bf16.mxu0 0
  %375 = vmatpush1.bf16.msra.mxu0 %v306
  %376 = vmatprep.subr.bf16.mxu0 0
  %377 = vmatpush1.bf16.msra.mxu0 %v307
  %378 = vmatprep.subr.bf16.mxu0 0
  %379 = vmatpush1.bf16.msra.mxu0 %v308
  %380 = vmatprep.subr.bf16.mxu0 0
  %381 = vmatpush1.bf16.msra.mxu0 %v309
  %382 = vmatprep.subr.bf16.mxu0 0
  %383 = vmatpush1.bf16.msra.mxu0 %v310
  %384 = vmatprep.subr.bf16.mxu0 0
  %385 = vmatpush1.bf16.msra.mxu0 %v311
  %386 = vmatprep.subr.bf16.mxu0 0
  %387 = vmatpush1.bf16.msra.mxu0 %v312
  %388 = vmatprep.subr.bf16.mxu0 0
  %389 = vmatpush1.bf16.msra.mxu0 %v313
  %390 = vmatprep.subr.bf16.mxu0 0
  %391 = vmatpush1.bf16.msra.mxu0 %v314
  %392 = vmatprep.subr.bf16.mxu0 0
  %393 = vmatpush1.bf16.msra.mxu0 %v315
  %394 = vmatprep.subr.bf16.mxu0 0
  %395 = vmatpush1.bf16.msra.mxu0 %v316
  %396 = vmatprep.subr.bf16.mxu0 0
  %397 = vmatpush1.bf16.msra.mxu0 %v317
  %398 = vmatprep.mubr.bf16.mxu0 %v143
  %399 = vmatmul.mubr.bf16.gmra.mrb[0].mxu0 %v142
  %v400 = vpop.f32.mrb[0].mxu0
  %v401 = vadd.f32 %v98, %v400
  %v402 = vpop.f32.mrb[0].mxu0
  %v403 = vpop.f32.mrb[0].mxu0
  %v404 = vadd.f32 %v98, %v403
  %v405 = vpop.f32.mrb[0].mxu0
  %406 = vmatprep.mubr.bf16.mxu0 %v147
  %407 = vmatmul.mubr.bf16.gmra.mrb[0].mxu0 %v146
  %v408 = vpop.f32.mrb[0].mxu0
  %v409 = vadd.f32 %v98, %v408
  %v410 = vpop.f32.mrb[0].mxu0
  %v411 = vpop.f32.mrb[0].mxu0
  %v412 = vadd.f32 %v98, %v411
  %v413 = vpop.f32.mrb[0].mxu0
  %414 = vmatprep.mubr.bf16.mxu0 %v151
  %415 = vmatmul.mubr.bf16.gmra.mrb[0].mxu0 %v150
  %v416 = vpop.f32.mrb[0].mxu0
  %v417 = vadd.f32 %v98, %v416
  %v418 = vpop.f32.mrb[0].mxu0
  %v419 = vpop.f32.mrb[0].mxu0
  %v420 = vadd.f32 %v98, %v419
  %v421 = vpop.f32.mrb[0].mxu0
  %422 = vmatprep.mubr.bf16.mxu0 %v155
  %423 = vmatmul.mubr.bf16.gmra.mrb[0].mxu0 %v154
  %v424 = vpop.f32.mrb[0].mxu0
  %v425 = vadd.f32 %v98, %v424
  %v426 = vpop.f32.mrb[0].mxu0
  %v427 = vpop.f32.mrb[0].mxu0
  %v428 = vpop.f32.mrb[0].mxu0
  %429 = vdwg.mxu0
  %430 = vmatprep.subr.bf16.mxu0 0
  %431 = vmatpush1.bf16.msra.mxu0 %v318
  %432 = vmatprep.subr.bf16.mxu0 0
  %433 = vmatpush1.bf16.msra.mxu0 %v319
  %434 = vmatprep.subr.bf16.mxu0 0
  %435 = vmatpush1.bf16.msra.mxu0 %v320
  %436 = vmatprep.subr.bf16.mxu0 0
  %437 = vmatpush1.bf16.msra.mxu0 %v321
  %438 = vmatprep.subr.bf16.mxu0 0
  %439 = vmatpush1.bf16.msra.mxu0 %v322
  %440 = vmatprep.subr.bf16.mxu0 0
  %441 = vmatpush1.bf16.msra.mxu0 %v323
  %442 = vmatprep.subr.bf16.mxu0 0
  %443 = vmatpush1.bf16.msra.mxu0 %v324
  %444 = vmatprep.subr.bf16.mxu0 0
  %445 = vmatpush1.bf16.msra.mxu0 %v325
  %446 = vmatprep.subr.bf16.mxu0 0
  %447 = vmatpush1.bf16.msra.mxu0 %v326
  %448 = vmatprep.subr.bf16.mxu0 0
  %449 = vmatpush1.bf16.msra.mxu0 %v327
  %450 = vmatprep.subr.bf16.mxu0 0
  %451 = vmatpush1.bf16.msra.mxu0 %v328
  %452 = vmatprep.subr.bf16.mxu0 0
  %453 = vmatpush1.bf16.msra.mxu0 %v329
  %454 = vmatprep.subr.bf16.mxu0 0
  %455 = vmatpush1.bf16.msra.mxu0 %v330
  %456 = vmatprep.subr.bf16.mxu0 0
  %457 = vmatpush1.bf16.msra.mxu0 %v331
  %458 = vmatprep.subr.bf16.mxu0 0
  %459 = vmatpush1.bf16.msra.mxu0 %v332
  %460 = vmatprep.subr.bf16.mxu0 0
  %461 = vmatpush1.bf16.msra.mxu0 %v333
  %462 = vmatprep.mubr.bf16.mxu0 %v145
  %463 = vmatmul.mubr.bf16.gmra.mrb[0].mxu0 %v144
  %v464 = vpop.f32.mrb[0].mxu0
  %v465 = vadd.f32 %v401, %v464
  %v466 = vpop.f32.mrb[0].mxu0
  %v467 = vpop.f32.mrb[0].mxu0
  %v468 = vadd.f32 %v404, %v467
  %v469 = vpop.f32.mrb[0].mxu0
  %470 = vmatprep.mubr.bf16.mxu0 %v149
  %471 = vmatmul.mubr.bf16.gmra.mrb[0].mxu0 %v148
  %v472 = vpop.f32.mrb[0].mxu0
  %v473 = vadd.f32 %v409, %v472
  %v474 = vpop.f32.mrb[0].mxu0
  %v475 = vpop.f32.mrb[0].mxu0
  %v476 = vadd.f32 %v412, %v475
  %v477 = vpop.f32.mrb[0].mxu0
  %478 = vmatprep.mubr.bf16.mxu0 %v153
  %479 = vmatmul.mubr.bf16.gmra.mrb[0].mxu0 %v152
  %v480 = vpop.f32.mrb[0].mxu0
  %v481 = vadd.f32 %v417, %v480
  %v482 = vpop.f32.mrb[0].mxu0
  %v483 = vpop.f32.mrb[0].mxu0
  %v484 = vadd.f32 %v420, %v483
  %v485 = vpop.f32.mrb[0].mxu0
  %486 = vmatprep.mubr.bf16.mxu0 %v157
  %487 = vmatmul.mubr.bf16.gmra.mrb[0].mxu0 %v156
  %v488 = vpop.f32.mrb[0].mxu0
  %v489 = vadd.f32 %v425, %v488
  %v490 = vpop.f32.mrb[0].mxu0
  %v491 = vpop.f32.mrb[0].mxu0
  %v492 = vpop.f32.mrb[0].mxu0
  %493 = vdwg.mxu0
  %v494 = vmax.f32 %v465, 0.0
  %v495 = vmax.f32 %v468, 0.0
  %v496 = vmax.f32 %v473, 0.0
  %v497 = vmax.f32 %v476, 0.0
  %v498 = vmax.f32 %v481, 0.0
  %v499 = vmax.f32 %v484, 0.0
  %v500 = vmax.f32 %v489, 0.0
  %v501 = vpack.c.bf16 %v495, %v494
  %v502 = vpack.c.bf16 %v497, %v496
  %v503 = vpack.c.bf16 %v499, %v498
  %v504 = vpack.c.bf16 %v500, %v500
  %v509 = vunpack.c.l.b16 %v501
  %v510 = vunpack.c.h.b16 %v501
  %v511 = vunpack.c.l.b16 %v502
  %v512 = vunpack.c.h.b16 %v502
  %v513 = vunpack.c.l.b16 %v503
  %v514 = vunpack.c.h.b16 %v503
  %v515 = vunpack.c.l.b16 %v504
  %v516 = vpack.c.b16 %v509, %v509
  %v517 = vpack.c.b16 %v510, %v510
  %v518 = vpack.c.b16 %v511, %v511
  %v519 = vpack.c.b16 %v512, %v512
  %v520 = vpack.c.b16 %v513, %v513
  %v521 = vpack.c.b16 %v514, %v514
  %v522 = vpack.c.b16 %v515, %v515
  %vm530 = vcmask 519168
  %531 = vst.msk [vmem:[%s3] sm:$0xf] %vm530, %v516
  %532 = vst.msk [vmem:[%s3 + $0x4] sm:$0xf] %vm530, %v517
  %533 = vst.msk [vmem:[%s3 + $0x8] sm:$0xf] %vm530, %v518
  %534 = vst.msk [vmem:[%s3 + $0xc] sm:$0xf] %vm530, %v519
  %535 = vst.msk [vmem:[%s3 + $0x10] sm:$0xf] %vm530, %v520
  %536 = vst.msk [vmem:[%s3 + $0x14] sm:$0xf] %vm530, %v521
  %537 = vst.msk [vmem:[%s3 + $0x18] sm:$0xf] %vm530, %v522
  // Predicated region
  $region14: #{dddqn_forward.4} parent=0 // pred_check
    _
  $region15: #{dddqn_forward.4} parent=0 // pred_check_branch
    %539 = sbr.rel (0) target = $region17
  $region16: #{dddqn_forward.4} parent=0 // pred_region
    _
  $region17: #{dddqn_forward.4} parent=0 // pred_fallthru
    _
  // Predicated region
  $region18: #{dddqn_forward.4} parent=0 // pred_check
    _
  $region19: #{dddqn_forward.4} parent=0 // pred_check_branch
    %541 = sbr.rel (0) target = $region21
  $region20: #{dddqn_forward.4} parent=0 // pred_region
    _
  $region21: #{dddqn_forward.4} parent=0 // pred_fallthru
    _

// kernel: dddqn_forward.5
$region0: #{dddqn_forward.5}
  #allocation0 [shape = 'u32[]', space=smem, size = 0x4, offset = 0x4, fixed_abs, tag = 'smem constant byte address 0x4 - core index']
  #allocation1 [shape = 'u32[144,128]{1,0:T(1,128)}', space=vmem, size = 0x12000, scoped, tag = 'internal scratch']
  %s0 = inlined_call_operand.vmem [shape: bf16[2,1024], index: 0, kind: input, shape index: {}]
  %s1 = inlined_call_operand.vmem [shape: bf16[1024,128], index: 1, kind: input, shape index: {}]
  %s2 = inlined_call_operand.vmem [shape: f32[1,128], index: 2, kind: input, shape index: {}]
  %s3 = inlined_call_operand.vmem [shape: bf16[128,1024], index: 3, kind: input, shape index: {}]
  %s4 = inlined_call_operand.vmem [shape: f32[1,1024], index: 4, kind: input, shape index: {}]
  %s5 = inlined_call_operand.vmem [shape: bf16[1024,128], index: 5, kind: input, shape index: {}]
  %s6 = inlined_call_operand.vmem [shape: f32[1,128], index: 6, kind: input, shape index: {}]
  %s7 = inlined_call_operand.hbm [shape: f32[2,3], index: 7, kind: output, shape index: {}]
  %s8 = sld [smem:[#allocation0]]
  $region38: #{dddqn_forward.5} parent=0
    _
  %s10 = ssub.s32 1, %s8
  %s11 = scalar_select 0, %s10, %s8
  $region1: #{dddqn_forward.5} parent=0
    #allocation2 [shape = 'u8[1024]{0}', space=vmem, size = 0x400, scoped, tag = 'output window, operand 0, single buffered']
    #allocation3 [shape = 's32[1]{0}', space=sflag, size = 0x4, scoped, tag = 'scoped memory for dddqn_forward.5']
    %12 = vsyncpa [#allocation3], 0
    // Predicated region
    $region2: #{dddqn_forward.5} parent=1 // pred_check
      _
    $region3: #{dddqn_forward.5} parent=1 // pred_check_branch
      %14 = sbr.rel (0) target = $region5
    $region4: #{dddqn_forward.5} parent=1 // pred_region
      _
    $region5: #{dddqn_forward.5} parent=1 // pred_fallthru
      _
    // Predicated region
    $region6: #{dddqn_forward.5} parent=1 // pred_check
      _
    $region7: #{dddqn_forward.5} parent=1 // pred_check_branch
      %16 = sbr.rel (0) target = $region9
    $region8: #{dddqn_forward.5} parent=1 // pred_region
      _
    $region9: #{dddqn_forward.5} parent=1 // pred_fallthru
      _
    // Predicated region
    $region10: #{dddqn_forward.5} parent=1 // pred_check
      _
    $region11: #{dddqn_forward.5} parent=1 // pred_check_branch
      %18 = sbr.rel (0) target = $region13
    $region12: #{dddqn_forward.5} parent=1 // pred_region
      _
    $region13: #{dddqn_forward.5} parent=1 // pred_fallthru
      _
    // Predicated region
    $region14: #{dddqn_forward.5} parent=1 // pred_check
      _
    $region15: #{dddqn_forward.5} parent=1 // pred_check_branch
      %20 = sbr.rel (0) target = $region17
    $region16: #{dddqn_forward.5} parent=1 // pred_region
      _
    $region17: #{dddqn_forward.5} parent=1 // pred_fallthru
      _
    // Predicated region
    $region18: #{dddqn_forward.5} parent=1 // pred_check
      _
    $region19: #{dddqn_forward.5} parent=1 // pred_check_branch
      %22 = sbr.rel (0) target = $region21
    $region20: #{dddqn_forward.5} parent=1 // pred_region
      _
    $region21: #{dddqn_forward.5} parent=1 // pred_fallthru
      _
    // Predicated region
    $region22: #{dddqn_forward.5} parent=1 // pred_check
      _
    $region23: #{dddqn_forward.5} parent=1 // pred_check_branch
      %24 = sbr.rel (0) target = $region25
    $region24: #{dddqn_forward.5} parent=1 // pred_region
      _
    $region25: #{dddqn_forward.5} parent=1 // pred_fallthru
      _
    // Predicated region
    $region26: #{dddqn_forward.5} parent=1 // pred_check
      _
    $region27: #{dddqn_forward.5} parent=1 // pred_check_branch
      %26 = sbr.rel (0) target = $region29
    $region28: #{dddqn_forward.5} parent=1 // pred_region
      _
    $region29: #{dddqn_forward.5} parent=1 // pred_fallthru
      _
    %v28 = vld [vmem:[%s0] sm:$0xff]
    %v29 = vld [vmem:[%s1] sm:$0xf]
    %v30 = vld [vmem:[%s1 + $0x4] sm:$0xf]
    %v31 = vld [vmem:[%s1 + $0x8] sm:$0xf]
    %v32 = vld [vmem:[%s1 + $0xc] sm:$0xf]
    %v33 = vld [vmem:[%s1 + $0x10] sm:$0xf]
    %v34 = vld [vmem:[%s1 + $0x14] sm:$0xf]
    %v35 = vld [vmem:[%s1 + $0x18] sm:$0xf]
    %v36 = vld [vmem:[%s1 + $0x1c] sm:$0xf]
    %v37 = vld [vmem:[%s1 + $0x20] sm:$0xf]
    %v38 = vld [vmem:[%s1 + $0x24] sm:$0xf]
    %v39 = vld [vmem:[%s1 + $0x28] sm:$0xf]
    %v40 = vld [vmem:[%s1 + $0x2c] sm:$0xf]
    %v41 = vld [vmem:[%s1 + $0x30] sm:$0xf]
    %v42 = vld [vmem:[%s1 + $0x34] sm:$0xf]
    %v43 = vld [vmem:[%s1 + $0x38] sm:$0xf]
    %v44 = vld [vmem:[%s1 + $0x3c] sm:$0xf]
    %v45 = vld [vmem:[%s1 + $0x40] sm:$0xf]
    %v46 = vld [vmem:[%s1 + $0x44] sm:$0xf]
    %v47 = vld [vmem:[%s1 + $0x48] sm:$0xf]
    %v48 = vld [vmem:[%s1 + $0x4c] sm:$0xf]
    %v49 = vld [vmem:[%s1 + $0x50] sm:$0xf]
    %v50 = vld [vmem:[%s1 + $0x54] sm:$0xf]
    %v51 = vld [vmem:[%s1 + $0x58] sm:$0xf]
    %v52 = vld [vmem:[%s1 + $0x5c] sm:$0xf]
    %v53 = vld [vmem:[%s1 + $0x60] sm:$0xf]
    %v54 = vld [vmem:[%s1 + $0x64] sm:$0xf]
    %v55 = vld [vmem:[%s1 + $0x68] sm:$0xf]
    %v56 = vld [vmem:[%s1 + $0x6c] sm:$0xf]
    %v57 = vld [vmem:[%s1 + $0x70] sm:$0xf]
    %v58 = vld [vmem:[%s1 + $0x74] sm:$0xf]
    %v59 = vld [vmem:[%s1 + $0x78] sm:$0xf]
    %v60 = vld [vmem:[%s1 + $0x7c] sm:$0xf]
    %v61 = vld [vmem:[%s1 + $0x80] sm:$0xf]
    %v62 = vld [vmem:[%s1 + $0x84] sm:$0xf]
    %v63 = vld [vmem:[%s1 + $0x88] sm:$0xf]
    %v64 = vld [vmem:[%s1 + $0x8c] sm:$0xf]
    %v65 = vld [vmem:[%s1 + $0x90] sm:$0xf]
    %v66 = vld [vmem:[%s1 + $0x94] sm:$0xf]
    %v67 = vld [vmem:[%s1 + $0x98] sm:$0xf]
    %v68 = vld [vmem:[%s1 + $0x9c] sm:$0xf]
    %v69 = vld [vmem:[%s1 + $0xa0] sm:$0xf]
    %v70 = vld [vmem:[%s1 + $0xa4] sm:$0xf]
    %v71 = vld [vmem:[%s1 + $0xa8] sm:$0xf]
    %v72 = vld [vmem:[%s1 + $0xac] sm:$0xf]
    %v73 = vld [vmem:[%s1 + $0xb0] sm:$0xf]
    %v74 = vld [vmem:[%s1 + $0xb4] sm:$0xf]
    %v75 = vld [vmem:[%s1 + $0xb8] sm:$0xf]
    %v76 = vld [vmem:[%s1 + $0xbc] sm:$0xf]
    %v77 = vld [vmem:[%s1 + $0xc0] sm:$0xf]
    %v78 = vld [vmem:[%s1 + $0xc4] sm:$0xf]
    %v79 = vld [vmem:[%s1 + $0xc8] sm:$0xf]
    %v80 = vld [vmem:[%s1 + $0xcc] sm:$0xf]
    %v81 = vld [vmem:[%s1 + $0xd0] sm:$0xf]
    %v82 = vld [vmem:[%s1 + $0xd4] sm:$0xf]
    %v83 = vld [vmem:[%s1 + $0xd8] sm:$0xf]
    %v84 = vld [vmem:[%s1 + $0xdc] sm:$0xf]
    %v85 = vld [vmem:[%s1 + $0xe0] sm:$0xf]
    %v86 = vld [vmem:[%s1 + $0xe4] sm:$0xf]
    %v87 = vld [vmem:[%s1 + $0xe8] sm:$0xf]
    %v88 = vld [vmem:[%s1 + $0xec] sm:$0xf]
    %v89 = vld [vmem:[%s1 + $0xf0] sm:$0xf]
    %v90 = vld [vmem:[%s1 + $0xf4] sm:$0xf]
    %v91 = vld [vmem:[%s1 + $0xf8] sm:$0xf]
    %v92 = vld [vmem:[%s1 + $0xfc] sm:$0xf]
    %v93 = vld [vmem:[%s1 + $0x100] sm:$0xf]
    %v94 = vld [vmem:[%s1 + $0x104] sm:$0xf]
    %v95 = vld [vmem:[%s1 + $0x108] sm:$0xf]
    %v96 = vld [vmem:[%s1 + $0x10c] sm:$0xf]
    %v97 = vld [vmem:[%s1 + $0x110] sm:$0xf]
    %v98 = vld [vmem:[%s1 + $0x114] sm:$0xf]
    %v99 = vld [vmem:[%s1 + $0x118] sm:$0xf]
    %v100 = vld [vmem:[%s1 + $0x11c] sm:$0xf]
    %v101 = vld [vmem:[%s1 + $0x120] sm:$0xf]
    %v102 = vld [vmem:[%s1 + $0x124] sm:$0xf]
    %v103 = vld [vmem:[%s1 + $0x128] sm:$0xf]
    %v104 = vld [vmem:[%s1 + $0x12c] sm:$0xf]
    %v105 = vld [vmem:[%s1 + $0x130] sm:$0xf]
    %v106 = vld [vmem:[%s1 + $0x134] sm:$0xf]
    %v107 = vld [vmem:[%s1 + $0x138] sm:$0xf]
    %v108 = vld [vmem:[%s1 + $0x13c] sm:$0xf]
    %v109 = vld [vmem:[%s1 + $0x140] sm:$0xf]
    %v110 = vld [vmem:[%s1 + $0x144] sm:$0xf]
    %v111 = vld [vmem:[%s1 + $0x148] sm:$0xf]
    %v112 = vld [vmem:[%s1 + $0x14c] sm:$0xf]
    %v113 = vld [vmem:[%s1 + $0x150] sm:$0xf]
    %v114 = vld [vmem:[%s1 + $0x154] sm:$0xf]
    %v115 = vld [vmem:[%s1 + $0x158] sm:$0xf]
    %v116 = vld [vmem:[%s1 + $0x15c] sm:$0xf]
    %v117 = vld [vmem:[%s1 + $0x160] sm:$0xf]
    %v118 = vld [vmem:[%s1 + $0x164] sm:$0xf]
    %v119 = vld [vmem:[%s1 + $0x168] sm:$0xf]
    %v120 = vld [vmem:[%s1 + $0x16c] sm:$0xf]
    %v121 = vld [vmem:[%s1 + $0x170] sm:$0xf]
    %v122 = vld [vmem:[%s1 + $0x174] sm:$0xf]
    %v123 = vld [vmem:[%s1 + $0x178] sm:$0xf]
    %v124 = vld [vmem:[%s1 + $0x17c] sm:$0xf]
    %v125 = vld [vmem:[%s1 + $0x180] sm:$0xf]
    %v126 = vld [vmem:[%s1 + $0x184] sm:$0xf]
    %v127 = vld [vmem:[%s1 + $0x188] sm:$0xf]
    %v128 = vld [vmem:[%s1 + $0x18c] sm:$0xf]
    %v129 = vld [vmem:[%s1 + $0x190] sm:$0xf]
    %v130 = vld [vmem:[%s1 + $0x194] sm:$0xf]
    %v131 = vld [vmem:[%s1 + $0x198] sm:$0xf]
    %v132 = vld [vmem:[%s1 + $0x19c] sm:$0xf]
    %v133 = vld [vmem:[%s1 + $0x1a0] sm:$0xf]
    %v134 = vld [vmem:[%s1 + $0x1a4] sm:$0xf]
    %v135 = vld [vmem:[%s1 + $0x1a8] sm:$0xf]
    %v136 = vld [vmem:[%s1 + $0x1ac] sm:$0xf]
    %v137 = vld [vmem:[%s1 + $0x1b0] sm:$0xf]
    %v138 = vld [vmem:[%s1 + $0x1b4] sm:$0xf]
    %v139 = vld [vmem:[%s1 + $0x1b8] sm:$0xf]
    %v140 = vld [vmem:[%s1 + $0x1bc] sm:$0xf]
    %v141 = vld [vmem:[%s1 + $0x1c0] sm:$0xf]
    %v142 = vld [vmem:[%s1 + $0x1c4] sm:$0xf]
    %v143 = vld [vmem:[%s1 + $0x1c8] sm:$0xf]
    %v144 = vld [vmem:[%s1 + $0x1cc] sm:$0xf]
    %v145 = vld [vmem:[%s1 + $0x1d0] sm:$0xf]
    %v146 = vld [vmem:[%s1 + $0x1d4] sm:$0xf]
    %v147 = vld [vmem:[%s1 + $0x1d8] sm:$0xf]
    %v148 = vld [vmem:[%s1 + $0x1dc] sm:$0xf]
    %v149 = vld [vmem:[%s1 + $0x1e0] sm:$0xf]
    %v150 = vld [vmem:[%s1 + $0x1e4] sm:$0xf]
    %v151 = vld [vmem:[%s1 + $0x1e8] sm:$0xf]
    %v152 = vld [vmem:[%s1 + $0x1ec] sm:$0xf]
    %v153 = vld [vmem:[%s1 + $0x1f0] sm:$0xf]
    %v154 = vld [vmem:[%s1 + $0x1f4] sm:$0xf]
    %v155 = vld [vmem:[%s1 + $0x1f8] sm:$0xf]
    %v156 = vld [vmem:[%s1 + $0x1fc] sm:$0xf]
    %v157 = vld [vmem:[%s2] sm:$0x1]
    %v159 = vlaneseq
    %v160 = vshrl.u32 %v159, 7
    %v161 = vsub.s32 0, %v160
    %v162 = vrot.slane %v157, %v161
    %v165 = vcombine.high %v28, %v28
    %v167 = vunpack.c.l.s4 1966171168
    %v168 = vunpack.c.0.s8 %v167
    %v169 = vlaneseq
    %v170 = vshrl.u32 %v169, 7
    %v171 = vsub.s32 %v168, %v170
    %v172 = vrot.slane %v28, %v171
    %v174 = vunpack.c.l.s4 1966171168
    %v175 = vunpack.c.0.s8 %v174
    %v176 = vlaneseq
    %v177 = vshrl.u32 %v176, 7
    %v178 = vsub.s32 %v175, %v177
    %v179 = vrot.slane %v165, %v178
    %v180 = vcombine.high %v172, %v172
    %v181 = vcombine.high %v179, %v179
    %v183 = vunpack.c.l.s4 1966171168
    %v184 = vunpack.c.0.s8 %v183
    %v185 = vlaneseq
    %v186 = vshrl.u32 %v185, 7
    %v187 = vsub.s32 %v184, %v186
    %v188 = vrot.slane %v172, %v187
    %v190 = vunpack.c.l.s4 1966171168
    %v191 = vunpack.c.0.s8 %v190
    %v192 = vlaneseq
    %v193 = vshrl.u32 %v192, 7
    %v194 = vsub.s32 %v191, %v193
    %v195 = vrot.slane %v179, %v194
    %v197 = vunpack.c.l.s4 1966171168
    %v198 = vunpack.c.0.s8 %v197
    %v199 = vlaneseq
    %v200 = vshrl.u32 %v199, 7
    %v201 = vsub.s32 %v198, %v200
    %v202 = vrot.slane %v180, %v201
    %v204 = vunpack.c.l.s4 1966171168
    %v205 = vunpack.c.0.s8 %v204
    %v206 = vlaneseq
    %v207 = vshrl.u32 %v206, 7
    %v208 = vsub.s32 %v205, %v207
    %v209 = vrot.slane %v181, %v208
    %v210 = vcombine.high %v188, %v188
    %v211 = vcombine.high %v195, %v195
    %v212 = vcombine.high %v202, %v202
    %v213 = vcombine.high %v209, %v209
    %v350 = vunpack.c.l.b16 %v29
    %v351 = vunpack.c.l.b16 %v30
    %v352 = vunpack.c.l.b16 %v31
    %v353 = vunpack.c.l.b16 %v32
    %v354 = vunpack.c.l.b16 %v33
    %v355 = vunpack.c.l.b16 %v34
    %v356 = vunpack.c.l.b16 %v35
    %v357 = vunpack.c.l.b16 %v36
    %v358 = vunpack.c.l.b16 %v37
    %v359 = vunpack.c.l.b16 %v38
    %v360 = vunpack.c.l.b16 %v39
    %v361 = vunpack.c.l.b16 %v40
    %v362 = vunpack.c.l.b16 %v41
    %v363 = vunpack.c.l.b16 %v42
    %v364 = vunpack.c.l.b16 %v43
    %v365 = vunpack.c.l.b16 %v44
    %v366 = vunpack.c.l.b16 %v45
    %v367 = vunpack.c.l.b16 %v46
    %v368 = vunpack.c.l.b16 %v47
    %v369 = vunpack.c.l.b16 %v48
    %v370 = vunpack.c.l.b16 %v49
    %v371 = vunpack.c.l.b16 %v50
    %v372 = vunpack.c.l.b16 %v51
    %v373 = vunpack.c.l.b16 %v52
    %v374 = vunpack.c.l.b16 %v53
    %v375 = vunpack.c.l.b16 %v54
    %v376 = vunpack.c.l.b16 %v55
    %v377 = vunpack.c.l.b16 %v56
    %v378 = vunpack.c.l.b16 %v57
    %v379 = vunpack.c.l.b16 %v58
    %v380 = vunpack.c.l.b16 %v59
    %v381 = vunpack.c.l.b16 %v60
    %v382 = vunpack.c.l.b16 %v61
    %v383 = vunpack.c.l.b16 %v62
    %v384 = vunpack.c.l.b16 %v63
    %v385 = vunpack.c.l.b16 %v64
    %v386 = vunpack.c.l.b16 %v65
    %v387 = vunpack.c.l.b16 %v66
    %v388 = vunpack.c.l.b16 %v67
    %v389 = vunpack.c.l.b16 %v68
    %v390 = vunpack.c.l.b16 %v69
    %v391 = vunpack.c.l.b16 %v70
    %v392 = vunpack.c.l.b16 %v71
    %v393 = vunpack.c.l.b16 %v72
    %v394 = vunpack.c.l.b16 %v73
    %v395 = vunpack.c.l.b16 %v74
    %v396 = vunpack.c.l.b16 %v75
    %v397 = vunpack.c.l.b16 %v76
    %v398 = vunpack.c.l.b16 %v77
    %v399 = vunpack.c.l.b16 %v78
    %v400 = vunpack.c.l.b16 %v79
    %v401 = vunpack.c.l.b16 %v80
    %v402 = vunpack.c.l.b16 %v81
    %v403 = vunpack.c.l.b16 %v82
    %v404 = vunpack.c.l.b16 %v83
    %v405 = vunpack.c.l.b16 %v84
    %v406 = vunpack.c.l.b16 %v85
    %v407 = vunpack.c.l.b16 %v86
    %v408 = vunpack.c.l.b16 %v87
    %v409 = vunpack.c.l.b16 %v88
    %v410 = vunpack.c.l.b16 %v89
    %v411 = vunpack.c.l.b16 %v90
    %v412 = vunpack.c.l.b16 %v91
    %v413 = vunpack.c.l.b16 %v92
    %v414 = vunpack.c.l.b16 %v93
    %v415 = vunpack.c.l.b16 %v94
    %v416 = vunpack.c.l.b16 %v95
    %v417 = vunpack.c.l.b16 %v96
    %v418 = vunpack.c.l.b16 %v97
    %v419 = vunpack.c.l.b16 %v98
    %v420 = vunpack.c.l.b16 %v99
    %v421 = vunpack.c.l.b16 %v100
    %v422 = vunpack.c.l.b16 %v101
    %v423 = vunpack.c.l.b16 %v102
    %v424 = vunpack.c.l.b16 %v103
    %v425 = vunpack.c.l.b16 %v104
    %v426 = vunpack.c.l.b16 %v105
    %v427 = vunpack.c.l.b16 %v106
    %v428 = vunpack.c.l.b16 %v107
    %v429 = vunpack.c.l.b16 %v108
    %v430 = vunpack.c.l.b16 %v109
    %v431 = vunpack.c.l.b16 %v110
    %v432 = vunpack.c.l.b16 %v111
    %v433 = vunpack.c.l.b16 %v112
    %v434 = vunpack.c.l.b16 %v113
    %v435 = vunpack.c.l.b16 %v114
    %v436 = vunpack.c.l.b16 %v115
    %v437 = vunpack.c.l.b16 %v116
    %v438 = vunpack.c.l.b16 %v117
    %v439 = vunpack.c.l.b16 %v118
    %v440 = vunpack.c.l.b16 %v119
    %v441 = vunpack.c.l.b16 %v120
    %v442 = vunpack.c.l.b16 %v121
    %v443 = vunpack.c.l.b16 %v122
    %v444 = vunpack.c.l.b16 %v123
    %v445 = vunpack.c.l.b16 %v124
    %v446 = vunpack.c.l.b16 %v125
    %v447 = vunpack.c.l.b16 %v126
    %v448 = vunpack.c.l.b16 %v127
    %v449 = vunpack.c.l.b16 %v128
    %v450 = vunpack.c.l.b16 %v129
    %v451 = vunpack.c.l.b16 %v130
    %v452 = vunpack.c.l.b16 %v131
    %v453 = vunpack.c.l.b16 %v132
    %v454 = vunpack.c.l.b16 %v133
    %v455 = vunpack.c.l.b16 %v134
    %v456 = vunpack.c.l.b16 %v135
    %v457 = vunpack.c.l.b16 %v136
    %v458 = vunpack.c.l.b16 %v137
    %v459 = vunpack.c.l.b16 %v138
    %v460 = vunpack.c.l.b16 %v139
    %v461 = vunpack.c.l.b16 %v140
    %v462 = vunpack.c.l.b16 %v141
    %v463 = vunpack.c.l.b16 %v142
    %v464 = vunpack.c.l.b16 %v143
    %v465 = vunpack.c.l.b16 %v144
    %v466 = vunpack.c.l.b16 %v145
    %v467 = vunpack.c.l.b16 %v146
    %v468 = vunpack.c.l.b16 %v147
    %v469 = vunpack.c.l.b16 %v148
    %v470 = vunpack.c.l.b16 %v149
    %v471 = vunpack.c.l.b16 %v150
    %v472 = vunpack.c.l.b16 %v151
    %v473 = vunpack.c.l.b16 %v152
    %v474 = vunpack.c.l.b16 %v153
    %v475 = vunpack.c.l.b16 %v154
    %v476 = vunpack.c.l.b16 %v155
    %v477 = vunpack.c.l.b16 %v156
    %v478 = vpack.c.b16 %v351, %v350
    %v479 = vpack.c.b16 %v353, %v352
    %v480 = vpack.c.b16 %v355, %v354
    %v481 = vpack.c.b16 %v357, %v356
    %v482 = vpack.c.b16 %v359, %v358
    %v483 = vpack.c.b16 %v361, %v360
    %v484 = vpack.c.b16 %v363, %v362
    %v485 = vpack.c.b16 %v365, %v364
    %v486 = vpack.c.b16 %v367, %v366
    %v487 = vpack.c.b16 %v369, %v368
    %v488 = vpack.c.b16 %v371, %v370
    %v489 = vpack.c.b16 %v373, %v372
    %v490 = vpack.c.b16 %v375, %v374
    %v491 = vpack.c.b16 %v377, %v376
    %v492 = vpack.c.b16 %v379, %v378
    %v493 = vpack.c.b16 %v381, %v380
    %v494 = vpack.c.b16 %v383, %v382
    %v495 = vpack.c.b16 %v385, %v384
    %v496 = vpack.c.b16 %v387, %v386
    %v497 = vpack.c.b16 %v389, %v388
    %v498 = vpack.c.b16 %v391, %v390
    %v499 = vpack.c.b16 %v393, %v392
    %v500 = vpack.c.b16 %v395, %v394
    %v501 = vpack.c.b16 %v397, %v396
    %v502 = vpack.c.b16 %v399, %v398
    %v503 = vpack.c.b16 %v401, %v400
    %v504 = vpack.c.b16 %v403, %v402
    %v505 = vpack.c.b16 %v405, %v404
    %v506 = vpack.c.b16 %v407, %v406
    %v507 = vpack.c.b16 %v409, %v408
    %v508 = vpack.c.b16 %v411, %v410
    %v509 = vpack.c.b16 %v413, %v412
    %v510 = vpack.c.b16 %v415, %v414
    %v511 = vpack.c.b16 %v417, %v416
    %v512 = vpack.c.b16 %v419, %v418
    %v513 = vpack.c.b16 %v421, %v420
    %v514 = vpack.c.b16 %v423, %v422
    %v515 = vpack.c.b16 %v425, %v424
    %v516 = vpack.c.b16 %v427, %v426
    %v517 = vpack.c.b16 %v429, %v428
    %v518 = vpack.c.b16 %v431, %v430
    %v519 = vpack.c.b16 %v433, %v432
    %v520 = vpack.c.b16 %v435, %v434
    %v521 = vpack.c.b16 %v437, %v436
    %v522 = vpack.c.b16 %v439, %v438
    %v523 = vpack.c.b16 %v441, %v440
    %v524 = vpack.c.b16 %v443, %v442
    %v525 = vpack.c.b16 %v445, %v444
    %v526 = vpack.c.b16 %v447, %v446
    %v527 = vpack.c.b16 %v449, %v448
    %v528 = vpack.c.b16 %v451, %v450
    %v529 = vpack.c.b16 %v453, %v452
    %v530 = vpack.c.b16 %v455, %v454
    %v531 = vpack.c.b16 %v457, %v456
    %v532 = vpack.c.b16 %v459, %v458
    %v533 = vpack.c.b16 %v461, %v460
    %v534 = vpack.c.b16 %v463, %v462
    %v535 = vpack.c.b16 %v465, %v464
    %v536 = vpack.c.b16 %v467, %v466
    %v537 = vpack.c.b16 %v469, %v468
    %v538 = vpack.c.b16 %v471, %v470
    %v539 = vpack.c.b16 %v473, %v472
    %v540 = vpack.c.b16 %v475, %v474
    %v541 = vpack.c.b16 %v477, %v476
    %606 = vmatprep.subr.bf16.mxu0 0
    %607 = vmatpush1.bf16.msra.mxu0 %v478
    %608 = vmatprep.subr.bf16.mxu0 0
    %609 = vmatpush1.bf16.msra.mxu0 %v479
    %610 = vmatprep.subr.bf16.mxu0 0
    %611 = vmatpush1.bf16.msra.mxu0 %v480
    %612 = vmatprep.subr.bf16.mxu0 0
    %613 = vmatpush1.bf16.msra.mxu0 %v481
    %614 = vmatprep.subr.bf16.mxu0 0
    %615 = vmatpush1.bf16.msra.mxu0 %v482
    %616 = vmatprep.subr.bf16.mxu0 0
    %617 = vmatpush1.bf16.msra.mxu0 %v483
    %618 = vmatprep.subr.bf16.mxu0 0
    %619 = vmatpush1.bf16.msra.mxu0 %v484
    %620 = vmatprep.subr.bf16.mxu0 0
    %621 = vmatpush1.bf16.msra.mxu0 %v485
    %622 = vmatprep.subr.bf16.mxu0 0
    %623 = vmatpush1.bf16.msra.mxu0 %v486
    %624 = vmatprep.subr.bf16.mxu0 0
    %625 = vmatpush1.bf16.msra.mxu0 %v487
    %626 = vmatprep.subr.bf16.mxu0 0
    %627 = vmatpush1.bf16.msra.mxu0 %v488
    %628 = vmatprep.subr.bf16.mxu0 0
    %629 = vmatpush1.bf16.msra.mxu0 %v489
    %630 = vmatprep.subr.bf16.mxu0 0
    %631 = vmatpush1.bf16.msra.mxu0 %v490
    %632 = vmatprep.subr.bf16.mxu0 0
    %633 = vmatpush1.bf16.msra.mxu0 %v491
    %634 = vmatprep.subr.bf16.mxu0 0
    %635 = vmatpush1.bf16.msra.mxu0 %v492
    %636 = vmatprep.subr.bf16.mxu0 0
    %637 = vmatpush1.bf16.msra.mxu0 %v493
    %638 = vmatprep.mubr.bf16.mxu0 %v202
    %639 = vmatmul.mubr.bf16.gmra.mrb[0].mxu0 %v188
    %v640 = vpop.f32.mrb[0].mxu0
    %v641 = vadd.f32 %v162, %v640
    %v642 = vpop.f32.mrb[0].mxu0
    %v643 = vpop.f32.mrb[0].mxu0
    %v644 = vpop.f32.mrb[0].mxu0
    %645 = vdwg.mxu0
    %646 = vmatprep.subr.bf16.mxu0 0
    %647 = vmatpush1.bf16.msra.mxu0 %v494
    %648 = vmatprep.subr.bf16.mxu0 0
    %649 = vmatpush1.bf16.msra.mxu0 %v495
    %650 = vmatprep.subr.bf16.mxu0 0
    %651 = vmatpush1.bf16.msra.mxu0 %v496
    %652 = vmatprep.subr.bf16.mxu0 0
    %653 = vmatpush1.bf16.msra.mxu0 %v497
    %654 = vmatprep.subr.bf16.mxu0 0
    %655 = vmatpush1.bf16.msra.mxu0 %v498
    %656 = vmatprep.subr.bf16.mxu0 0
    %657 = vmatpush1.bf16.msra.mxu0 %v499
    %658 = vmatprep.subr.bf16.mxu0 0
    %659 = vmatpush1.bf16.msra.mxu0 %v500
    %660 = vmatprep.subr.bf16.mxu0 0
    %661 = vmatpush1.bf16.msra.mxu0 %v501
    %662 = vmatprep.subr.bf16.mxu0 0
    %663 = vmatpush1.bf16.msra.mxu0 %v502
    %664 = vmatprep.subr.bf16.mxu0 0
    %665 = vmatpush1.bf16.msra.mxu0 %v503
    %666 = vmatprep.subr.bf16.mxu0 0
    %667 = vmatpush1.bf16.msra.mxu0 %v504
    %668 = vmatprep.subr.bf16.mxu0 0
    %669 = vmatpush1.bf16.msra.mxu0 %v505
    %670 = vmatprep.subr.bf16.mxu0 0
    %671 = vmatpush1.bf16.msra.mxu0 %v506
    %672 = vmatprep.subr.bf16.mxu0 0
    %673 = vmatpush1.bf16.msra.mxu0 %v507
    %674 = vmatprep.subr.bf16.mxu0 0
    %675 = vmatpush1.bf16.msra.mxu0 %v508
    %676 = vmatprep.subr.bf16.mxu0 0
    %677 = vmatpush1.bf16.msra.mxu0 %v509
    %678 = vmatprep.mubr.bf16.mxu0 %v212
    %679 = vmatmul.mubr.bf16.gmra.mrb[0].mxu0 %v210
    %v680 = vpop.f32.mrb[0].mxu0
    %v681 = vadd.f32 %v641, %v680
    %v682 = vpop.f32.mrb[0].mxu0
    %v683 = vpop.f32.mrb[0].mxu0
    %v684 = vpop.f32.mrb[0].mxu0
    %685 = vdwg.mxu0
    %686 = vmatprep.subr.bf16.mxu0 0
    %687 = vmatpush1.bf16.msra.mxu0 %v510
    %688 = vmatprep.subr.bf16.mxu0 0
    %689 = vmatpush1.bf16.msra.mxu0 %v511
    %690 = vmatprep.subr.bf16.mxu0 0
    %691 = vmatpush1.bf16.msra.mxu0 %v512
    %692 = vmatprep.subr.bf16.mxu0 0
    %693 = vmatpush1.bf16.msra.mxu0 %v513
    %694 = vmatprep.subr.bf16.mxu0 0
    %695 = vmatpush1.bf16.msra.mxu0 %v514
    %696 = vmatprep.subr.bf16.mxu0 0
    %697 = vmatpush1.bf16.msra.mxu0 %v515
    %698 = vmatprep.subr.bf16.mxu0 0
    %699 = vmatpush1.bf16.msra.mxu0 %v516
    %700 = vmatprep.subr.bf16.mxu0 0
    %701 = vmatpush1.bf16.msra.mxu0 %v517
    %702 = vmatprep.subr.bf16.mxu0 0
    %703 = vmatpush1.bf16.msra.mxu0 %v518
    %704 = vmatprep.subr.bf16.mxu0 0
    %705 = vmatpush1.bf16.msra.mxu0 %v519
    %706 = vmatprep.subr.bf16.mxu0 0
    %707 = vmatpush1.bf16.msra.mxu0 %v520
    %708 = vmatprep.subr.bf16.mxu0 0
    %709 = vmatpush1.bf16.msra.mxu0 %v521
    %710 = vmatprep.subr.bf16.mxu0 0
    %711 = vmatpush1.bf16.msra.mxu0 %v522
    %712 = vmatprep.subr.bf16.mxu0 0
    %713 = vmatpush1.bf16.msra.mxu0 %v523
    %714 = vmatprep.subr.bf16.mxu0 0
    %715 = vmatpush1.bf16.msra.mxu0 %v524
    %716 = vmatprep.subr.bf16.mxu0 0
    %717 = vmatpush1.bf16.msra.mxu0 %v525
    %718 = vmatprep.mubr.bf16.mxu0 %v209
    %719 = vmatmul.mubr.bf16.gmra.mrb[0].mxu0 %v195
    %v720 = vpop.f32.mrb[0].mxu0
    %v721 = vadd.f32 %v681, %v720
    %v722 = vpop.f32.mrb[0].mxu0
    %v723 = vpop.f32.mrb[0].mxu0
    %v724 = vpop.f32.mrb[0].mxu0
    %725 = vdwg.mxu0
    %726 = vmatprep.subr.bf16.mxu0 0
    %727 = vmatpush1.bf16.msra.mxu0 %v526
    %728 = vmatprep.subr.bf16.mxu0 0
    %729 = vmatpush1.bf16.msra.mxu0 %v527
    %730 = vmatprep.subr.bf16.mxu0 0
    %731 = vmatpush1.bf16.msra.mxu0 %v528
    %732 = vmatprep.subr.bf16.mxu0 0
    %733 = vmatpush1.bf16.msra.mxu0 %v529
    %734 = vmatprep.subr.bf16.mxu0 0
    %735 = vmatpush1.bf16.msra.mxu0 %v530
    %736 = vmatprep.subr.bf16.mxu0 0
    %737 = vmatpush1.bf16.msra.mxu0 %v531
    %738 = vmatprep.subr.bf16.mxu0 0
    %739 = vmatpush1.bf16.msra.mxu0 %v532
    %740 = vmatprep.subr.bf16.mxu0 0
    %741 = vmatpush1.bf16.msra.mxu0 %v533
    %742 = vmatprep.subr.bf16.mxu0 0
    %743 = vmatpush1.bf16.msra.mxu0 %v534
    %744 = vmatprep.subr.bf16.mxu0 0
    %745 = vmatpush1.bf16.msra.mxu0 %v535
    %746 = vmatprep.subr.bf16.mxu0 0
    %747 = vmatpush1.bf16.msra.mxu0 %v536
    %748 = vmatprep.subr.bf16.mxu0 0
    %749 = vmatpush1.bf16.msra.mxu0 %v537
    %750 = vmatprep.subr.bf16.mxu0 0
    %751 = vmatpush1.bf16.msra.mxu0 %v538
    %752 = vmatprep.subr.bf16.mxu0 0
    %753 = vmatpush1.bf16.msra.mxu0 %v539
    %754 = vmatprep.subr.bf16.mxu0 0
    %755 = vmatpush1.bf16.msra.mxu0 %v540
    %756 = vmatprep.subr.bf16.mxu0 0
    %757 = vmatpush1.bf16.msra.mxu0 %v541
    %758 = vmatprep.mubr.bf16.mxu0 %v213
    %759 = vmatmul.mubr.bf16.gmra.mrb[0].mxu0 %v211
    %v760 = vpop.f32.mrb[0].mxu0
    %v761 = vadd.f32 %v721, %v760
    %v762 = vpop.f32.mrb[0].mxu0
    %v763 = vpop.f32.mrb[0].mxu0
    %v764 = vpop.f32.mrb[0].mxu0
    %765 = vdwg.mxu0
    %v766 = vmax.f32 %v761, 0.0
    %v767 = vpack.c.bf16 %v766, %v766
    %v768 = vld [vmem:[%s3] sm:$0xff]
    %v769 = vld [vmem:[%s3 + $0x8] sm:$0xff]
    %v770 = vld [vmem:[%s3 + $0x10] sm:$0xff]
    %v771 = vld [vmem:[%s3 + $0x18] sm:$0xff]
    %v772 = vld [vmem:[%s3 + $0x20] sm:$0xff]
    %v773 = vld [vmem:[%s3 + $0x28] sm:$0xff]
    %v774 = vld [vmem:[%s3 + $0x30] sm:$0xff]
    %v775 = vld [vmem:[%s3 + $0x38] sm:$0xff]
    %v776 = vld [vmem:[%s3 + $0x40] sm:$0xff]
    %v777 = vld [vmem:[%s3 + $0x48] sm:$0xff]
    %v778 = vld [vmem:[%s3 + $0x50] sm:$0xff]
    %v779 = vld [vmem:[%s3 + $0x58] sm:$0xff]
    %v780 = vld [vmem:[%s3 + $0x60] sm:$0xff]
    %v781 = vld [vmem:[%s3 + $0x68] sm:$0xff]
    %v782 = vld [vmem:[%s3 + $0x70] sm:$0xff]
    %v783 = vld [vmem:[%s3 + $0x78] sm:$0xff]
    %v784 = vld [vmem:[%s3 + $0x80] sm:$0xff]
    %v785 = vld [vmem:[%s3 + $0x88] sm:$0xff]
    %v786 = vld [vmem:[%s3 + $0x90] sm:$0xff]
    %v787 = vld [vmem:[%s3 + $0x98] sm:$0xff]
    %v788 = vld [vmem:[%s3 + $0xa0] sm:$0xff]
    %v789 = vld [vmem:[%s3 + $0xa8] sm:$0xff]
    %v790 = vld [vmem:[%s3 + $0xb0] sm:$0xff]
    %v791 = vld [vmem:[%s3 + $0xb8] sm:$0xff]
    %v792 = vld [vmem:[%s3 + $0xc0] sm:$0xff]
    %v793 = vld [vmem:[%s3 + $0xc8] sm:$0xff]
    %v794 = vld [vmem:[%s3 + $0xd0] sm:$0xff]
    %v795 = vld [vmem:[%s3 + $0xd8] sm:$0xff]
    %v796 = vld [vmem:[%s3 + $0xe0] sm:$0xff]
    %v797 = vld [vmem:[%s3 + $0xe8] sm:$0xff]
    %v798 = vld [vmem:[%s3 + $0xf0] sm:$0xff]
    %v799 = vld [vmem:[%s3 + $0xf8] sm:$0xff]
    %v800 = vld [vmem:[%s3 + $0x100] sm:$0xff]
    %v801 = vld [vmem:[%s3 + $0x108] sm:$0xff]
    %v802 = vld [vmem:[%s3 + $0x110] sm:$0xff]
    %v803 = vld [vmem:[%s3 + $0x118] sm:$0xff]
    %v804 = vld [vmem:[%s3 + $0x120] sm:$0xff]
    %v805 = vld [vmem:[%s3 + $0x128] sm:$0xff]
    %v806 = vld [vmem:[%s3 + $0x130] sm:$0xff]
    %v807 = vld [vmem:[%s3 + $0x138] sm:$0xff]
    %v808 = vld [vmem:[%s3 + $0x140] sm:$0xff]
    %v809 = vld [vmem:[%s3 + $0x148] sm:$0xff]
    %v810 = vld [vmem:[%s3 + $0x150] sm:$0xff]
    %v811 = vld [vmem:[%s3 + $0x158] sm:$0xff]
    %v812 = vld [vmem:[%s3 + $0x160] sm:$0xff]
    %v813 = vld [vmem:[%s3 + $0x168] sm:$0xff]
    %v814 = vld [vmem:[%s3 + $0x170] sm:$0xff]
    %v815 = vld [vmem:[%s3 + $0x178] sm:$0xff]
    %v816 = vld [vmem:[%s3 + $0x180] sm:$0xff]
    %v817 = vld [vmem:[%s3 + $0x188] sm:$0xff]
    %v818 = vld [vmem:[%s3 + $0x190] sm:$0xff]
    %v819 = vld [vmem:[%s3 + $0x198] sm:$0xff]
    %v820 = vld [vmem:[%s3 + $0x1a0] sm:$0xff]
    %v821 = vld [vmem:[%s3 + $0x1a8] sm:$0xff]
    %v822 = vld [vmem:[%s3 + $0x1b0] sm:$0xff]
    %v823 = vld [vmem:[%s3 + $0x1b8] sm:$0xff]
    %v824 = vld [vmem:[%s3 + $0x1c0] sm:$0xff]
    %v825 = vld [vmem:[%s3 + $0x1c8] sm:$0xff]
    %v826 = vld [vmem:[%s3 + $0x1d0] sm:$0xff]
    %v827 = vld [vmem:[%s3 + $0x1d8] sm:$0xff]
    %v828 = vld [vmem:[%s3 + $0x1e0] sm:$0xff]
    %v829 = vld [vmem:[%s3 + $0x1e8] sm:$0xff]
    %v830 = vld [vmem:[%s3 + $0x1f0] sm:$0xff]
    %v831 = vld [vmem:[%s3 + $0x1f8] sm:$0xff]
    %v832 = vld [vmem:[%s4] sm:$0xff]
    %v834 = vlaneseq
    %v835 = vshrl.u32 %v834, 7
    %v836 = vsub.s32 0, %v835
    %v837 = vrot.slane %v832, %v836
    %v838 = vlaneseq
    %v839 = vshrl.u32 %v838, 7
    %v840 = vsub.s32 1, %v839
    %v841 = vrot.slane %v832, %v840
    %v842 = vlaneseq
    %v843 = vshrl.u32 %v842, 7
    %v844 = vsub.s32 2, %v843
    %v845 = vrot.slane %v832, %v844
    %v846 = vlaneseq
    %v847 = vshrl.u32 %v846, 7
    %v848 = vsub.s32 3, %v847
    %v849 = vrot.slane %v832, %v848
    %v850 = vlaneseq
    %v851 = vshrl.u32 %v850, 7
    %v852 = vsub.s32 4, %v851
    %v853 = vrot.slane %v832, %v852
    %v854 = vlaneseq
    %v855 = vshrl.u32 %v854, 7
    %v856 = vsub.s32 5, %v855
    %v857 = vrot.slane %v832, %v856
    %v858 = vlaneseq
    %v859 = vshrl.u32 %v858, 7
    %v860 = vsub.s32 6, %v859
    %v861 = vrot.slane %v832, %v860
    %v862 = vlaneseq
    %v863 = vshrl.u32 %v862, 7
    %v864 = vsub.s32 7, %v863
    %v865 = vrot.slane %v832, %v864
    %v938 = vunpack.c.l.b16 %v768
    %v939 = vunpack.c.h.b16 %v768
    %v940 = vunpack.c.l.b16 %v769
    %v941 = vunpack.c.h.b16 %v769
    %v942 = vunpack.c.l.b16 %v770
    %v943 = vunpack.c.h.b16 %v770
    %v944 = vunpack.c.l.b16 %v771
    %v945 = vunpack.c.h.b16 %v771
    %v946 = vunpack.c.l.b16 %v772
    %v947 = vunpack.c.h.b16 %v772
    %v948 = vunpack.c.l.b16 %v773
    %v949 = vunpack.c.h.b16 %v773
    %v950 = vunpack.c.l.b16 %v774
    %v951 = vunpack.c.h.b16 %v774
    %v952 = vunpack.c.l.b16 %v775
    %v953 = vunpack.c.h.b16 %v775
    %v954 = vunpack.c.l.b16 %v776
    %v955 = vunpack.c.h.b16 %v776
    %v956 = vunpack.c.l.b16 %v777
    %v957 = vunpack.c.h.b16 %v777
    %v958 = vunpack.c.l.b16 %v778
    %v959 = vunpack.c.h.b16 %v778
    %v960 = vunpack.c.l.b16 %v779
    %v961 = vunpack.c.h.b16 %v779
    %v962 = vunpack.c.l.b16 %v780
    %v963 = vunpack.c.h.b16 %v780
    %v964 = vunpack.c.l.b16 %v781
    %v965 = vunpack.c.h.b16 %v781
    %v966 = vunpack.c.l.b16 %v782
    %v967 = vunpack.c.h.b16 %v782
    %v968 = vunpack.c.l.b16 %v783
    %v969 = vunpack.c.h.b16 %v783
    %v970 = vunpack.c.l.b16 %v784
    %v971 = vunpack.c.h.b16 %v784
    %v972 = vunpack.c.l.b16 %v785
    %v973 = vunpack.c.h.b16 %v785
    %v974 = vunpack.c.l.b16 %v786
    %v975 = vunpack.c.h.b16 %v786
    %v976 = vunpack.c.l.b16 %v787
    %v977 = vunpack.c.h.b16 %v787
    %v978 = vunpack.c.l.b16 %v788
    %v979 = vunpack.c.h.b16 %v788
    %v980 = vunpack.c.l.b16 %v789
    %v981 = vunpack.c.h.b16 %v789
    %v982 = vunpack.c.l.b16 %v790
    %v983 = vunpack.c.h.b16 %v790
    %v984 = vunpack.c.l.b16 %v791
    %v985 = vunpack.c.h.b16 %v791
    %v986 = vunpack.c.l.b16 %v792
    %v987 = vunpack.c.h.b16 %v792
    %v988 = vunpack.c.l.b16 %v793
    %v989 = vunpack.c.h.b16 %v793
    %v990 = vunpack.c.l.b16 %v794
    %v991 = vunpack.c.h.b16 %v794
    %v992 = vunpack.c.l.b16 %v795
    %v993 = vunpack.c.h.b16 %v795
    %v994 = vunpack.c.l.b16 %v796
    %v995 = vunpack.c.h.b16 %v796
    %v996 = vunpack.c.l.b16 %v797
    %v997 = vunpack.c.h.b16 %v797
    %v998 = vunpack.c.l.b16 %v798
    %v999 = vunpack.c.h.b16 %v798
    %v1000 = vunpack.c.l.b16 %v799
    %v1001 = vunpack.c.h.b16 %v799
    %v1002 = vunpack.c.l.b16 %v800
    %v1003 = vunpack.c.h.b16 %v800
    %v1004 = vunpack.c.l.b16 %v801
    %v1005 = vunpack.c.h.b16 %v801
    %v1006 = vunpack.c.l.b16 %v802
    %v1007 = vunpack.c.h.b16 %v802
    %v1008 = vunpack.c.l.b16 %v803
    %v1009 = vunpack.c.h.b16 %v803
    %v1010 = vunpack.c.l.b16 %v804
    %v1011 = vunpack.c.h.b16 %v804
    %v1012 = vunpack.c.l.b16 %v805
    %v1013 = vunpack.c.h.b16 %v805
    %v1014 = vunpack.c.l.b16 %v806
    %v1015 = vunpack.c.h.b16 %v806
    %v1016 = vunpack.c.l.b16 %v807
    %v1017 = vunpack.c.h.b16 %v807
    %v1018 = vunpack.c.l.b16 %v808
    %v1019 = vunpack.c.h.b16 %v808
    %v1020 = vunpack.c.l.b16 %v809
    %v1021 = vunpack.c.h.b16 %v809
    %v1022 = vunpack.c.l.b16 %v810
    %v1023 = vunpack.c.h.b16 %v810
    %v1024 = vunpack.c.l.b16 %v811
    %v1025 = vunpack.c.h.b16 %v811
    %v1026 = vunpack.c.l.b16 %v812
    %v1027 = vunpack.c.h.b16 %v812
    %v1028 = vunpack.c.l.b16 %v813
    %v1029 = vunpack.c.h.b16 %v813
    %v1030 = vunpack.c.l.b16 %v814
    %v1031 = vunpack.c.h.b16 %v814
    %v1032 = vunpack.c.l.b16 %v815
    %v1033 = vunpack.c.h.b16 %v815
    %v1034 = vunpack.c.l.b16 %v816
    %v1035 = vunpack.c.h.b16 %v816
    %v1036 = vunpack.c.l.b16 %v817
    %v1037 = vunpack.c.h.b16 %v817
    %v1038 = vunpack.c.l.b16 %v818
    %v1039 = vunpack.c.h.b16 %v818
    %v1040 = vunpack.c.l.b16 %v819
    %v1041 = vunpack.c.h.b16 %v819
    %v1042 = vunpack.c.l.b16 %v820
    %v1043 = vunpack.c.h.b16 %v820
    %v1044 = vunpack.c.l.b16 %v821
    %v1045 = vunpack.c.h.b16 %v821
    %v1046 = vunpack.c.l.b16 %v822
    %v1047 = vunpack.c.h.b16 %v822
    %v1048 = vunpack.c.l.b16 %v823
    %v1049 = vunpack.c.h.b16 %v823
    %v1050 = vunpack.c.l.b16 %v824
    %v1051 = vunpack.c.h.b16 %v824
    %v1052 = vunpack.c.l.b16 %v825
    %v1053 = vunpack.c.h.b16 %v825
    %v1054 = vunpack.c.l.b16 %v826
    %v1055 = vunpack.c.h.b16 %v826
    %v1056 = vunpack.c.l.b16 %v827
    %v1057 = vunpack.c.h.b16 %v827
    %v1058 = vunpack.c.l.b16 %v828
    %v1059 = vunpack.c.h.b16 %v828
    %v1060 = vunpack.c.l.b16 %v829
    %v1061 = vunpack.c.h.b16 %v829
    %v1062 = vunpack.c.l.b16 %v830
    %v1063 = vunpack.c.h.b16 %v830
    %v1064 = vunpack.c.l.b16 %v831
    %v1065 = vunpack.c.h.b16 %v831
    %v1066 = vpack.c.b16 %v946, %v938
    %v1067 = vpack.c.b16 %v947, %v939
    %v1068 = vpack.c.b16 %v948, %v940
    %v1069 = vpack.c.b16 %v949, %v941
    %v1070 = vpack.c.b16 %v950, %v942
    %v1071 = vpack.c.b16 %v951, %v943
    %v1072 = vpack.c.b16 %v952, %v944
    %v1073 = vpack.c.b16 %v953, %v945
    %v1074 = vpack.c.b16 %v962, %v954
    %v1075 = vpack.c.b16 %v963, %v955
    %v1076 = vpack.c.b16 %v964, %v956
    %v1077 = vpack.c.b16 %v965, %v957
    %v1078 = vpack.c.b16 %v966, %v958
    %v1079 = vpack.c.b16 %v967, %v959
    %v1080 = vpack.c.b16 %v968, %v960
    %v1081 = vpack.c.b16 %v969, %v961
    %v1082 = vpack.c.b16 %v978, %v970
    %v1083 = vpack.c.b16 %v979, %v971
    %v1084 = vpack.c.b16 %v980, %v972
    %v1085 = vpack.c.b16 %v981, %v973
    %v1086 = vpack.c.b16 %v982, %v974
    %v1087 = vpack.c.b16 %v983, %v975
    %v1088 = vpack.c.b16 %v984, %v976
    %v1089 = vpack.c.b16 %v985, %v977
    %v1090 = vpack.c.b16 %v994, %v986
    %v1091 = vpack.c.b16 %v995, %v987
    %v1092 = vpack.c.b16 %v996, %v988
    %v1093 = vpack.c.b16 %v997, %v989
    %v1094 = vpack.c.b16 %v998, %v990
    %v1095 = vpack.c.b16 %v999, %v991
    %v1096 = vpack.c.b16 %v1000, %v992
    %v1097 = vpack.c.b16 %v1001, %v993
    %v1098 = vpack.c.b16 %v1010, %v1002
    %v1099 = vpack.c.b16 %v1011, %v1003
    %v1100 = vpack.c.b16 %v1012, %v1004
    %v1101 = vpack.c.b16 %v1013, %v1005
    %v1102 = vpack.c.b16 %v1014, %v1006
    %v1103 = vpack.c.b16 %v1015, %v1007
    %v1104 = vpack.c.b16 %v1016, %v1008
    %v1105 = vpack.c.b16 %v1017, %v1009
    %v1106 = vpack.c.b16 %v1026, %v1018
    %v1107 = vpack.c.b16 %v1027, %v1019
    %v1108 = vpack.c.b16 %v1028, %v1020
    %v1109 = vpack.c.b16 %v1029, %v1021
    %v1110 = vpack.c.b16 %v1030, %v1022
    %v1111 = vpack.c.b16 %v1031, %v1023
    %v1112 = vpack.c.b16 %v1032, %v1024
    %v1113 = vpack.c.b16 %v1033, %v1025
    %v1114 = vpack.c.b16 %v1042, %v1034
    %v1115 = vpack.c.b16 %v1043, %v1035
    %v1116 = vpack.c.b16 %v1044, %v1036
    %v1117 = vpack.c.b16 %v1045, %v1037
    %v1118 = vpack.c.b16 %v1046, %v1038
    %v1119 = vpack.c.b16 %v1047, %v1039
    %v1120 = vpack.c.b16 %v1048, %v1040
    %v1121 = vpack.c.b16 %v1049, %v1041
    %v1122 = vpack.c.b16 %v1058, %v1050
    %v1123 = vpack.c.b16 %v1059, %v1051
    %v1124 = vpack.c.b16 %v1060, %v1052
    %v1125 = vpack.c.b16 %v1061, %v1053
    %v1126 = vpack.c.b16 %v1062, %v1054
    %v1127 = vpack.c.b16 %v1063, %v1055
    %v1128 = vpack.c.b16 %v1064, %v1056
    %v1129 = vpack.c.b16 %v1065, %v1057
    %1194 = vmatprep.subr.bf16.mxu0 %v1067
    %1195 = vmatpush1.bf16.msra.mxu0 %v1066
    %1196 = vmatprep.subr.bf16.mxu0 %v1075
    %1197 = vmatpush1.bf16.msra.mxu0 %v1074
    %1198 = vmatprep.subr.bf16.mxu0 %v1083
    %1199 = vmatpush1.bf16.msra.mxu0 %v1082
    %1200 = vmatprep.subr.bf16.mxu0 %v1091
    %1201 = vmatpush1.bf16.msra.mxu0 %v1090
    %1202 = vmatprep.subr.bf16.mxu0 %v1099
    %1203 = vmatpush1.bf16.msra.mxu0 %v1098
    %1204 = vmatprep.subr.bf16.mxu0 %v1107
    %1205 = vmatpush1.bf16.msra.mxu0 %v1106
    %1206 = vmatprep.subr.bf16.mxu0 %v1115
    %1207 = vmatpush1.bf16.msra.mxu0 %v1114
    %1208 = vmatprep.subr.bf16.mxu0 %v1123
    %1209 = vmatpush1.bf16.msra.mxu0 %v1122
    %1210 = vmatprep.subr.bf16.mxu0 0
    %1211 = vmatpush1.bf16.msra.mxu0 0
    %1212 = vmatprep.subr.bf16.mxu0 0
    %1213 = vmatpush1.bf16.msra.mxu0 0
    %1214 = vmatprep.subr.bf16.mxu0 0
    %1215 = vmatpush1.bf16.msra.mxu0 0
    %1216 = vmatprep.subr.bf16.mxu0 0
    %1217 = vmatpush1.bf16.msra.mxu0 0
    %1218 = vmatprep.subr.bf16.mxu0 0
    %1219 = vmatpush1.bf16.msra.mxu0 0
    %1220 = vmatprep.subr.bf16.mxu0 0
    %1221 = vmatpush1.bf16.msra.mxu0 0
    %1222 = vmatprep.subr.bf16.mxu0 0
    %1223 = vmatpush1.bf16.msra.mxu0 0
    %1224 = vmatprep.subr.bf16.mxu0 0
    %1225 = vmatpush1.bf16.msra.mxu0 0
    %1226 = vmatprep.mubr.bf16.mxu0 0
    %1227 = vmatmul.mubr.bf16.gmra.mrb[0].mxu0 %v767
    %v1228 = vpop.f32.mrb[0].mxu0
    %v1229 = vadd.f32 %v837, %v1228
    %v1230 = vpop.f32.mrb[0].mxu0
    %v1231 = vadd.f32 %v841, %v1230
    %v1232 = vpop.f32.mrb[0].mxu0
    %v1233 = vpop.f32.mrb[0].mxu0
    %1234 = vdwg.mxu0
    %1235 = vmatprep.subr.bf16.mxu0 %v1069
    %1236 = vmatpush1.bf16.msra.mxu0 %v1068
    %1237 = vmatprep.subr.bf16.mxu0 %v1077
    %1238 = vmatpush1.bf16.msra.mxu0 %v1076
    %1239 = vmatprep.subr.bf16.mxu0 %v1085
    %1240 = vmatpush1.bf16.msra.mxu0 %v1084
    %1241 = vmatprep.subr.bf16.mxu0 %v1093
    %1242 = vmatpush1.bf16.msra.mxu0 %v1092
    %1243 = vmatprep.subr.bf16.mxu0 %v1101
    %1244 = vmatpush1.bf16.msra.mxu0 %v1100
    %1245 = vmatprep.subr.bf16.mxu0 %v1109
    %1246 = vmatpush1.bf16.msra.mxu0 %v1108
    %1247 = vmatprep.subr.bf16.mxu0 %v1117
    %1248 = vmatpush1.bf16.msra.mxu0 %v1116
    %1249 = vmatprep.subr.bf16.mxu0 %v1125
    %1250 = vmatpush1.bf16.msra.mxu0 %v1124
    %1251 = vmatprep.subr.bf16.mxu0 0
    %1252 = vmatpush1.bf16.msra.mxu0 0
    %1253 = vmatprep.subr.bf16.mxu0 0
    %1254 = vmatpush1.bf16.msra.mxu0 0
    %1255 = vmatprep.subr.bf16.mxu0 0
    %1256 = vmatpush1.bf16.msra.mxu0 0
    %1257 = vmatprep.subr.bf16.mxu0 0
    %1258 = vmatpush1.bf16.msra.mxu0 0
    %1259 = vmatprep.subr.bf16.mxu0 0
    %1260 = vmatpush1.bf16.msra.mxu0 0
    %1261 = vmatprep.subr.bf16.mxu0 0
    %1262 = vmatpush1.bf16.msra.mxu0 0
    %1263 = vmatprep.subr.bf16.mxu0 0
    %1264 = vmatpush1.bf16.msra.mxu0 0
    %1265 = vmatprep.subr.bf16.mxu0 0
    %1266 = vmatpush1.bf16.msra.mxu0 0
    %1267 = vmatprep.mubr.bf16.mxu0 0
    %1268 = vmatmul.mubr.bf16.gmra.mrb[0].mxu0 %v767
    %v1269 = vpop.f32.mrb[0].mxu0
    %v1270 = vadd.f32 %v845, %v1269
    %v1271 = vpop.f32.mrb[0].mxu0
    %v1272 = vadd.f32 %v849, %v1271
    %v1273 = vpop.f32.mrb[0].mxu0
    %v1274 = vpop.f32.mrb[0].mxu0
    %1275 = vdwg.mxu0
    %1276 = vmatprep.subr.bf16.mxu0 %v1071
    %1277 = vmatpush1.bf16.msra.mxu0 %v1070
    %1278 = vmatprep.subr.bf16.mxu0 %v1079
    %1279 = vmatpush1.bf16.msra.mxu0 %v1078
    %1280 = vmatprep.subr.bf16.mxu0 %v1087
    %1281 = vmatpush1.bf16.msra.mxu0 %v1086
    %1282 = vmatprep.subr.bf16.mxu0 %v1095
    %1283 = vmatpush1.bf16.msra.mxu0 %v1094
    %1284 = vmatprep.subr.bf16.mxu0 %v1103
    %1285 = vmatpush1.bf16.msra.mxu0 %v1102
    %1286 = vmatprep.subr.bf16.mxu0 %v1111
    %1287 = vmatpush1.bf16.msra.mxu0 %v1110
    %1288 = vmatprep.subr.bf16.mxu0 %v1119
    %1289 = vmatpush1.bf16.msra.mxu0 %v1118
    %1290 = vmatprep.subr.bf16.mxu0 %v1127
    %1291 = vmatpush1.bf16.msra.mxu0 %v1126
    %1292 = vmatprep.subr.bf16.mxu0 0
    %1293 = vmatpush1.bf16.msra.mxu0 0
    %1294 = vmatprep.subr.bf16.mxu0 0
    %1295 = vmatpush1.bf16.msra.mxu0 0
    %1296 = vmatprep.subr.bf16.mxu0 0
    %1297 = vmatpush1.bf16.msra.mxu0 0
    %1298 = vmatprep.subr.bf16.mxu0 0
    %1299 = vmatpush1.bf16.msra.mxu0 0
    %1300 = vmatprep.subr.bf16.mxu0 0
    %1301 = vmatpush1.bf16.msra.mxu0 0
    %1302 = vmatprep.subr.bf16.mxu0 0
    %1303 = vmatpush1.bf16.msra.mxu0 0
    %1304 = vmatprep.subr.bf16.mxu0 0
    %1305 = vmatpush1.bf16.msra.mxu0 0
    %1306 = vmatprep.subr.bf16.mxu0 0
    %1307 = vmatpush1.bf16.msra.mxu0 0
    %1308 = vmatprep.mubr.bf16.mxu0 0
    %1309 = vmatmul.mubr.bf16.gmra.mrb[0].mxu0 %v767
    %v1310 = vpop.f32.mrb[0].mxu0
    %v1311 = vadd.f32 %v853, %v1310
    %v1312 = vpop.f32.mrb[0].mxu0
    %v1313 = vadd.f32 %v857, %v1312
    %v1314 = vpop.f32.mrb[0].mxu0
    %v1315 = vpop.f32.mrb[0].mxu0
    %1316 = vdwg.mxu0
    %1317 = vmatprep.subr.bf16.mxu0 %v1073
    %1318 = vmatpush1.bf16.msra.mxu0 %v1072
    %1319 = vmatprep.subr.bf16.mxu0 %v1081
    %1320 = vmatpush1.bf16.msra.mxu0 %v1080
    %1321 = vmatprep.subr.bf16.mxu0 %v1089
    %1322 = vmatpush1.bf16.msra.mxu0 %v1088
    %1323 = vmatprep.subr.bf16.mxu0 %v1097
    %1324 = vmatpush1.bf16.msra.mxu0 %v1096
    %1325 = vmatprep.subr.bf16.mxu0 %v1105
    %1326 = vmatpush1.bf16.msra.mxu0 %v1104
    %1327 = vmatprep.subr.bf16.mxu0 %v1113
    %1328 = vmatpush1.bf16.msra.mxu0 %v1112
    %1329 = vmatprep.subr.bf16.mxu0 %v1121
    %1330 = vmatpush1.bf16.msra.mxu0 %v1120
    %1331 = vmatprep.subr.bf16.mxu0 %v1129
    %1332 = vmatpush1.bf16.msra.mxu0 %v1128
    %1333 = vmatprep.subr.bf16.mxu0 0
    %1334 = vmatpush1.bf16.msra.mxu0 0
    %1335 = vmatprep.subr.bf16.mxu0 0
    %1336 = vmatpush1.bf16.msra.mxu0 0
    %1337 = vmatprep.subr.bf16.mxu0 0
    %1338 = vmatpush1.bf16.msra.mxu0 0
    %1339 = vmatprep.subr.bf16.mxu0 0
    %1340 = vmatpush1.bf16.msra.mxu0 0
    %1341 = vmatprep.subr.bf16.mxu0 0
    %1342 = vmatpush1.bf16.msra.mxu0 0
    %1343 = vmatprep.subr.bf16.mxu0 0
    %1344 = vmatpush1.bf16.msra.mxu0 0
    %1345 = vmatprep.subr.bf16.mxu0 0
    %1346 = vmatpush1.bf16.msra.mxu0 0
    %1347 = vmatprep.subr.bf16.mxu0 0
    %1348 = vmatpush1.bf16.msra.mxu0 0
    %1349 = vmatprep.mubr.bf16.mxu0 0
    %1350 = vmatmul.mubr.bf16.gmra.mrb[0].mxu0 %v767
    %v1351 = vpop.f32.mrb[0].mxu0
    %v1352 = vadd.f32 %v861, %v1351
    %v1353 = vpop.f32.mrb[0].mxu0
    %v1354 = vadd.f32 %v865, %v1353
    %v1355 = vpop.f32.mrb[0].mxu0
    %v1356 = vpop.f32.mrb[0].mxu0
    %1357 = vdwg.mxu0
    %v1358 = vmax.f32 %v1229, 0.0
    %v1359 = vmax.f32 %v1231, 0.0
    %v1360 = vmax.f32 %v1270, 0.0
    %v1361 = vmax.f32 %v1272, 0.0
    %v1362 = vmax.f32 %v1311, 0.0
    %v1363 = vmax.f32 %v1313, 0.0
    %v1364 = vmax.f32 %v1352, 0.0
    %v1365 = vmax.f32 %v1354, 0.0
    %v1366 = vpack.c.bf16 %v1358, %v1358
    %v1367 = vpack.c.bf16 %v1359, %v1359
    %v1368 = vpack.c.bf16 %v1360, %v1360
    %v1369 = vpack.c.bf16 %v1361, %v1361
    %v1370 = vpack.c.bf16 %v1362, %v1362
    %v1371 = vpack.c.bf16 %v1363, %v1363
    %v1372 = vpack.c.bf16 %v1364, %v1364
    %v1373 = vpack.c.bf16 %v1365, %v1365
    %v1374 = vld [vmem:[%s5] sm:$0xf]
    %v1375 = vld [vmem:[%s5 + $0x4] sm:$0xf]
    %v1376 = vld [vmem:[%s5 + $0x8] sm:$0xf]
    %v1377 = vld [vmem:[%s5 + $0xc] sm:$0xf]
    %v1378 = vld [vmem:[%s5 + $0x10] sm:$0xf]
    %v1379 = vld [vmem:[%s5 + $0x14] sm:$0xf]
    %v1380 = vld [vmem:[%s5 + $0x18] sm:$0xf]
    %v1381 = vld [vmem:[%s5 + $0x1c] sm:$0xf]
    %v1382 = vld [vmem:[%s5 + $0x20] sm:$0xf]
    %v1383 = vld [vmem:[%s5 + $0x24] sm:$0xf]
    %v1384 = vld [vmem:[%s5 + $0x28] sm:$0xf]
    %v1385 = vld [vmem:[%s5 + $0x2c] sm:$0xf]
    %v1386 = vld [vmem:[%s5 + $0x30] sm:$0xf]
    %v1387 = vld [vmem:[%s5 + $0x34] sm:$0xf]
    %v1388 = vld [vmem:[%s5 + $0x38] sm:$0xf]
    %v1389 = vld [vmem:[%s5 + $0x3c] sm:$0xf]
    %v1390 = vld [vmem:[%s5 + $0x40] sm:$0xf]
    %v1391 = vld [vmem:[%s5 + $0x44] sm:$0xf]
    %v1392 = vld [vmem:[%s5 + $0x48] sm:$0xf]
    %v1393 = vld [vmem:[%s5 + $0x4c] sm:$0xf]
    %v1394 = vld [vmem:[%s5 + $0x50] sm:$0xf]
    %v1395 = vld [vmem:[%s5 + $0x54] sm:$0xf]
    %v1396 = vld [vmem:[%s5 + $0x58] sm:$0xf]
    %v1397 = vld [vmem:[%s5 + $0x5c] sm:$0xf]
    %v1398 = vld [vmem:[%s5 + $0x60] sm:$0xf]
    %v1399 = vld [vmem:[%s5 + $0x64] sm:$0xf]
    %v1400 = vld [vmem:[%s5 + $0x68] sm:$0xf]
    %v1401 = vld [vmem:[%s5 + $0x6c] sm:$0xf]
    %v1402 = vld [vmem:[%s5 + $0x70] sm:$0xf]
    %v1403 = vld [vmem:[%s5 + $0x74] sm:$0xf]
    %v1404 = vld [vmem:[%s5 + $0x78] sm:$0xf]
    %v1405 = vld [vmem:[%s5 + $0x7c] sm:$0xf]
    %v1406 = vld [vmem:[%s5 + $0x80] sm:$0xf]
    %v1407 = vld [vmem:[%s5 + $0x84] sm:$0xf]
    %v1408 = vld [vmem:[%s5 + $0x88] sm:$0xf]
    %v1409 = vld [vmem:[%s5 + $0x8c] sm:$0xf]
    %v1410 = vld [vmem:[%s5 + $0x90] sm:$0xf]
    %v1411 = vld [vmem:[%s5 + $0x94] sm:$0xf]
    %v1412 = vld [vmem:[%s5 + $0x98] sm:$0xf]
    %v1413 = vld [vmem:[%s5 + $0x9c] sm:$0xf]
    %v1414 = vld [vmem:[%s5 + $0xa0] sm:$0xf]
    %v1415 = vld [vmem:[%s5 + $0xa4] sm:$0xf]
    %v1416 = vld [vmem:[%s5 + $0xa8] sm:$0xf]
    %v1417 = vld [vmem:[%s5 + $0xac] sm:$0xf]
    %v1418 = vld [vmem:[%s5 + $0xb0] sm:$0xf]
    %v1419 = vld [vmem:[%s5 + $0xb4] sm:$0xf]
    %v1420 = vld [vmem:[%s5 + $0xb8] sm:$0xf]
    %v1421 = vld [vmem:[%s5 + $0xbc] sm:$0xf]
    %v1422 = vld [vmem:[%s5 + $0xc0] sm:$0xf]
    %v1423 = vld [vmem:[%s5 + $0xc4] sm:$0xf]
    %v1424 = vld [vmem:[%s5 + $0xc8] sm:$0xf]
    %v1425 = vld [vmem:[%s5 + $0xcc] sm:$0xf]
    %v1426 = vld [vmem:[%s5 + $0xd0] sm:$0xf]
    %v1427 = vld [vmem:[%s5 + $0xd4] sm:$0xf]
    %v1428 = vld [vmem:[%s5 + $0xd8] sm:$0xf]
    %v1429 = vld [vmem:[%s5 + $0xdc] sm:$0xf]
    %v1430 = vld [vmem:[%s5 + $0xe0] sm:$0xf]
    %v1431 = vld [vmem:[%s5 + $0xe4] sm:$0xf]
    %v1432 = vld [vmem:[%s5 + $0xe8] sm:$0xf]
    %v1433 = vld [vmem:[%s5 + $0xec] sm:$0xf]
    %v1434 = vld [vmem:[%s5 + $0xf0] sm:$0xf]
    %v1435 = vld [vmem:[%s5 + $0xf4] sm:$0xf]
    %v1436 = vld [vmem:[%s5 + $0xf8] sm:$0xf]
    %v1437 = vld [vmem:[%s5 + $0xfc] sm:$0xf]
    %v1438 = vld [vmem:[%s5 + $0x100] sm:$0xf]
    %v1439 = vld [vmem:[%s5 + $0x104] sm:$0xf]
    %v1440 = vld [vmem:[%s5 + $0x108] sm:$0xf]
    %v1441 = vld [vmem:[%s5 + $0x10c] sm:$0xf]
    %v1442 = vld [vmem:[%s5 + $0x110] sm:$0xf]
    %v1443 = vld [vmem:[%s5 + $0x114] sm:$0xf]
    %v1444 = vld [vmem:[%s5 + $0x118] sm:$0xf]
    %v1445 = vld [vmem:[%s5 + $0x11c] sm:$0xf]
    %v1446 = vld [vmem:[%s5 + $0x120] sm:$0xf]
    %v1447 = vld [vmem:[%s5 + $0x124] sm:$0xf]
    %v1448 = vld [vmem:[%s5 + $0x128] sm:$0xf]
    %v1449 = vld [vmem:[%s5 + $0x12c] sm:$0xf]
    %v1450 = vld [vmem:[%s5 + $0x130] sm:$0xf]
    %v1451 = vld [vmem:[%s5 + $0x134] sm:$0xf]
    %v1452 = vld [vmem:[%s5 + $0x138] sm:$0xf]
    %v1453 = vld [vmem:[%s5 + $0x13c] sm:$0xf]
    %v1454 = vld [vmem:[%s5 + $0x140] sm:$0xf]
    %v1455 = vld [vmem:[%s5 + $0x144] sm:$0xf]
    %v1456 = vld [vmem:[%s5 + $0x148] sm:$0xf]
    %v1457 = vld [vmem:[%s5 + $0x14c] sm:$0xf]
    %v1458 = vld [vmem:[%s5 + $0x150] sm:$0xf]
    %v1459 = vld [vmem:[%s5 + $0x154] sm:$0xf]
    %v1460 = vld [vmem:[%s5 + $0x158] sm:$0xf]
    %v1461 = vld [vmem:[%s5 + $0x15c] sm:$0xf]
    %v1462 = vld [vmem:[%s5 + $0x160] sm:$0xf]
    %v1463 = vld [vmem:[%s5 + $0x164] sm:$0xf]
    %v1464 = vld [vmem:[%s5 + $0x168] sm:$0xf]
    %v1465 = vld [vmem:[%s5 + $0x16c] sm:$0xf]
    %v1466 = vld [vmem:[%s5 + $0x170] sm:$0xf]
    %v1467 = vld [vmem:[%s5 + $0x174] sm:$0xf]
    %v1468 = vld [vmem:[%s5 + $0x178] sm:$0xf]
    %v1469 = vld [vmem:[%s5 + $0x17c] sm:$0xf]
    %v1470 = vld [vmem:[%s5 + $0x180] sm:$0xf]
    %v1471 = vld [vmem:[%s5 + $0x184] sm:$0xf]
    %v1472 = vld [vmem:[%s5 + $0x188] sm:$0xf]
    %v1473 = vld [vmem:[%s5 + $0x18c] sm:$0xf]
    %v1474 = vld [vmem:[%s5 + $0x190] sm:$0xf]
    %v1475 = vld [vmem:[%s5 + $0x194] sm:$0xf]
    %v1476 = vld [vmem:[%s5 + $0x198] sm:$0xf]
    %v1477 = vld [vmem:[%s5 + $0x19c] sm:$0xf]
    %v1478 = vld [vmem:[%s5 + $0x1a0] sm:$0xf]
    %v1479 = vld [vmem:[%s5 + $0x1a4] sm:$0xf]
    %v1480 = vld [vmem:[%s5 + $0x1a8] sm:$0xf]
    %v1481 = vld [vmem:[%s5 + $0x1ac] sm:$0xf]
    %v1482 = vld [vmem:[%s5 + $0x1b0] sm:$0xf]
    %v1483 = vld [vmem:[%s5 + $0x1b4] sm:$0xf]
    %v1484 = vld [vmem:[%s5 + $0x1b8] sm:$0xf]
    %v1485 = vld [vmem:[%s5 + $0x1bc] sm:$0xf]
    %v1486 = vld [vmem:[%s5 + $0x1c0] sm:$0xf]
    %v1487 = vld [vmem:[%s5 + $0x1c4] sm:$0xf]
    %v1488 = vld [vmem:[%s5 + $0x1c8] sm:$0xf]
    %v1489 = vld [vmem:[%s5 + $0x1cc] sm:$0xf]
    %v1490 = vld [vmem:[%s5 + $0x1d0] sm:$0xf]
    %v1491 = vld [vmem:[%s5 + $0x1d4] sm:$0xf]
    %v1492 = vld [vmem:[%s5 + $0x1d8] sm:$0xf]
    %v1493 = vld [vmem:[%s5 + $0x1dc] sm:$0xf]
    %v1494 = vld [vmem:[%s5 + $0x1e0] sm:$0xf]
    %v1495 = vld [vmem:[%s5 + $0x1e4] sm:$0xf]
    %v1496 = vld [vmem:[%s5 + $0x1e8] sm:$0xf]
    %v1497 = vld [vmem:[%s5 + $0x1ec] sm:$0xf]
    %v1498 = vld [vmem:[%s5 + $0x1f0] sm:$0xf]
    %v1499 = vld [vmem:[%s5 + $0x1f4] sm:$0xf]
    %v1500 = vld [vmem:[%s5 + $0x1f8] sm:$0xf]
    %v1501 = vld [vmem:[%s5 + $0x1fc] sm:$0xf]
    %v1502 = vld [vmem:[%s6] sm:$0x1]
    %v1504 = vlaneseq
    %v1505 = vshrl.u32 %v1504, 7
    %v1506 = vsub.s32 0, %v1505
    %v1507 = vrot.slane %v1502, %v1506
    %v1637 = vunpack.c.l.b16 %v1374
    %v1638 = vunpack.c.l.b16 %v1375
    %v1639 = vunpack.c.l.b16 %v1376
    %v1640 = vunpack.c.l.b16 %v1377
    %v1641 = vunpack.c.l.b16 %v1378
    %v1642 = vunpack.c.l.b16 %v1379
    %v1643 = vunpack.c.l.b16 %v1380
    %v1644 = vunpack.c.l.b16 %v1381
    %v1645 = vunpack.c.l.b16 %v1382
    %v1646 = vunpack.c.l.b16 %v1383
    %v1647 = vunpack.c.l.b16 %v1384
    %v1648 = vunpack.c.l.b16 %v1385
    %v1649 = vunpack.c.l.b16 %v1386
    %v1650 = vunpack.c.l.b16 %v1387
    %v1651 = vunpack.c.l.b16 %v1388
    %v1652 = vunpack.c.l.b16 %v1389
    %v1653 = vunpack.c.l.b16 %v1390
    %v1654 = vunpack.c.l.b16 %v1391
    %v1655 = vunpack.c.l.b16 %v1392
    %v1656 = vunpack.c.l.b16 %v1393
    %v1657 = vunpack.c.l.b16 %v1394
    %v1658 = vunpack.c.l.b16 %v1395
    %v1659 = vunpack.c.l.b16 %v1396
    %v1660 = vunpack.c.l.b16 %v1397
    %v1661 = vunpack.c.l.b16 %v1398
    %v1662 = vunpack.c.l.b16 %v1399
    %v1663 = vunpack.c.l.b16 %v1400
    %v1664 = vunpack.c.l.b16 %v1401
    %v1665 = vunpack.c.l.b16 %v1402
    %v1666 = vunpack.c.l.b16 %v1403
    %v1667 = vunpack.c.l.b16 %v1404
    %v1668 = vunpack.c.l.b16 %v1405
    %v1669 = vunpack.c.l.b16 %v1406
    %v1670 = vunpack.c.l.b16 %v1407
    %v1671 = vunpack.c.l.b16 %v1408
    %v1672 = vunpack.c.l.b16 %v1409
    %v1673 = vunpack.c.l.b16 %v1410
    %v1674 = vunpack.c.l.b16 %v1411
    %v1675 = vunpack.c.l.b16 %v1412
    %v1676 = vunpack.c.l.b16 %v1413
    %v1677 = vunpack.c.l.b16 %v1414
    %v1678 = vunpack.c.l.b16 %v1415
    %v1679 = vunpack.c.l.b16 %v1416
    %v1680 = vunpack.c.l.b16 %v1417
    %v1681 = vunpack.c.l.b16 %v1418
    %v1682 = vunpack.c.l.b16 %v1419
    %v1683 = vunpack.c.l.b16 %v1420
    %v1684 = vunpack.c.l.b16 %v1421
    %v1685 = vunpack.c.l.b16 %v1422
    %v1686 = vunpack.c.l.b16 %v1423
    %v1687 = vunpack.c.l.b16 %v1424
    %v1688 = vunpack.c.l.b16 %v1425
    %v1689 = vunpack.c.l.b16 %v1426
    %v1690 = vunpack.c.l.b16 %v1427
    %v1691 = vunpack.c.l.b16 %v1428
    %v1692 = vunpack.c.l.b16 %v1429
    %v1693 = vunpack.c.l.b16 %v1430
    %v1694 = vunpack.c.l.b16 %v1431
    %v1695 = vunpack.c.l.b16 %v1432
    %v1696 = vunpack.c.l.b16 %v1433
    %v1697 = vunpack.c.l.b16 %v1434
    %v1698 = vunpack.c.l.b16 %v1435
    %v1699 = vunpack.c.l.b16 %v1436
    %v1700 = vunpack.c.l.b16 %v1437
    %v1701 = vunpack.c.l.b16 %v1438
    %v1702 = vunpack.c.l.b16 %v1439
    %v1703 = vunpack.c.l.b16 %v1440
    %v1704 = vunpack.c.l.b16 %v1441
    %v1705 = vunpack.c.l.b16 %v1442
    %v1706 = vunpack.c.l.b16 %v1443
    %v1707 = vunpack.c.l.b16 %v1444
    %v1708 = vunpack.c.l.b16 %v1445
    %v1709 = vunpack.c.l.b16 %v1446
    %v1710 = vunpack.c.l.b16 %v1447
    %v1711 = vunpack.c.l.b16 %v1448
    %v1712 = vunpack.c.l.b16 %v1449
    %v1713 = vunpack.c.l.b16 %v1450
    %v1714 = vunpack.c.l.b16 %v1451
    %v1715 = vunpack.c.l.b16 %v1452
    %v1716 = vunpack.c.l.b16 %v1453
    %v1717 = vunpack.c.l.b16 %v1454
    %v1718 = vunpack.c.l.b16 %v1455
    %v1719 = vunpack.c.l.b16 %v1456
    %v1720 = vunpack.c.l.b16 %v1457
    %v1721 = vunpack.c.l.b16 %v1458
    %v1722 = vunpack.c.l.b16 %v1459
    %v1723 = vunpack.c.l.b16 %v1460
    %v1724 = vunpack.c.l.b16 %v1461
    %v1725 = vunpack.c.l.b16 %v1462
    %v1726 = vunpack.c.l.b16 %v1463
    %v1727 = vunpack.c.l.b16 %v1464
    %v1728 = vunpack.c.l.b16 %v1465
    %v1729 = vunpack.c.l.b16 %v1466
    %v1730 = vunpack.c.l.b16 %v1467
    %v1731 = vunpack.c.l.b16 %v1468
    %v1732 = vunpack.c.l.b16 %v1469
    %v1733 = vunpack.c.l.b16 %v1470
    %v1734 = vunpack.c.l.b16 %v1471
    %v1735 = vunpack.c.l.b16 %v1472
    %v1736 = vunpack.c.l.b16 %v1473
    %v1737 = vunpack.c.l.b16 %v1474
    %v1738 = vunpack.c.l.b16 %v1475
    %v1739 = vunpack.c.l.b16 %v1476
    %v1740 = vunpack.c.l.b16 %v1477
    %v1741 = vunpack.c.l.b16 %v1478
    %v1742 = vunpack.c.l.b16 %v1479
    %v1743 = vunpack.c.l.b16 %v1480
    %v1744 = vunpack.c.l.b16 %v1481
    %v1745 = vunpack.c.l.b16 %v1482
    %v1746 = vunpack.c.l.b16 %v1483
    %v1747 = vunpack.c.l.b16 %v1484
    %v1748 = vunpack.c.l.b16 %v1485
    %v1749 = vunpack.c.l.b16 %v1486
    %v1750 = vunpack.c.l.b16 %v1487
    %v1751 = vunpack.c.l.b16 %v1488
    %v1752 = vunpack.c.l.b16 %v1489
    %v1753 = vunpack.c.l.b16 %v1490
    %v1754 = vunpack.c.l.b16 %v1491
    %v1755 = vunpack.c.l.b16 %v1492
    %v1756 = vunpack.c.l.b16 %v1493
    %v1757 = vunpack.c.l.b16 %v1494
    %v1758 = vunpack.c.l.b16 %v1495
    %v1759 = vunpack.c.l.b16 %v1496
    %v1760 = vunpack.c.l.b16 %v1497
    %v1761 = vunpack.c.l.b16 %v1498
    %v1762 = vunpack.c.l.b16 %v1499
    %v1763 = vunpack.c.l.b16 %v1500
    %v1764 = vunpack.c.l.b16 %v1501
    %v1765 = vpack.c.b16 %v1638, %v1637
    %v1766 = vpack.c.b16 %v1640, %v1639
    %v1767 = vpack.c.b16 %v1642, %v1641
    %v1768 = vpack.c.b16 %v1644, %v1643
    %v1769 = vpack.c.b16 %v1646, %v1645
    %v1770 = vpack.c.b16 %v1648, %v1647
    %v1771 = vpack.c.b16 %v1650, %v1649
    %v1772 = vpack.c.b16 %v1652, %v1651
    %v1773 = vpack.c.b16 %v1654, %v1653
    %v1774 = vpack.c.b16 %v1656, %v1655
    %v1775 = vpack.c.b16 %v1658, %v1657
    %v1776 = vpack.c.b16 %v1660, %v1659
    %v1777 = vpack.c.b16 %v1662, %v1661
    %v1778 = vpack.c.b16 %v1664, %v1663
    %v1779 = vpack.c.b16 %v1666, %v1665
    %v1780 = vpack.c.b16 %v1668, %v1667
    %v1781 = vpack.c.b16 %v1670, %v1669
    %v1782 = vpack.c.b16 %v1672, %v1671
    %v1783 = vpack.c.b16 %v1674, %v1673
    %v1784 = vpack.c.b16 %v1676, %v1675
    %v1785 = vpack.c.b16 %v1678, %v1677
    %v1786 = vpack.c.b16 %v1680, %v1679
    %v1787 = vpack.c.b16 %v1682, %v1681
    %v1788 = vpack.c.b16 %v1684, %v1683
    %v1789 = vpack.c.b16 %v1686, %v1685
    %v1790 = vpack.c.b16 %v1688, %v1687
    %v1791 = vpack.c.b16 %v1690, %v1689
    %v1792 = vpack.c.b16 %v1692, %v1691
    %v1793 = vpack.c.b16 %v1694, %v1693
    %v1794 = vpack.c.b16 %v1696, %v1695
    %v1795 = vpack.c.b16 %v1698, %v1697
    %v1796 = vpack.c.b16 %v1700, %v1699
    %v1797 = vpack.c.b16 %v1702, %v1701
    %v1798 = vpack.c.b16 %v1704, %v1703
    %v1799 = vpack.c.b16 %v1706, %v1705
    %v1800 = vpack.c.b16 %v1708, %v1707
    %v1801 = vpack.c.b16 %v1710, %v1709
    %v1802 = vpack.c.b16 %v1712, %v1711
    %v1803 = vpack.c.b16 %v1714, %v1713
    %v1804 = vpack.c.b16 %v1716, %v1715
    %v1805 = vpack.c.b16 %v1718, %v1717
    %v1806 = vpack.c.b16 %v1720, %v1719
    %v1807 = vpack.c.b16 %v1722, %v1721
    %v1808 = vpack.c.b16 %v1724, %v1723
    %v1809 = vpack.c.b16 %v1726, %v1725
    %v1810 = vpack.c.b16 %v1728, %v1727
    %v1811 = vpack.c.b16 %v1730, %v1729
    %v1812 = vpack.c.b16 %v1732, %v1731
    %v1813 = vpack.c.b16 %v1734, %v1733
    %v1814 = vpack.c.b16 %v1736, %v1735
    %v1815 = vpack.c.b16 %v1738, %v1737
    %v1816 = vpack.c.b16 %v1740, %v1739
    %v1817 = vpack.c.b16 %v1742, %v1741
    %v1818 = vpack.c.b16 %v1744, %v1743
    %v1819 = vpack.c.b16 %v1746, %v1745
    %v1820 = vpack.c.b16 %v1748, %v1747
    %v1821 = vpack.c.b16 %v1750, %v1749
    %v1822 = vpack.c.b16 %v1752, %v1751
    %v1823 = vpack.c.b16 %v1754, %v1753
    %v1824 = vpack.c.b16 %v1756, %v1755
    %v1825 = vpack.c.b16 %v1758, %v1757
    %v1826 = vpack.c.b16 %v1760, %v1759
    %v1827 = vpack.c.b16 %v1762, %v1761
    %v1828 = vpack.c.b16 %v1764, %v1763
    %1893 = vmatprep.subr.bf16.mxu0 0
    %1894 = vmatpush1.bf16.msra.mxu0 %v1765
    %1895 = vmatprep.subr.bf16.mxu0 0
    %1896 = vmatpush1.bf16.msra.mxu0 %v1766
    %1897 = vmatprep.subr.bf16.mxu0 0
    %1898 = vmatpush1.bf16.msra.mxu0 %v1767
    %1899 = vmatprep.subr.bf16.mxu0 0
    %1900 = vmatpush1.bf16.msra.mxu0 %v1768
    %1901 = vmatprep.subr.bf16.mxu0 0
    %1902 = vmatpush1.bf16.msra.mxu0 %v1769
    %1903 = vmatprep.subr.bf16.mxu0 0
    %1904 = vmatpush1.bf16.msra.mxu0 %v1770
    %1905 = vmatprep.subr.bf16.mxu0 0
    %1906 = vmatpush1.bf16.msra.mxu0 %v1771
    %1907 = vmatprep.subr.bf16.mxu0 0
    %1908 = vmatpush1.bf16.msra.mxu0 %v1772
    %1909 = vmatprep.subr.bf16.mxu0 0
    %1910 = vmatpush1.bf16.msra.mxu0 %v1773
    %1911 = vmatprep.subr.bf16.mxu0 0
    %1912 = vmatpush1.bf16.msra.mxu0 %v1774
    %1913 = vmatprep.subr.bf16.mxu0 0
    %1914 = vmatpush1.bf16.msra.mxu0 %v1775
    %1915 = vmatprep.subr.bf16.mxu0 0
    %1916 = vmatpush1.bf16.msra.mxu0 %v1776
    %1917 = vmatprep.subr.bf16.mxu0 0
    %1918 = vmatpush1.bf16.msra.mxu0 %v1777
    %1919 = vmatprep.subr.bf16.mxu0 0
    %1920 = vmatpush1.bf16.msra.mxu0 %v1778
    %1921 = vmatprep.subr.bf16.mxu0 0
    %1922 = vmatpush1.bf16.msra.mxu0 %v1779
    %1923 = vmatprep.subr.bf16.mxu0 0
    %1924 = vmatpush1.bf16.msra.mxu0 %v1780
    %1925 = vmatprep.mubr.bf16.mxu0 %v1367
    %1926 = vmatmul.mubr.bf16.gmra.mrb[0].mxu0 %v1366
    %v1927 = vpop.f32.mrb[0].mxu0
    %v1928 = vadd.f32 %v1507, %v1927
    %v1929 = vpop.f32.mrb[0].mxu0
    %v1930 = vpop.f32.mrb[0].mxu0
    %v1931 = vpop.f32.mrb[0].mxu0
    %1932 = vdwg.mxu0
    %1933 = vmatprep.subr.bf16.mxu0 0
    %1934 = vmatpush1.bf16.msra.mxu0 %v1781
    %1935 = vmatprep.subr.bf16.mxu0 0
    %1936 = vmatpush1.bf16.msra.mxu0 %v1782
    %1937 = vmatprep.subr.bf16.mxu0 0
    %1938 = vmatpush1.bf16.msra.mxu0 %v1783
    %1939 = vmatprep.subr.bf16.mxu0 0
    %1940 = vmatpush1.bf16.msra.mxu0 %v1784
    %1941 = vmatprep.subr.bf16.mxu0 0
    %1942 = vmatpush1.bf16.msra.mxu0 %v1785
    %1943 = vmatprep.subr.bf16.mxu0 0
    %1944 = vmatpush1.bf16.msra.mxu0 %v1786
    %1945 = vmatprep.subr.bf16.mxu0 0
    %1946 = vmatpush1.bf16.msra.mxu0 %v1787
    %1947 = vmatprep.subr.bf16.mxu0 0
    %1948 = vmatpush1.bf16.msra.mxu0 %v1788
    %1949 = vmatprep.subr.bf16.mxu0 0
    %1950 = vmatpush1.bf16.msra.mxu0 %v1789
    %1951 = vmatprep.subr.bf16.mxu0 0
    %1952 = vmatpush1.bf16.msra.mxu0 %v1790
    %1953 = vmatprep.subr.bf16.mxu0 0
    %1954 = vmatpush1.bf16.msra.mxu0 %v1791
    %1955 = vmatprep.subr.bf16.mxu0 0
    %1956 = vmatpush1.bf16.msra.mxu0 %v1792
    %1957 = vmatprep.subr.bf16.mxu0 0
    %1958 = vmatpush1.bf16.msra.mxu0 %v1793
    %1959 = vmatprep.subr.bf16.mxu0 0
    %1960 = vmatpush1.bf16.msra.mxu0 %v1794
    %1961 = vmatprep.subr.bf16.mxu0 0
    %1962 = vmatpush1.bf16.msra.mxu0 %v1795
    %1963 = vmatprep.subr.bf16.mxu0 0
    %1964 = vmatpush1.bf16.msra.mxu0 %v1796
    %1965 = vmatprep.mubr.bf16.mxu0 %v1369
    %1966 = vmatmul.mubr.bf16.gmra.mrb[0].mxu0 %v1368
    %v1967 = vpop.f32.mrb[0].mxu0
    %v1968 = vadd.f32 %v1928, %v1967
    %v1969 = vpop.f32.mrb[0].mxu0
    %v1970 = vpop.f32.mrb[0].mxu0
    %v1971 = vpop.f32.mrb[0].mxu0
    %1972 = vdwg.mxu0
    %1973 = vmatprep.subr.bf16.mxu0 0
    %1974 = vmatpush1.bf16.msra.mxu0 %v1797
    %1975 = vmatprep.subr.bf16.mxu0 0
    %1976 = vmatpush1.bf16.msra.mxu0 %v1798
    %1977 = vmatprep.subr.bf16.mxu0 0
    %1978 = vmatpush1.bf16.msra.mxu0 %v1799
    %1979 = vmatprep.subr.bf16.mxu0 0
    %1980 = vmatpush1.bf16.msra.mxu0 %v1800
    %1981 = vmatprep.subr.bf16.mxu0 0
    %1982 = vmatpush1.bf16.msra.mxu0 %v1801
    %1983 = vmatprep.subr.bf16.mxu0 0
    %1984 = vmatpush1.bf16.msra.mxu0 %v1802
    %1985 = vmatprep.subr.bf16.mxu0 0
    %1986 = vmatpush1.bf16.msra.mxu0 %v1803
    %1987 = vmatprep.subr.bf16.mxu0 0
    %1988 = vmatpush1.bf16.msra.mxu0 %v1804
    %1989 = vmatprep.subr.bf16.mxu0 0
    %1990 = vmatpush1.bf16.msra.mxu0 %v1805
    %1991 = vmatprep.subr.bf16.mxu0 0
    %1992 = vmatpush1.bf16.msra.mxu0 %v1806
    %1993 = vmatprep.subr.bf16.mxu0 0
    %1994 = vmatpush1.bf16.msra.mxu0 %v1807
    %1995 = vmatprep.subr.bf16.mxu0 0
    %1996 = vmatpush1.bf16.msra.mxu0 %v1808
    %1997 = vmatprep.subr.bf16.mxu0 0
    %1998 = vmatpush1.bf16.msra.mxu0 %v1809
    %1999 = vmatprep.subr.bf16.mxu0 0
    %2000 = vmatpush1.bf16.msra.mxu0 %v1810
    %2001 = vmatprep.subr.bf16.mxu0 0
    %2002 = vmatpush1.bf16.msra.mxu0 %v1811
    %2003 = vmatprep.subr.bf16.mxu0 0
    %2004 = vmatpush1.bf16.msra.mxu0 %v1812
    %2005 = vmatprep.mubr.bf16.mxu0 %v1371
    %2006 = vmatmul.mubr.bf16.gmra.mrb[0].mxu0 %v1370
    %v2007 = vpop.f32.mrb[0].mxu0
    %v2008 = vadd.f32 %v1968, %v2007
    %v2009 = vpop.f32.mrb[0].mxu0
    %v2010 = vpop.f32.mrb[0].mxu0
    %v2011 = vpop.f32.mrb[0].mxu0
    %2012 = vdwg.mxu0
    %2013 = vmatprep.subr.bf16.mxu0 0
    %2014 = vmatpush1.bf16.msra.mxu0 %v1813
    %2015 = vmatprep.subr.bf16.mxu0 0
    %2016 = vmatpush1.bf16.msra.mxu0 %v1814
    %2017 = vmatprep.subr.bf16.mxu0 0
    %2018 = vmatpush1.bf16.msra.mxu0 %v1815
    %2019 = vmatprep.subr.bf16.mxu0 0
    %2020 = vmatpush1.bf16.msra.mxu0 %v1816
    %2021 = vmatprep.subr.bf16.mxu0 0
    %2022 = vmatpush1.bf16.msra.mxu0 %v1817
    %2023 = vmatprep.subr.bf16.mxu0 0
    %2024 = vmatpush1.bf16.msra.mxu0 %v1818
    %2025 = vmatprep.subr.bf16.mxu0 0
    %2026 = vmatpush1.bf16.msra.mxu0 %v1819
    %2027 = vmatprep.subr.bf16.mxu0 0
    %2028 = vmatpush1.bf16.msra.mxu0 %v1820
    %2029 = vmatprep.subr.bf16.mxu0 0
    %2030 = vmatpush1.bf16.msra.mxu0 %v1821
    %2031 = vmatprep.subr.bf16.mxu0 0
    %2032 = vmatpush1.bf16.msra.mxu0 %v1822
    %2033 = vmatprep.subr.bf16.mxu0 0
    %2034 = vmatpush1.bf16.msra.mxu0 %v1823
    %2035 = vmatprep.subr.bf16.mxu0 0
    %2036 = vmatpush1.bf16.msra.mxu0 %v1824
    %2037 = vmatprep.subr.bf16.mxu0 0
    %2038 = vmatpush1.bf16.msra.mxu0 %v1825
    %2039 = vmatprep.subr.bf16.mxu0 0
    %2040 = vmatpush1.bf16.msra.mxu0 %v1826
    %2041 = vmatprep.subr.bf16.mxu0 0
    %2042 = vmatpush1.bf16.msra.mxu0 %v1827
    %2043 = vmatprep.subr.bf16.mxu0 0
    %2044 = vmatpush1.bf16.msra.mxu0 %v1828
    %2045 = vmatprep.mubr.bf16.mxu0 %v1373
    %2046 = vmatmul.mubr.bf16.gmra.mrb[0].mxu0 %v1372
    %v2047 = vpop.f32.mrb[0].mxu0
    %v2048 = vadd.f32 %v2008, %v2047
    %v2049 = vpop.f32.mrb[0].mxu0
    %v2050 = vpop.f32.mrb[0].mxu0
    %v2051 = vpop.f32.mrb[0].mxu0
    %2052 = vdwg.mxu0
    %2054 = vset.pattern.permute.xlu0 3
    %2055 = vperm.xlu0 %2054, %v2048
    %v2056 = vpop.permute.xlu0 %2055
    %v2058 = vadd.f32 %v2056, %v2048
    %vm2059 = vcmask 17408
    %v2060 = vsel %vm2059, %v2048, 0.0
    %2061 = vadd.xlane.f32.xlu0 %v2060
    %v2062 = vpop.xlane.xlu0 %2061
    %v2063 = vrot.slane %v2062, 4
    %v2064 = vadd.f32 %v2062, %v2063
    %v2065 = vrot.slane %v2064, 2
    %v2066 = vadd.f32 %v2064, %v2065
    %v2067 = vrot.slane %v2066, 1
    %v2068 = vadd.f32 %v2066, %v2067
    %s2069 = vtos %v2068
    %v2070 = vrcp.pop 6.0
    %s2071 = vtos %v2070
    %s2072 = smul.f32 %s2069, %s2071
    %v2073 = vstv %s2072
    %v2074 = vsub.f32 %v2058, %v2073
    %2075 = vst.msk [vmem:[#allocation2] sm:$0x3] %vm2059, %v2074
    // Predicated region
    $region30: #{dddqn_forward.5} parent=1 // pred_check
      _
    $region31: #{dddqn_forward.5} parent=1 // pred_check_branch
      %2077 = sbr.rel (0) target = $region33
    $region32: #{dddqn_forward.5} parent=1 // pred_region
      %s2079 = ssub.s32 32, 32
      %2080 = vsyncadd [#allocation3], %s2079
      %s2082 = sshll.u32 [#allocation2], 4
      %s2083 = int_to_ptr.vmem [resolvable:$true] %s2082
      %2085 = dma.vmem_to_hbm [thread:$0]  %s2083, 32, %s7, [#allocation3]
    $region33: #{dddqn_forward.5} parent=1 // pred_fallthru
      _
    // Predicated region
    $region34: #{dddqn_forward.5} parent=1 // pred_check
      _
    $region35: #{dddqn_forward.5} parent=1 // pred_check_branch
      %2087 = sbr.rel (0) target = $region37
    $region36: #{dddqn_forward.5} parent=1 // pred_region
      %2088 = dma.done [#allocation3], 32
    $region37: #{dddqn_forward.5} parent=1 // pred_fallthru
      _
    %2089 = vsyncpa [#allocation3], 1

</llo_original>
